<compile_context>
chip_gen: v5e
topology: v5e:2x2
jax: 0.10.0
libtpu: 0.0.40
codegen_flags: <defaults>
</compile_context>

<pallas_src>
import jax
import jax.numpy as jnp
from jax.experimental import pallas as pl
from jax.experimental.pallas import tpu as pltpu


def _round_up(n, m):
    return ((n + m - 1) // m) * m


def _mlp_kernel(x_ref, w1_ref, wst_ref, b_ref, o_ref):
    """Whole forward pass for one batch tile; all weights resident in VMEM."""
    cdt = w1_ref.dtype              # matmul-input dtype (f32 or bf16)
    x = x_ref[...].astype(cdt)      # in-kernel cast (free on VPU)

    # layer_1 (BatchNorm1 folded) + sigmoid
    h = jnp.dot(x, w1_ref[...], preferred_element_type=jnp.float32)
    h = jax.nn.sigmoid(h + b_ref[0:1, :])

    # layer_2 (BatchNorm2 folded) + sigmoid
    h = jnp.dot(h.astype(cdt), wst_ref[0], preferred_element_type=jnp.float32)
    h = jax.nn.sigmoid(h + b_ref[1:2, :])

    # layer_3 (BatchNorm3 folded) + sigmoid
    h = jnp.dot(h.astype(cdt), wst_ref[1], preferred_element_type=jnp.float32)
    h = jax.nn.sigmoid(h + b_ref[2:3, :])

    # output_layer (BatchNorm4 folded) + sigmoid
    h = jnp.dot(h.astype(cdt), wst_ref[2], preferred_element_type=jnp.float32)
    o_ref[...] = jax.nn.sigmoid(h + b_ref[3:4, :])


def _fold_bn_into_linear(gamma, beta, mean, var, w_t, b, eps=1e-5):
    """Fold eval-mode BatchNorm1d that precedes a Linear into the Linear.

    y = ((x - mean)/sqrt(var+eps)*gamma + beta) @ W_T + b
      = x @ (scale[:, None] * W_T) + (shift @ W_T + b)
    """
    scale = gamma / jnp.sqrt(var + eps)
    shift = beta - mean * scale
    w_folded = scale[:, None] * w_t
    b_folded = shift @ w_t + b
    return w_folded.astype(jnp.float32), b_folded.astype(jnp.float32)


def network_forward(x, params, *, batch_tile=256, matmul_dtype=jnp.float32,
                    eps=1e-5):
    """Pallas implementation of Network.forward (eval mode)."""
    B, D_in = x.shape
    H = params["w1"].shape[1]
    D_out = params["wo"].shape[1]

    # ---- fold every BatchNorm into the Linear that follows it (glue) --------
    w1, b1 = _fold_bn_into_linear(params["bn1_gamma"], params["bn1_beta"],
                                  params["bn1_mean"], params["bn1_var"],
                                  params["w1"], params["b1"], eps)
    w2, b2 = _fold_bn_into_linear(params["bn2_gamma"], params["bn2_beta"],
                                  params["bn2_mean"], params["bn2_var"],
                                  params["w2"], params["b2"], eps)
    w3, b3 = _fold_bn_into_linear(params["bn3_gamma"], params["bn3_beta"],
                                  params["bn3_mean"], params["bn3_var"],
                                  params["w3"], params["b3"], eps)
    wo, bo = _fold_bn_into_linear(params["bn4_gamma"], params["bn4_beta"],
                                  params["bn4_mean"], params["bn4_var"],
                                  params["wo"], params["bo"], eps)

    # ---- pad hidden/output feature dims to a lane-dense multiple of 128 -----
    # Padded weight rows/cols are zero; padded hidden lanes become sigmoid(0)
    # but hit zero weight rows downstream, so results are exact.
    P = max(_round_up(H, 128), _round_up(D_out, 128))

    def pad_w(w, rows, cols):
        return jnp.pad(w, ((0, rows - w.shape[0]), (0, cols - w.shape[1])))

    def pad_b(b):
        return jnp.pad(b, (0, P - b.shape[0]))

    w1p = pad_w(w1, D_in, P).astype(matmul_dtype)
    wstack = jnp.stack([pad_w(w2, P, P),
                        pad_w(w3, P, P),
                        pad_w(wo, P, P)]).astype(matmul_dtype)
    bstack = jnp.stack([pad_b(b1), pad_b(b2),
                        pad_b(b3), pad_b(bo)]).astype(jnp.float32)

    # ---- batch tiling: pad B up to a multiple of the tile --------------------
    tile = min(batch_tile, _round_up(B, 8))
    B_pad = _round_up(B, tile)
    x_pad = x if B_pad == B else jnp.pad(x, ((0, B_pad - B), (0, 0)))

    out = pl.pallas_call(
        _mlp_kernel,
        out_shape=jax.ShapeDtypeStruct((B_pad, P), jnp.float32),
        grid_spec=pltpu.PrefetchScalarGridSpec(
            num_scalar_prefetch=0,
            grid=(B_pad // tile,),
            in_specs=[
                pl.BlockSpec((tile, D_in), lambda i: (i, 0)),   # x (tiled)
                pl.BlockSpec((D_in, P), lambda i: (0, 0)),      # W1 (resident)
                pl.BlockSpec((3, P, P), lambda i: (0, 0, 0)),   # W2/W3/Wo
                pl.BlockSpec((4, P), lambda i: (0, 0)),         # biases
            ],
            out_specs=pl.BlockSpec((tile, P), lambda i: (i, 0)),
        ),
        compiler_params=pltpu.CompilerParams(
            dimension_semantics=("parallel",)),
    )(x_pad, w1p, wstack, bstack)

    return out[:B, :D_out]


def init_params(key, input_dim, hidden, output_dim):
    """Deterministic synthetic parameters matching Network.__init__ shapes."""
    ks = jax.random.split(key, 8)

    def linear(k, fan_in, fan_out):
        # PyTorch Linear default init; weight stored transposed (in, out).
        bound = 1.0 / jnp.sqrt(fan_in)
        kw, kb = jax.random.split(k)
        w = jax.random.uniform(kw, (fan_out, fan_in), jnp.float32, -bound, bound)
        b = jax.random.uniform(kb, (fan_out,), jnp.float32, -bound, bound)
        return w.T, b

    w1, b1 = linear(ks[0], input_dim, hidden)
    w2, b2 = linear(ks[1], hidden, hidden)
    w3, b3 = linear(ks[2], hidden, hidden)
    wo, bo = linear(ks[3], hidden, output_dim)

    def bn(k, dim):
        k1, k2, k3 = jax.random.split(k, 3)
        gamma = 1.0 + 0.1 * jax.random.normal(k1, (dim,), jnp.float32)
        beta = 0.05 * jax.random.normal(k2, (dim,), jnp.float32)
        mean = 0.1 * jax.random.normal(k3, (dim,), jnp.float32)
        var = jnp.ones((dim,), jnp.float32) * 1.2
        return gamma, beta, mean, var

    bn1 = bn(ks[4], input_dim)
    bn2 = bn(ks[5], hidden)
    bn3 = bn(ks[6], hidden)
    bn4 = bn(ks[7], hidden)

    return dict(
        w1=w1, b1=b1, w2=w2, b2=b2, w3=w3, b3=b3, wo=wo, bo=bo,
        bn1_gamma=bn1[0], bn1_beta=bn1[1], bn1_mean=bn1[2], bn1_var=bn1[3],
        bn2_gamma=bn2[0], bn2_beta=bn2[1], bn2_mean=bn2[2], bn2_var=bn2[3],
        bn3_gamma=bn3[0], bn3_beta=bn3[1], bn3_mean=bn3[2], bn3_var=bn3[3],
        bn4_gamma=bn4[0], bn4_beta=bn4[1], bn4_mean=bn4[2], bn4_var=bn4[3],
    )


def network_forward_ref(x, params, eps=1e-5):
    """Pure-JAX reference mirroring the PyTorch eval-mode forward."""
    def bn(x, g, b, m, v):
        return (x - m) / jnp.sqrt(v + eps) * g + b

    x = bn(x, params["bn1_gamma"], params["bn1_beta"],
           params["bn1_mean"], params["bn1_var"])
    x = jax.nn.sigmoid(x @ params["w1"] + params["b1"])
    x = bn(x, params["bn2_gamma"], params["bn2_beta"],
           params["bn2_mean"], params["bn2_var"])
    x = jax.nn.sigmoid(x @ params["w2"] + params["b2"])
    x = bn(x, params["bn3_gamma"], params["bn3_beta"],
           params["bn3_mean"], params["bn3_var"])
    x = jax.nn.sigmoid(x @ params["w3"] + params["b3"])
    x = bn(x, params["bn4_gamma"], params["bn4_beta"],
           params["bn4_mean"], params["bn4_var"])
    return jax.nn.sigmoid(x @ params["wo"] + params["bo"])


if __name__ == "__main__":
    INPUT_DIM, HIDDEN, OUTPUT_DIM, BATCH = 16, 32, 4, 512

    key = jax.random.PRNGKey(0)
    kx, kp = jax.random.split(key)
    x = jax.random.normal(kx, (BATCH, INPUT_DIM), jnp.float32)
    params = init_params(kp, INPUT_DIM, HIDDEN, OUTPUT_DIM)

    ref = network_forward_ref(x, params)

    # f32 matmul path: tight tolerance vs reference (BN folding is exact up to fp32 assoc.)
    out = jax.block_until_ready(
        network_forward(x, params, batch_tile=256, matmul_dtype=jnp.float32))
    assert out.shape == (BATCH, OUTPUT_DIM)
    assert jnp.allclose(out, ref, atol=1e-5, rtol=1e-5), "f32 mismatch vs reference"

    # bf16 MXU-input fast path (v6e / v7x): looser tolerance for bf16 rounding.
    out_bf16 = jax.block_until_ready(
        network_forward(x, params, batch_tile=256, matmul_dtype=jnp.bfloat16))
    assert jnp.allclose(out_bf16, ref, atol=5e-2, rtol=5e-2), "bf16 mismatch vs reference"

    # ragged / tiny batch exercises the wrapper's batch-padding path.
    out_small = jax.block_until_ready(network_forward(x[:10], params))
    assert jnp.allclose(out_small, ref[:10], atol=1e-5, rtol=1e-5), "small-batch mismatch"

    print("KERNEL_OK")
</pallas_src>

<mosaic_0001>
module attributes {stable_mosaic.version = 11 : i64} {
  func.func @_mlp_kernel(%arg0: i32, %arg1: memref<256x16xf32, #tpu.memory_space<vmem>>, %arg2: memref<16x128xf32, #tpu.memory_space<vmem>>, %arg3: memref<3x128x128xf32, #tpu.memory_space<vmem>>, %arg4: memref<4x128xf32, #tpu.memory_space<vmem>>, %arg5: memref<256x128xf32, #tpu.memory_space<vmem>>) attributes {dimension_semantics = [#tpu.dimension_semantics<parallel>], iteration_bounds = array<i64: 2>, scalar_prefetch = 0 : i64, scratch_operands = 0 : i64, tpu.core_type = #tpu.core_type<tc>, window_params = [{transform_indices = @transform_0, window_bounds = array<i64: 256, 16>}, {pipeline_mode = #tpu.pipeline_mode<synchronous>, transform_indices = @transform_1, window_bounds = array<i64: 16, 128>}, {pipeline_mode = #tpu.pipeline_mode<synchronous>, transform_indices = @transform_2, window_bounds = array<i64: 3, 128, 128>}, {pipeline_mode = #tpu.pipeline_mode<synchronous>, transform_indices = @transform_3, window_bounds = array<i64: 4, 128>}, {transform_indices = @transform_4, window_bounds = array<i64: 256, 128>}]} {
    %c0 = arith.constant 0 : index
    %c0_0 = arith.constant 0 : index
    %0 = vector.load %arg1[%c0, %c0_0] : memref<256x16xf32, #tpu.memory_space<vmem>>, vector<256x16xf32>
    %c0_1 = arith.constant 0 : index
    %c0_2 = arith.constant 0 : index
    %1 = vector.load %arg2[%c0_1, %c0_2] : memref<16x128xf32, #tpu.memory_space<vmem>>, vector<16x128xf32>
    %cst = arith.constant dense<0.000000e+00> : vector<256x128xf32>
    %2 = tpu.matmul %0, %1, %cst {dimension_numbers = #tpu.dot_dimension_numbers<[1], [0], [0], [1], [0, 0, 1, 1], [], []>} : vector<256x16xf32>, vector<16x128xf32>, vector<256x128xf32> -> vector<256x128xf32>
    %c0_3 = arith.constant 0 : index
    %c0_4 = arith.constant 0 : index
    %3 = vector.load %arg4[%c0_3, %c0_4] : memref<4x128xf32, #tpu.memory_space<vmem>>, vector<1x128xf32>
    %4 = vector.broadcast %3 : vector<1x128xf32> to vector<256x128xf32>
    %5 = arith.addf %2, %4 : vector<256x128xf32>
    %6 = arith.negf %5 : vector<256x128xf32>
    %7 = math.exp %6 : vector<256x128xf32>
    %cst_5 = arith.constant 1.000000e+00 : f32
    %8 = vector.broadcast %cst_5 : f32 to vector<256x128xf32>
    %9 = arith.addf %8, %7 : vector<256x128xf32>
    %10 = arith.divf %8, %9 : vector<256x128xf32>
    %c0_6 = arith.constant 0 : index
    %c0_7 = arith.constant 0 : index
    %c0_8 = arith.constant 0 : index
    %11 = vector.load %arg3[%c0_6, %c0_7, %c0_8] : memref<3x128x128xf32, #tpu.memory_space<vmem>>, vector<1x128x128xf32>
    %12 = vector.shape_cast %11 : vector<1x128x128xf32> to vector<128x128xf32>
    %cst_9 = arith.constant dense<0.000000e+00> : vector<256x128xf32>
    %13 = tpu.matmul %10, %12, %cst_9 {dimension_numbers = #tpu.dot_dimension_numbers<[1], [0], [0], [1], [0, 0, 1, 1], [], []>} : vector<256x128xf32>, vector<128x128xf32>, vector<256x128xf32> -> vector<256x128xf32>
    %c1 = arith.constant 1 : index
    %c0_10 = arith.constant 0 : index
    %14 = vector.load %arg4[%c1, %c0_10] : memref<4x128xf32, #tpu.memory_space<vmem>>, vector<1x128xf32>
    %15 = vector.broadcast %14 : vector<1x128xf32> to vector<256x128xf32>
    %16 = arith.addf %13, %15 : vector<256x128xf32>
    %17 = arith.negf %16 : vector<256x128xf32>
    %18 = math.exp %17 : vector<256x128xf32>
    %cst_11 = arith.constant 1.000000e+00 : f32
    %19 = vector.broadcast %cst_11 : f32 to vector<256x128xf32>
    %20 = arith.addf %19, %18 : vector<256x128xf32>
    %21 = arith.divf %19, %20 : vector<256x128xf32>
    %c1_12 = arith.constant 1 : index
    %c0_13 = arith.constant 0 : index
    %c0_14 = arith.constant 0 : index
    %22 = vector.load %arg3[%c1_12, %c0_13, %c0_14] : memref<3x128x128xf32, #tpu.memory_space<vmem>>, vector<1x128x128xf32>
    %23 = vector.shape_cast %22 : vector<1x128x128xf32> to vector<128x128xf32>
    %cst_15 = arith.constant dense<0.000000e+00> : vector<256x128xf32>
    %24 = tpu.matmul %21, %23, %cst_15 {dimension_numbers = #tpu.dot_dimension_numbers<[1], [0], [0], [1], [0, 0, 1, 1], [], []>} : vector<256x128xf32>, vector<128x128xf32>, vector<256x128xf32> -> vector<256x128xf32>
    %c2 = arith.constant 2 : index
    %c0_16 = arith.constant 0 : index
    %25 = vector.load %arg4[%c2, %c0_16] : memref<4x128xf32, #tpu.memory_space<vmem>>, vector<1x128xf32>
    %26 = vector.broadcast %25 : vector<1x128xf32> to vector<256x128xf32>
    %27 = arith.addf %24, %26 : vector<256x128xf32>
    %28 = arith.negf %27 : vector<256x128xf32>
    %29 = math.exp %28 : vector<256x128xf32>
    %cst_17 = arith.constant 1.000000e+00 : f32
    %30 = vector.broadcast %cst_17 : f32 to vector<256x128xf32>
    %31 = arith.addf %30, %29 : vector<256x128xf32>
    %32 = arith.divf %30, %31 : vector<256x128xf32>
    %c2_18 = arith.constant 2 : index
    %c0_19 = arith.constant 0 : index
    %c0_20 = arith.constant 0 : index
    %33 = vector.load %arg3[%c2_18, %c0_19, %c0_20] : memref<3x128x128xf32, #tpu.memory_space<vmem>>, vector<1x128x128xf32>
    %34 = vector.shape_cast %33 : vector<1x128x128xf32> to vector<128x128xf32>
    %cst_21 = arith.constant dense<0.000000e+00> : vector<256x128xf32>
    %35 = tpu.matmul %32, %34, %cst_21 {dimension_numbers = #tpu.dot_dimension_numbers<[1], [0], [0], [1], [0, 0, 1, 1], [], []>} : vector<256x128xf32>, vector<128x128xf32>, vector<256x128xf32> -> vector<256x128xf32>
    %c3 = arith.constant 3 : index
    %c0_22 = arith.constant 0 : index
    %36 = vector.load %arg4[%c3, %c0_22] : memref<4x128xf32, #tpu.memory_space<vmem>>, vector<1x128xf32>
    %37 = vector.broadcast %36 : vector<1x128xf32> to vector<256x128xf32>
    %38 = arith.addf %35, %37 : vector<256x128xf32>
    %39 = arith.negf %38 : vector<256x128xf32>
    %40 = math.exp %39 : vector<256x128xf32>
    %cst_23 = arith.constant 1.000000e+00 : f32
    %41 = vector.broadcast %cst_23 : f32 to vector<256x128xf32>
    %42 = arith.addf %41, %40 : vector<256x128xf32>
    %43 = arith.divf %41, %42 : vector<256x128xf32>
    %c0_24 = arith.constant 0 : index
    %c0_25 = arith.constant 0 : index
    %44 = vector.load %arg5[%c0_24, %c0_25] : memref<256x128xf32, #tpu.memory_space<vmem>>, vector<256x128xf32>
    tpu.vector_store %arg5[%c0_24, %c0_25], %43 {strides = array<i32>} : memref<256x128xf32, #tpu.memory_space<vmem>>, vector<256x128xf32>,
    return
  }
  func.func @transform_0(%arg0: i32) -> (i32, i32) {
    %c0_i32 = arith.constant 0 : i32
    %c0_i32_0 = arith.constant 0 : i32
    return %arg0, %c0_i32 : i32, i32
  }
  func.func @transform_1(%arg0: i32) -> (i32, i32) {
    %c0_i32 = arith.constant 0 : i32
    %c0_i32_0 = arith.constant 0 : i32
    %c0_i32_1 = arith.constant 0 : i32
    return %c0_i32, %c0_i32_0 : i32, i32
  }
  func.func @transform_2(%arg0: i32) -> (i32, i32, i32) {
    %c0_i32 = arith.constant 0 : i32
    %c0_i32_0 = arith.constant 0 : i32
    %c0_i32_1 = arith.constant 0 : i32
    %c0_i32_2 = arith.constant 0 : i32
    return %c0_i32, %c0_i32_0, %c0_i32_1 : i32, i32, i32
  }
  func.func @transform_3(%arg0: i32) -> (i32, i32) {
    %c0_i32 = arith.constant 0 : i32
    %c0_i32_0 = arith.constant 0 : i32
    %c0_i32_1 = arith.constant 0 : i32
    return %c0_i32, %c0_i32_0 : i32, i32
  }
  func.func @transform_4(%arg0: i32) -> (i32, i32) {
    %c0_i32 = arith.constant 0 : i32
    %c0_i32_0 = arith.constant 0 : i32
    return %arg0, %c0_i32 : i32, i32
  }
}

</mosaic_0001>

<llo_original>
// kernel: tpu_custom_call.1
$region0: #{tpu_custom_call.1}
  #allocation0 [shape = 'u32[]', space=smem, size = 0x4, offset = 0x4, fixed_abs, tag = 'smem constant byte address 0x4 - core index']
  #allocation1 [shape = 'u32[72,128]{1,0:T(1,128)}', space=vmem, size = 0x9000, scoped, tag = 'internal scratch']
  %s0 = inlined_call_operand.vmem [shape: f32[512,16], index: 0, kind: input, shape index: {}]
  %s1 = inlined_call_operand.vmem [shape: f32[16,128], index: 1, kind: input, shape index: {}]
  %s2 = inlined_call_operand.vmem [shape: f32[3,128,128], index: 2, kind: input, shape index: {}]
  %s3 = inlined_call_operand.vmem [shape: f32[4,128], index: 3, kind: input, shape index: {}]
  %s4 = inlined_call_operand.hbm [shape: f32[512,128], index: 4, kind: output, shape index: {}]
  %s5 = sld [smem:[#allocation0]]
  $region49: #{tpu_custom_call.1} parent=0
    _
  %s7 = ssub.s32 1, %s5
  %s8 = scalar_select 0, %s7, %s5
  $region1: #{tpu_custom_call.1} parent=0
    #allocation2 [shape = 'u8[262144]{0}', space=vmem, size = 0x40000, scoped, tag = 'output window, operand 0']
    #allocation3 [shape = 's32[2]{0}', space=sflag, size = 0x8, scoped, tag = 'scoped memory for tpu_custom_call.1']
    %9 = vsyncpa [#allocation3], 0
    %s10 = scalar_lea.sflag [#allocation3], 1
    %11 = vsyncpa %s10, 0
    loop: start=0, step=1, limit=4
    $region2: #{tpu_custom_call.1} parent=1 // loop_pre_header
      _
    $region3: #{tpu_custom_call.1} parent=1 // loop_header
      %s13 = sphi 0, %s17
      %p14 = scmp.ge.s32.totalorder %s13, 4
      %s23 = sphi 0, %s25
      %s26 = sphi 0, %s23
      %s27 = sphi 0, %s26
      %s43 = sphi 0, %s27
      %s47 = sphi 0, %s47
      %s49 = sphi 0, %s47
      %s50 = sphi 0, %s49
      %s64 = sphi 0, %s50
      %s68 = sphi 0, %s68
      %s70 = sphi 0, %s68
      %s71 = sphi 0, %s70
      %s85 = sphi 0, %s71
      %s89 = sphi 0, %s89
      %s91 = sphi 0, %s89
      %s92 = sphi 0, %s91
      %s106 = sphi 0, %s92
      %s112 = sphi 0, %s114
      %s115 = sphi 0, %s112
      %s116 = sphi 0, %s115
      %s132 = sphi 0, %s116
    $region4: #{tpu_custom_call.1} parent=1 // loop_header_branch
      %16 = sbr.rel (%p14) target = $region8
    $region5: #{tpu_custom_call.1} parent=1 // loop_body
      %s18 = ssub.s32 %s13, 1
      %s19 = ssub.s32 %s13, 2
      %s20 = sadd.s32 %s13, 1
      %s21 = ssub.s32 %s13, %s20
      %p22 = scmp.eq.s32.totalorder %s21, 0
      %s24 = sadd.s32 %s23, 1
      %s25 = scalar_select %p22, %s23, %s24
      %p28 = pneg %p22
      %p29 = scmp.eq.s32.totalorder %s13, 1
      %p30 = por %p28, %p29
      %p31 = scmp.ne.s32.totalorder %s23, %s26
      %p32 = scmp.eq.s32.totalorder %s13, 0
      %p33 = por %p31, %p32
      %p34 = scmp.ne.s32.totalorder %s23, %s26
      %p35 = scmp.eq.s32.totalorder %s18, 1
      %p36 = por %p34, %p35
      %p37 = scmp.ne.s32.totalorder %s26, %s27
      %p38 = scmp.eq.s32.totalorder %s18, 0
      %p39 = por %p37, %p38
      %p40 = scmp.ne.s32.totalorder %s26, %s27
      %p41 = scmp.eq.s32.totalorder %s19, 1
      %p42 = por %p40, %p41
      %p44 = scmp.ne.s32.totalorder %s27, %s43
      %p45 = scmp.eq.s32.totalorder %s19, 0
      %p46 = por %p44, %p45
      %s48 = sadd.s32 %s47, 1
      %p51 = scmp.eq.s32.totalorder %s13, 1
      %p52 = scmp.ne.s32.totalorder %s47, %s49
      %p53 = scmp.eq.s32.totalorder %s13, 0
      %p54 = por %p52, %p53
      %p55 = scmp.ne.s32.totalorder %s47, %s49
      %p56 = scmp.eq.s32.totalorder %s18, 1
      %p57 = por %p55, %p56
      %p58 = scmp.ne.s32.totalorder %s49, %s50
      %p59 = scmp.eq.s32.totalorder %s18, 0
      %p60 = por %p58, %p59
      %p61 = scmp.ne.s32.totalorder %s49, %s50
      %p62 = scmp.eq.s32.totalorder %s19, 1
      %p63 = por %p61, %p62
      %p65 = scmp.ne.s32.totalorder %s50, %s64
      %p66 = scmp.eq.s32.totalorder %s19, 0
      %p67 = por %p65, %p66
      %s69 = sadd.s32 %s68, 1
      %p72 = scmp.eq.s32.totalorder %s13, 1
      %p73 = scmp.ne.s32.totalorder %s68, %s70
      %p74 = scmp.eq.s32.totalorder %s13, 0
      %p75 = por %p73, %p74
      %p76 = scmp.ne.s32.totalorder %s68, %s70
      %p77 = scmp.eq.s32.totalorder %s18, 1
      %p78 = por %p76, %p77
      %p79 = scmp.ne.s32.totalorder %s70, %s71
      %p80 = scmp.eq.s32.totalorder %s18, 0
      %p81 = por %p79, %p80
      %p82 = scmp.ne.s32.totalorder %s70, %s71
      %p83 = scmp.eq.s32.totalorder %s19, 1
      %p84 = por %p82, %p83
      %p86 = scmp.ne.s32.totalorder %s71, %s85
      %p87 = scmp.eq.s32.totalorder %s19, 0
      %p88 = por %p86, %p87
      %s90 = sadd.s32 %s89, 1
      %p93 = scmp.eq.s32.totalorder %s13, 1
      %p94 = scmp.ne.s32.totalorder %s89, %s91
      %p95 = scmp.eq.s32.totalorder %s13, 0
      %p96 = por %p94, %p95
      %p97 = scmp.ne.s32.totalorder %s89, %s91
      %p98 = scmp.eq.s32.totalorder %s18, 1
      %p99 = por %p97, %p98
      %p100 = scmp.ne.s32.totalorder %s91, %s92
      %p101 = scmp.eq.s32.totalorder %s18, 0
      %p102 = por %p100, %p101
      %p103 = scmp.ne.s32.totalorder %s91, %s92
      %p104 = scmp.eq.s32.totalorder %s19, 1
      %p105 = por %p103, %p104
      %p107 = scmp.ne.s32.totalorder %s92, %s106
      %p108 = scmp.eq.s32.totalorder %s19, 0
      %p109 = por %p107, %p108
      %s110 = ssub.s32 %s13, %s20
      %p111 = scmp.eq.s32.totalorder %s110, 0
      %s113 = sadd.s32 %s112, 1
      %s114 = scalar_select %p111, %s112, %s113
      %p117 = pneg %p111
      %p118 = scmp.eq.s32.totalorder %s13, 1
      %p119 = por %p117, %p118
      %p120 = scmp.ne.s32.totalorder %s112, %s115
      %p121 = scmp.eq.s32.totalorder %s13, 0
      %p122 = por %p120, %p121
      %p123 = scmp.ne.s32.totalorder %s112, %s115
      %p124 = scmp.eq.s32.totalorder %s18, 1
      %p125 = por %p123, %p124
      %p126 = scmp.ne.s32.totalorder %s115, %s116
      %p127 = scmp.eq.s32.totalorder %s18, 0
      %p128 = por %p126, %p127
      %p129 = scmp.ne.s32.totalorder %s115, %s116
      %p130 = scmp.eq.s32.totalorder %s19, 1
      %p131 = por %p129, %p130
      %p133 = scmp.ne.s32.totalorder %s116, %s132
      %p134 = scmp.eq.s32.totalorder %s19, 0
      %p135 = por %p133, %p134
      %p136 = scmp.le.s32.totalorder 1, %s13
      %p137 = scmp.lt.s32.totalorder %s13, 3
      %p138 = pnand %p136, %p137
      %p139 = pneg %p138
      // Predicated region
      $region9: #{tpu_custom_call.1} parent=5 // pred_check
        _
      $region10: #{tpu_custom_call.1} parent=5 // pred_check_branch
        %141 = sbr.rel (%p138) target = $region12
      $region11: #{tpu_custom_call.1} parent=5 // pred_region
        %s142 = ssub.s32 %s13, 1
        // Predicated region
        $region13: #{tpu_custom_call.1} parent=11 // pred_check
          %p143 = pneg %p60
        $region14: #{tpu_custom_call.1} parent=11 // pred_check_branch
          %145 = sbr.rel (%p143) target = $region16
        $region15: #{tpu_custom_call.1} parent=11 // pred_region
          _
        $region16: #{tpu_custom_call.1} parent=11 // pred_fallthru
          _
        // Predicated region
        $region17: #{tpu_custom_call.1} parent=11 // pred_check
          %p146 = pneg %p81
        $region18: #{tpu_custom_call.1} parent=11 // pred_check_branch
          %148 = sbr.rel (%p146) target = $region20
        $region19: #{tpu_custom_call.1} parent=11 // pred_region
          _
        $region20: #{tpu_custom_call.1} parent=11 // pred_fallthru
          _
        // Predicated region
        $region21: #{tpu_custom_call.1} parent=11 // pred_check
          %p149 = pneg %p102
        $region22: #{tpu_custom_call.1} parent=11 // pred_check_branch
          %151 = sbr.rel (%p149) target = $region24
        $region23: #{tpu_custom_call.1} parent=11 // pred_region
          _
        $region24: #{tpu_custom_call.1} parent=11 // pred_fallthru
          _
      $region12: #{tpu_custom_call.1} parent=5 // pred_fallthru
        _
      %p152 = scmp.lt.s32.totalorder %s13, 2
      // Predicated region
      $region25: #{tpu_custom_call.1} parent=5 // pred_check
        %p153 = pneg %p152
      $region26: #{tpu_custom_call.1} parent=5 // pred_check_branch
        %155 = sbr.rel (%p153) target = $region28
      $region27: #{tpu_custom_call.1} parent=5 // pred_region
        // Predicated region
        $region29: #{tpu_custom_call.1} parent=27 // pred_check
          %p156 = pneg %p33
        $region30: #{tpu_custom_call.1} parent=27 // pred_check_branch
          %158 = sbr.rel (%p156) target = $region32
        $region31: #{tpu_custom_call.1} parent=27 // pred_region
          %s159 = smul.u32 32, %s13
          %p160 = scmp.lt.s32.totalorder %s159, 63
          %s161 = scalar_select %p160, %s159, 63
          %s162 = smul.addr %s161, 8
          %s163 = scalar_lea.vmem %s0, %s162
          %s164 = smul.u32 32, %s13
        $region32: #{tpu_custom_call.1} parent=27 // pred_fallthru
          _
      $region28: #{tpu_custom_call.1} parent=5 // pred_fallthru
        _
      %p165 = scmp.le.s32.totalorder 1, %s13
      %p166 = scmp.lt.s32.totalorder %s13, 3
      %p167 = pnand %p165, %p166
      %p168 = pneg %p167
      // Predicated region
      $region33: #{tpu_custom_call.1} parent=5 // pred_check
        _
      $region34: #{tpu_custom_call.1} parent=5 // pred_check_branch
        %170 = sbr.rel (%p167) target = $region36
      $region35: #{tpu_custom_call.1} parent=5 // pred_region
        %s171 = ssub.s32 %s13, 1
        %s172 = smul.u32 32, %s18
        %p173 = scmp.lt.s32.totalorder %s172, 63
        %s174 = scalar_select %p173, %s172, 63
        %s175 = smul.addr %s174, 8
        %s176 = scalar_lea.vmem %s0, %s175
        %p177 = pneg %p39
        %p178 = pneg %p36
        %p179 = pneg %p60
        %p180 = pneg %p57
        %p181 = pneg %p81
        %p182 = pneg %p78
        %p183 = pneg %p102
        %p184 = pneg %p99
        %p185 = pneg %p128
        %p186 = pneg %p125
        %s187 = sand.u32 %s115, 1
        %s188 = scalar_lea.sflag [#allocation3], %s187
        %s189 = sand.u32 %s115, 1
        %s190 = smul.addr %s189, 256
        %s191 = scalar_lea.vmem [#allocation2], %s190
        %s192 = smul.u32 32, %s18
        %p193 = scmp.lt.s32.totalorder %s192, 63
        %s194 = scalar_select %p193, %s192, 63
        %s195 = smul.addr %s194, 8
        %s196 = scalar_lea.vmem %s0, %s195
        %s197 = smul.u32 32, %s18
        %s198 = smul.u32 32, %s18
        %v199 = vld [vmem:[%s196] sm:$0xff]
        %v200 = vld [vmem:[%s196 + $0x8] sm:$0xff]
        %v201 = vld [vmem:[%s196 + $0x10] sm:$0xff]
        %v202 = vld [vmem:[%s196 + $0x18] sm:$0xff]
        %v203 = vld [vmem:[%s196 + $0x20] sm:$0xff]
        %v204 = vld [vmem:[%s196 + $0x28] sm:$0xff]
        %v205 = vld [vmem:[%s196 + $0x30] sm:$0xff]
        %v206 = vld [vmem:[%s196 + $0x38] sm:$0xff]
        %v207 = vld [vmem:[%s196 + $0x40] sm:$0xff]
        %v208 = vld [vmem:[%s196 + $0x48] sm:$0xff]
        %v209 = vld [vmem:[%s196 + $0x50] sm:$0xff]
        %v210 = vld [vmem:[%s196 + $0x58] sm:$0xff]
        %v211 = vld [vmem:[%s196 + $0x60] sm:$0xff]
        %v212 = vld [vmem:[%s196 + $0x68] sm:$0xff]
        %v213 = vld [vmem:[%s196 + $0x70] sm:$0xff]
        %v214 = vld [vmem:[%s196 + $0x78] sm:$0xff]
        %v215 = vld [vmem:[%s196 + $0x80] sm:$0xff]
        %v216 = vld [vmem:[%s196 + $0x88] sm:$0xff]
        %v217 = vld [vmem:[%s196 + $0x90] sm:$0xff]
        %v218 = vld [vmem:[%s196 + $0x98] sm:$0xff]
        %v219 = vld [vmem:[%s196 + $0xa0] sm:$0xff]
        %v220 = vld [vmem:[%s196 + $0xa8] sm:$0xff]
        %v221 = vld [vmem:[%s196 + $0xb0] sm:$0xff]
        %v222 = vld [vmem:[%s196 + $0xb8] sm:$0xff]
        %v223 = vld [vmem:[%s196 + $0xc0] sm:$0xff]
        %v224 = vld [vmem:[%s196 + $0xc8] sm:$0xff]
        %v225 = vld [vmem:[%s196 + $0xd0] sm:$0xff]
        %v226 = vld [vmem:[%s196 + $0xd8] sm:$0xff]
        %v227 = vld [vmem:[%s196 + $0xe0] sm:$0xff]
        %v228 = vld [vmem:[%s196 + $0xe8] sm:$0xff]
        %v229 = vld [vmem:[%s196 + $0xf0] sm:$0xff]
        %v230 = vld [vmem:[%s196 + $0xf8] sm:$0xff]
        %v231 = vld [vmem:[%s1] sm:$0xff]
        %v232 = vld [vmem:[%s1 + $0x8] sm:$0xff]
        %v233 = vld [vmem:[%s3] sm:$0x1]
        %v234 = vperm.slane %v233, 0
        %vm235 = vcmask 130048
        %v237 = vsel %vm235, %v199, 0
        %v240 = vsel %vm235, %v200, 0
        %v243 = vsel %vm235, %v201, 0
        %v246 = vsel %vm235, %v202, 0
        %v249 = vsel %vm235, %v203, 0
        %v252 = vsel %vm235, %v204, 0
        %v255 = vsel %vm235, %v205, 0
        %v258 = vsel %vm235, %v206, 0
        %v261 = vsel %vm235, %v207, 0
        %v264 = vsel %vm235, %v208, 0
        %v267 = vsel %vm235, %v209, 0
        %v270 = vsel %vm235, %v210, 0
        %v273 = vsel %vm235, %v211, 0
        %v276 = vsel %vm235, %v212, 0
        %v279 = vsel %vm235, %v213, 0
        %v282 = vsel %vm235, %v214, 0
        %v285 = vsel %vm235, %v215, 0
        %v288 = vsel %vm235, %v216, 0
        %v291 = vsel %vm235, %v217, 0
        %v294 = vsel %vm235, %v218, 0
        %v297 = vsel %vm235, %v219, 0
        %v300 = vsel %vm235, %v220, 0
        %v303 = vsel %vm235, %v221, 0
        %v306 = vsel %vm235, %v222, 0
        %v309 = vsel %vm235, %v223, 0
        %v312 = vsel %vm235, %v224, 0
        %v315 = vsel %vm235, %v225, 0
        %v318 = vsel %vm235, %v226, 0
        %v321 = vsel %vm235, %v227, 0
        %v324 = vsel %vm235, %v228, 0
        %v327 = vsel %vm235, %v229, 0
        %v330 = vsel %vm235, %v230, 0
        %332 = vmatpush.msra.mxu0 0.0
        %333 = vmatpush.msra.mxu0 0.0
        %334 = vmatpush.msra.mxu0 0.0
        %335 = vmatpush.msra.mxu0 0.0
        %336 = vmatpush.msra.mxu0 0.0
        %337 = vmatpush.msra.mxu0 0.0
        %338 = vmatpush.msra.mxu0 0.0
        %339 = vmatpush.msra.mxu0 0.0
        %340 = vmatpush.msra.mxu0 0.0
        %341 = vmatpush.msra.mxu0 0.0
        %342 = vmatpush.msra.mxu0 0.0
        %343 = vmatpush.msra.mxu0 0.0
        %344 = vmatpush.msra.mxu0 0.0
        %345 = vmatpush.msra.mxu0 0.0
        %346 = vmatpush.msra.mxu0 %v232
        %347 = vmatpush.msra.mxu0 %v231
        %348 = vmatmul.f32.gmra.mxu0 %v237
        %v349 = vpop.f32.mrf.mxu0
        %v350 = vadd.f32 %v234, %v349
        %351 = vmatmul.f32.gmra.mxu0 %v240
        %v352 = vpop.f32.mrf.mxu0
        %v353 = vadd.f32 %v234, %v352
        %354 = vmatmul.f32.gmra.mxu0 %v243
        %v355 = vpop.f32.mrf.mxu0
        %v356 = vadd.f32 %v234, %v355
        %357 = vmatmul.f32.gmra.mxu0 %v246
        %v358 = vpop.f32.mrf.mxu0
        %v359 = vadd.f32 %v234, %v358
        %360 = vmatmul.f32.gmra.mxu0 %v249
        %v361 = vpop.f32.mrf.mxu0
        %v362 = vadd.f32 %v234, %v361
        %363 = vmatmul.f32.gmra.mxu0 %v252
        %v364 = vpop.f32.mrf.mxu0
        %v365 = vadd.f32 %v234, %v364
        %366 = vmatmul.f32.gmra.mxu0 %v255
        %v367 = vpop.f32.mrf.mxu0
        %v368 = vadd.f32 %v234, %v367
        %369 = vmatmul.f32.gmra.mxu0 %v258
        %v370 = vpop.f32.mrf.mxu0
        %v371 = vadd.f32 %v234, %v370
        %372 = vmatmul.f32.gmra.mxu0 %v261
        %v373 = vpop.f32.mrf.mxu0
        %v374 = vadd.f32 %v234, %v373
        %375 = vmatmul.f32.gmra.mxu0 %v264
        %v376 = vpop.f32.mrf.mxu0
        %v377 = vadd.f32 %v234, %v376
        %378 = vmatmul.f32.gmra.mxu0 %v267
        %v379 = vpop.f32.mrf.mxu0
        %v380 = vadd.f32 %v234, %v379
        %381 = vmatmul.f32.gmra.mxu0 %v270
        %v382 = vpop.f32.mrf.mxu0
        %v383 = vadd.f32 %v234, %v382
        %384 = vmatmul.f32.gmra.mxu0 %v273
        %v385 = vpop.f32.mrf.mxu0
        %v386 = vadd.f32 %v234, %v385
        %387 = vmatmul.f32.gmra.mxu0 %v276
        %v388 = vpop.f32.mrf.mxu0
        %v389 = vadd.f32 %v234, %v388
        %390 = vmatmul.f32.gmra.mxu0 %v279
        %v391 = vpop.f32.mrf.mxu0
        %v392 = vadd.f32 %v234, %v391
        %393 = vmatmul.f32.gmra.mxu0 %v282
        %v394 = vpop.f32.mrf.mxu0
        %v395 = vadd.f32 %v234, %v394
        %396 = vmatmul.f32.gmra.mxu0 %v285
        %v397 = vpop.f32.mrf.mxu0
        %v398 = vadd.f32 %v234, %v397
        %399 = vmatmul.f32.gmra.mxu0 %v288
        %v400 = vpop.f32.mrf.mxu0
        %v401 = vadd.f32 %v234, %v400
        %402 = vmatmul.f32.gmra.mxu0 %v291
        %v403 = vpop.f32.mrf.mxu0
        %v404 = vadd.f32 %v234, %v403
        %405 = vmatmul.f32.gmra.mxu0 %v294
        %v406 = vpop.f32.mrf.mxu0
        %v407 = vadd.f32 %v234, %v406
        %408 = vmatmul.f32.gmra.mxu0 %v297
        %v409 = vpop.f32.mrf.mxu0
        %v410 = vadd.f32 %v234, %v409
        %411 = vmatmul.f32.gmra.mxu0 %v300
        %v412 = vpop.f32.mrf.mxu0
        %v413 = vadd.f32 %v234, %v412
        %414 = vmatmul.f32.gmra.mxu0 %v303
        %v415 = vpop.f32.mrf.mxu0
        %v416 = vadd.f32 %v234, %v415
        %417 = vmatmul.f32.gmra.mxu0 %v306
        %v418 = vpop.f32.mrf.mxu0
        %v419 = vadd.f32 %v234, %v418
        %420 = vmatmul.f32.gmra.mxu0 %v309
        %v421 = vpop.f32.mrf.mxu0
        %v422 = vadd.f32 %v234, %v421
        %423 = vmatmul.f32.gmra.mxu0 %v312
        %v424 = vpop.f32.mrf.mxu0
        %v425 = vadd.f32 %v234, %v424
        %426 = vmatmul.f32.gmra.mxu0 %v315
        %v427 = vpop.f32.mrf.mxu0
        %v428 = vadd.f32 %v234, %v427
        %429 = vmatmul.f32.gmra.mxu0 %v318
        %v430 = vpop.f32.mrf.mxu0
        %v431 = vadd.f32 %v234, %v430
        %432 = vmatmul.f32.gmra.mxu0 %v321
        %v433 = vpop.f32.mrf.mxu0
        %v434 = vadd.f32 %v234, %v433
        %435 = vmatmul.f32.gmra.mxu0 %v324
        %v436 = vpop.f32.mrf.mxu0
        %v437 = vadd.f32 %v234, %v436
        %438 = vmatmul.f32.gmra.mxu0 %v327
        %v439 = vpop.f32.mrf.mxu0
        %v440 = vadd.f32 %v234, %v439
        %441 = vmatmul.f32.gmra.mxu0 %v330
        %v442 = vpop.f32.mrf.mxu0
        %v443 = vadd.f32 %v234, %v442
        %444 = vdwg.mxu0
        %v445 = vxor.u32 %v350, 2147483648
        %v446 = vxor.u32 %v353, 2147483648
        %v447 = vxor.u32 %v356, 2147483648
        %v448 = vxor.u32 %v359, 2147483648
        %v449 = vxor.u32 %v362, 2147483648
        %v450 = vxor.u32 %v365, 2147483648
        %v451 = vxor.u32 %v368, 2147483648
        %v452 = vxor.u32 %v371, 2147483648
        %v453 = vxor.u32 %v374, 2147483648
        %v454 = vxor.u32 %v377, 2147483648
        %v455 = vxor.u32 %v380, 2147483648
        %v456 = vxor.u32 %v383, 2147483648
        %v457 = vxor.u32 %v386, 2147483648
        %v458 = vxor.u32 %v389, 2147483648
        %v459 = vxor.u32 %v392, 2147483648
        %v460 = vxor.u32 %v395, 2147483648
        %v461 = vxor.u32 %v398, 2147483648
        %v462 = vxor.u32 %v401, 2147483648
        %v463 = vxor.u32 %v404, 2147483648
        %v464 = vxor.u32 %v407, 2147483648
        %v465 = vxor.u32 %v410, 2147483648
        %v466 = vxor.u32 %v413, 2147483648
        %v467 = vxor.u32 %v416, 2147483648
        %v468 = vxor.u32 %v419, 2147483648
        %v469 = vxor.u32 %v422, 2147483648
        %v470 = vxor.u32 %v425, 2147483648
        %v471 = vxor.u32 %v428, 2147483648
        %v472 = vxor.u32 %v431, 2147483648
        %v473 = vxor.u32 %v434, 2147483648
        %v474 = vxor.u32 %v437, 2147483648
        %v475 = vxor.u32 %v440, 2147483648
        %v476 = vxor.u32 %v443, 2147483648
        %v477 = vmul.f32 %v445, 1.442695
        %v478 = vpow.pop %v477
        %v479 = vmul.f32 %v446, 1.442695
        %v480 = vpow.pop %v479
        %v481 = vmul.f32 %v447, 1.442695
        %v482 = vpow.pop %v481
        %v483 = vmul.f32 %v448, 1.442695
        %v484 = vpow.pop %v483
        %v485 = vmul.f32 %v449, 1.442695
        %v486 = vpow.pop %v485
        %v487 = vmul.f32 %v450, 1.442695
        %v488 = vpow.pop %v487
        %v489 = vmul.f32 %v451, 1.442695
        %v490 = vpow.pop %v489
        %v491 = vmul.f32 %v452, 1.442695
        %v492 = vpow.pop %v491
        %v493 = vmul.f32 %v453, 1.442695
        %v494 = vpow.pop %v493
        %v495 = vmul.f32 %v454, 1.442695
        %v496 = vpow.pop %v495
        %v497 = vmul.f32 %v455, 1.442695
        %v498 = vpow.pop %v497
        %v499 = vmul.f32 %v456, 1.442695
        %v500 = vpow.pop %v499
        %v501 = vmul.f32 %v457, 1.442695
        %v502 = vpow.pop %v501
        %v503 = vmul.f32 %v458, 1.442695
        %v504 = vpow.pop %v503
        %v505 = vmul.f32 %v459, 1.442695
        %v506 = vpow.pop %v505
        %v507 = vmul.f32 %v460, 1.442695
        %v508 = vpow.pop %v507
        %v509 = vmul.f32 %v461, 1.442695
        %v510 = vpow.pop %v509
        %v511 = vmul.f32 %v462, 1.442695
        %v512 = vpow.pop %v511
        %v513 = vmul.f32 %v463, 1.442695
        %v514 = vpow.pop %v513
        %v515 = vmul.f32 %v464, 1.442695
        %v516 = vpow.pop %v515
        %v517 = vmul.f32 %v465, 1.442695
        %v518 = vpow.pop %v517
        %v519 = vmul.f32 %v466, 1.442695
        %v520 = vpow.pop %v519
        %v521 = vmul.f32 %v467, 1.442695
        %v522 = vpow.pop %v521
        %v523 = vmul.f32 %v468, 1.442695
        %v524 = vpow.pop %v523
        %v525 = vmul.f32 %v469, 1.442695
        %v526 = vpow.pop %v525
        %v527 = vmul.f32 %v470, 1.442695
        %v528 = vpow.pop %v527
        %v529 = vmul.f32 %v471, 1.442695
        %v530 = vpow.pop %v529
        %v531 = vmul.f32 %v472, 1.442695
        %v532 = vpow.pop %v531
        %v533 = vmul.f32 %v473, 1.442695
        %v534 = vpow.pop %v533
        %v535 = vmul.f32 %v474, 1.442695
        %v536 = vpow.pop %v535
        %v537 = vmul.f32 %v475, 1.442695
        %v538 = vpow.pop %v537
        %v539 = vmul.f32 %v476, 1.442695
        %v540 = vpow.pop %v539
        %v541 = vadd.f32 %v478, 1.0
        %v542 = vadd.f32 %v480, 1.0
        %v543 = vadd.f32 %v482, 1.0
        %v544 = vadd.f32 %v484, 1.0
        %v545 = vadd.f32 %v486, 1.0
        %v546 = vadd.f32 %v488, 1.0
        %v547 = vadd.f32 %v490, 1.0
        %v548 = vadd.f32 %v492, 1.0
        %v549 = vadd.f32 %v494, 1.0
        %v550 = vadd.f32 %v496, 1.0
        %v551 = vadd.f32 %v498, 1.0
        %v552 = vadd.f32 %v500, 1.0
        %v553 = vadd.f32 %v502, 1.0
        %v554 = vadd.f32 %v504, 1.0
        %v555 = vadd.f32 %v506, 1.0
        %v556 = vadd.f32 %v508, 1.0
        %v557 = vadd.f32 %v510, 1.0
        %v558 = vadd.f32 %v512, 1.0
        %v559 = vadd.f32 %v514, 1.0
        %v560 = vadd.f32 %v516, 1.0
        %v561 = vadd.f32 %v518, 1.0
        %v562 = vadd.f32 %v520, 1.0
        %v563 = vadd.f32 %v522, 1.0
        %v564 = vadd.f32 %v524, 1.0
        %v565 = vadd.f32 %v526, 1.0
        %v566 = vadd.f32 %v528, 1.0
        %v567 = vadd.f32 %v530, 1.0
        %v568 = vadd.f32 %v532, 1.0
        %v569 = vadd.f32 %v534, 1.0
        %v570 = vadd.f32 %v536, 1.0
        %v571 = vadd.f32 %v538, 1.0
        %v572 = vadd.f32 %v540, 1.0
        %v573 = vrcp.pop %v541
        %v574 = vmul.f32 %v541, %v573
        %v575 = vsub.f32 1.0, %v574
        %v576 = vmul.f32 %v573, %v575
        %v577 = vadd.f32 %v573, %v576
        %vm578 = vweird.f32 %v541
        %vm579 = vweird.f32 %v573
        %vm580 = vmor %vm578, %vm579
        %v581 = vsel %vm580, %v573, %v577
        %v582 = vand.u32 2147483647, %v541
        %vm583 = vcmp.eq.f32.partialorder %v582, 8.507059e+37
        %v584 = vand.u32 %v541, 2147483648
        %v585 = vor.u32 1.1754944e-38, %v584
        %v586 = vsel %vm583, %v585, %v581
        %v587 = vmul.f32 1.0, %v586
        %v588 = vrcp.pop %v542
        %v589 = vmul.f32 %v542, %v588
        %v590 = vsub.f32 1.0, %v589
        %v591 = vmul.f32 %v588, %v590
        %v592 = vadd.f32 %v588, %v591
        %vm593 = vweird.f32 %v542
        %vm594 = vweird.f32 %v588
        %vm595 = vmor %vm593, %vm594
        %v596 = vsel %vm595, %v588, %v592
        %v597 = vand.u32 2147483647, %v542
        %vm598 = vcmp.eq.f32.partialorder %v597, 8.507059e+37
        %v599 = vand.u32 %v542, 2147483648
        %v600 = vor.u32 1.1754944e-38, %v599
        %v601 = vsel %vm598, %v600, %v596
        %v602 = vmul.f32 1.0, %v601
        %v603 = vrcp.pop %v543
        %v604 = vmul.f32 %v543, %v603
        %v605 = vsub.f32 1.0, %v604
        %v606 = vmul.f32 %v603, %v605
        %v607 = vadd.f32 %v603, %v606
        %vm608 = vweird.f32 %v543
        %vm609 = vweird.f32 %v603
        %vm610 = vmor %vm608, %vm609
        %v611 = vsel %vm610, %v603, %v607
        %v612 = vand.u32 2147483647, %v543
        %vm613 = vcmp.eq.f32.partialorder %v612, 8.507059e+37
        %v614 = vand.u32 %v543, 2147483648
        %v615 = vor.u32 1.1754944e-38, %v614
        %v616 = vsel %vm613, %v615, %v611
        %v617 = vmul.f32 1.0, %v616
        %v618 = vrcp.pop %v544
        %v619 = vmul.f32 %v544, %v618
        %v620 = vsub.f32 1.0, %v619
        %v621 = vmul.f32 %v618, %v620
        %v622 = vadd.f32 %v618, %v621
        %vm623 = vweird.f32 %v544
        %vm624 = vweird.f32 %v618
        %vm625 = vmor %vm623, %vm624
        %v626 = vsel %vm625, %v618, %v622
        %v627 = vand.u32 2147483647, %v544
        %vm628 = vcmp.eq.f32.partialorder %v627, 8.507059e+37
        %v629 = vand.u32 %v544, 2147483648
        %v630 = vor.u32 1.1754944e-38, %v629
        %v631 = vsel %vm628, %v630, %v626
        %v632 = vmul.f32 1.0, %v631
        %v633 = vrcp.pop %v545
        %v634 = vmul.f32 %v545, %v633
        %v635 = vsub.f32 1.0, %v634
        %v636 = vmul.f32 %v633, %v635
        %v637 = vadd.f32 %v633, %v636
        %vm638 = vweird.f32 %v545
        %vm639 = vweird.f32 %v633
        %vm640 = vmor %vm638, %vm639
        %v641 = vsel %vm640, %v633, %v637
        %v642 = vand.u32 2147483647, %v545
        %vm643 = vcmp.eq.f32.partialorder %v642, 8.507059e+37
        %v644 = vand.u32 %v545, 2147483648
        %v645 = vor.u32 1.1754944e-38, %v644
        %v646 = vsel %vm643, %v645, %v641
        %v647 = vmul.f32 1.0, %v646
        %v648 = vrcp.pop %v546
        %v649 = vmul.f32 %v546, %v648
        %v650 = vsub.f32 1.0, %v649
        %v651 = vmul.f32 %v648, %v650
        %v652 = vadd.f32 %v648, %v651
        %vm653 = vweird.f32 %v546
        %vm654 = vweird.f32 %v648
        %vm655 = vmor %vm653, %vm654
        %v656 = vsel %vm655, %v648, %v652
        %v657 = vand.u32 2147483647, %v546
        %vm658 = vcmp.eq.f32.partialorder %v657, 8.507059e+37
        %v659 = vand.u32 %v546, 2147483648
        %v660 = vor.u32 1.1754944e-38, %v659
        %v661 = vsel %vm658, %v660, %v656
        %v662 = vmul.f32 1.0, %v661
        %v663 = vrcp.pop %v547
        %v664 = vmul.f32 %v547, %v663
        %v665 = vsub.f32 1.0, %v664
        %v666 = vmul.f32 %v663, %v665
        %v667 = vadd.f32 %v663, %v666
        %vm668 = vweird.f32 %v547
        %vm669 = vweird.f32 %v663
        %vm670 = vmor %vm668, %vm669
        %v671 = vsel %vm670, %v663, %v667
        %v672 = vand.u32 2147483647, %v547
        %vm673 = vcmp.eq.f32.partialorder %v672, 8.507059e+37
        %v674 = vand.u32 %v547, 2147483648
        %v675 = vor.u32 1.1754944e-38, %v674
        %v676 = vsel %vm673, %v675, %v671
        %v677 = vmul.f32 1.0, %v676
        %v678 = vrcp.pop %v548
        %v679 = vmul.f32 %v548, %v678
        %v680 = vsub.f32 1.0, %v679
        %v681 = vmul.f32 %v678, %v680
        %v682 = vadd.f32 %v678, %v681
        %vm683 = vweird.f32 %v548
        %vm684 = vweird.f32 %v678
        %vm685 = vmor %vm683, %vm684
        %v686 = vsel %vm685, %v678, %v682
        %v687 = vand.u32 2147483647, %v548
        %vm688 = vcmp.eq.f32.partialorder %v687, 8.507059e+37
        %v689 = vand.u32 %v548, 2147483648
        %v690 = vor.u32 1.1754944e-38, %v689
        %v691 = vsel %vm688, %v690, %v686
        %v692 = vmul.f32 1.0, %v691
        %v693 = vrcp.pop %v549
        %v694 = vmul.f32 %v549, %v693
        %v695 = vsub.f32 1.0, %v694
        %v696 = vmul.f32 %v693, %v695
        %v697 = vadd.f32 %v693, %v696
        %vm698 = vweird.f32 %v549
        %vm699 = vweird.f32 %v693
        %vm700 = vmor %vm698, %vm699
        %v701 = vsel %vm700, %v693, %v697
        %v702 = vand.u32 2147483647, %v549
        %vm703 = vcmp.eq.f32.partialorder %v702, 8.507059e+37
        %v704 = vand.u32 %v549, 2147483648
        %v705 = vor.u32 1.1754944e-38, %v704
        %v706 = vsel %vm703, %v705, %v701
        %v707 = vmul.f32 1.0, %v706
        %v708 = vrcp.pop %v550
        %v709 = vmul.f32 %v550, %v708
        %v710 = vsub.f32 1.0, %v709
        %v711 = vmul.f32 %v708, %v710
        %v712 = vadd.f32 %v708, %v711
        %vm713 = vweird.f32 %v550
        %vm714 = vweird.f32 %v708
        %vm715 = vmor %vm713, %vm714
        %v716 = vsel %vm715, %v708, %v712
        %v717 = vand.u32 2147483647, %v550
        %vm718 = vcmp.eq.f32.partialorder %v717, 8.507059e+37
        %v719 = vand.u32 %v550, 2147483648
        %v720 = vor.u32 1.1754944e-38, %v719
        %v721 = vsel %vm718, %v720, %v716
        %v722 = vmul.f32 1.0, %v721
        %v723 = vrcp.pop %v551
        %v724 = vmul.f32 %v551, %v723
        %v725 = vsub.f32 1.0, %v724
        %v726 = vmul.f32 %v723, %v725
        %v727 = vadd.f32 %v723, %v726
        %vm728 = vweird.f32 %v551
        %vm729 = vweird.f32 %v723
        %vm730 = vmor %vm728, %vm729
        %v731 = vsel %vm730, %v723, %v727
        %v732 = vand.u32 2147483647, %v551
        %vm733 = vcmp.eq.f32.partialorder %v732, 8.507059e+37
        %v734 = vand.u32 %v551, 2147483648
        %v735 = vor.u32 1.1754944e-38, %v734
        %v736 = vsel %vm733, %v735, %v731
        %v737 = vmul.f32 1.0, %v736
        %v738 = vrcp.pop %v552
        %v739 = vmul.f32 %v552, %v738
        %v740 = vsub.f32 1.0, %v739
        %v741 = vmul.f32 %v738, %v740
        %v742 = vadd.f32 %v738, %v741
        %vm743 = vweird.f32 %v552
        %vm744 = vweird.f32 %v738
        %vm745 = vmor %vm743, %vm744
        %v746 = vsel %vm745, %v738, %v742
        %v747 = vand.u32 2147483647, %v552
        %vm748 = vcmp.eq.f32.partialorder %v747, 8.507059e+37
        %v749 = vand.u32 %v552, 2147483648
        %v750 = vor.u32 1.1754944e-38, %v749
        %v751 = vsel %vm748, %v750, %v746
        %v752 = vmul.f32 1.0, %v751
        %v753 = vrcp.pop %v553
        %v754 = vmul.f32 %v553, %v753
        %v755 = vsub.f32 1.0, %v754
        %v756 = vmul.f32 %v753, %v755
        %v757 = vadd.f32 %v753, %v756
        %vm758 = vweird.f32 %v553
        %vm759 = vweird.f32 %v753
        %vm760 = vmor %vm758, %vm759
        %v761 = vsel %vm760, %v753, %v757
        %v762 = vand.u32 2147483647, %v553
        %vm763 = vcmp.eq.f32.partialorder %v762, 8.507059e+37
        %v764 = vand.u32 %v553, 2147483648
        %v765 = vor.u32 1.1754944e-38, %v764
        %v766 = vsel %vm763, %v765, %v761
        %v767 = vmul.f32 1.0, %v766
        %v768 = vrcp.pop %v554
        %v769 = vmul.f32 %v554, %v768
        %v770 = vsub.f32 1.0, %v769
        %v771 = vmul.f32 %v768, %v770
        %v772 = vadd.f32 %v768, %v771
        %vm773 = vweird.f32 %v554
        %vm774 = vweird.f32 %v768
        %vm775 = vmor %vm773, %vm774
        %v776 = vsel %vm775, %v768, %v772
        %v777 = vand.u32 2147483647, %v554
        %vm778 = vcmp.eq.f32.partialorder %v777, 8.507059e+37
        %v779 = vand.u32 %v554, 2147483648
        %v780 = vor.u32 1.1754944e-38, %v779
        %v781 = vsel %vm778, %v780, %v776
        %v782 = vmul.f32 1.0, %v781
        %v783 = vrcp.pop %v555
        %v784 = vmul.f32 %v555, %v783
        %v785 = vsub.f32 1.0, %v784
        %v786 = vmul.f32 %v783, %v785
        %v787 = vadd.f32 %v783, %v786
        %vm788 = vweird.f32 %v555
        %vm789 = vweird.f32 %v783
        %vm790 = vmor %vm788, %vm789
        %v791 = vsel %vm790, %v783, %v787
        %v792 = vand.u32 2147483647, %v555
        %vm793 = vcmp.eq.f32.partialorder %v792, 8.507059e+37
        %v794 = vand.u32 %v555, 2147483648
        %v795 = vor.u32 1.1754944e-38, %v794
        %v796 = vsel %vm793, %v795, %v791
        %v797 = vmul.f32 1.0, %v796
        %v798 = vrcp.pop %v556
        %v799 = vmul.f32 %v556, %v798
        %v800 = vsub.f32 1.0, %v799
        %v801 = vmul.f32 %v798, %v800
        %v802 = vadd.f32 %v798, %v801
        %vm803 = vweird.f32 %v556
        %vm804 = vweird.f32 %v798
        %vm805 = vmor %vm803, %vm804
        %v806 = vsel %vm805, %v798, %v802
        %v807 = vand.u32 2147483647, %v556
        %vm808 = vcmp.eq.f32.partialorder %v807, 8.507059e+37
        %v809 = vand.u32 %v556, 2147483648
        %v810 = vor.u32 1.1754944e-38, %v809
        %v811 = vsel %vm808, %v810, %v806
        %v812 = vmul.f32 1.0, %v811
        %v813 = vrcp.pop %v557
        %v814 = vmul.f32 %v557, %v813
        %v815 = vsub.f32 1.0, %v814
        %v816 = vmul.f32 %v813, %v815
        %v817 = vadd.f32 %v813, %v816
        %vm818 = vweird.f32 %v557
        %vm819 = vweird.f32 %v813
        %vm820 = vmor %vm818, %vm819
        %v821 = vsel %vm820, %v813, %v817
        %v822 = vand.u32 2147483647, %v557
        %vm823 = vcmp.eq.f32.partialorder %v822, 8.507059e+37
        %v824 = vand.u32 %v557, 2147483648
        %v825 = vor.u32 1.1754944e-38, %v824
        %v826 = vsel %vm823, %v825, %v821
        %v827 = vmul.f32 1.0, %v826
        %v828 = vrcp.pop %v558
        %v829 = vmul.f32 %v558, %v828
        %v830 = vsub.f32 1.0, %v829
        %v831 = vmul.f32 %v828, %v830
        %v832 = vadd.f32 %v828, %v831
        %vm833 = vweird.f32 %v558
        %vm834 = vweird.f32 %v828
        %vm835 = vmor %vm833, %vm834
        %v836 = vsel %vm835, %v828, %v832
        %v837 = vand.u32 2147483647, %v558
        %vm838 = vcmp.eq.f32.partialorder %v837, 8.507059e+37
        %v839 = vand.u32 %v558, 2147483648
        %v840 = vor.u32 1.1754944e-38, %v839
        %v841 = vsel %vm838, %v840, %v836
        %v842 = vmul.f32 1.0, %v841
        %v843 = vrcp.pop %v559
        %v844 = vmul.f32 %v559, %v843
        %v845 = vsub.f32 1.0, %v844
        %v846 = vmul.f32 %v843, %v845
        %v847 = vadd.f32 %v843, %v846
        %vm848 = vweird.f32 %v559
        %vm849 = vweird.f32 %v843
        %vm850 = vmor %vm848, %vm849
        %v851 = vsel %vm850, %v843, %v847
        %v852 = vand.u32 2147483647, %v559
        %vm853 = vcmp.eq.f32.partialorder %v852, 8.507059e+37
        %v854 = vand.u32 %v559, 2147483648
        %v855 = vor.u32 1.1754944e-38, %v854
        %v856 = vsel %vm853, %v855, %v851
        %v857 = vmul.f32 1.0, %v856
        %v858 = vrcp.pop %v560
        %v859 = vmul.f32 %v560, %v858
        %v860 = vsub.f32 1.0, %v859
        %v861 = vmul.f32 %v858, %v860
        %v862 = vadd.f32 %v858, %v861
        %vm863 = vweird.f32 %v560
        %vm864 = vweird.f32 %v858
        %vm865 = vmor %vm863, %vm864
        %v866 = vsel %vm865, %v858, %v862
        %v867 = vand.u32 2147483647, %v560
        %vm868 = vcmp.eq.f32.partialorder %v867, 8.507059e+37
        %v869 = vand.u32 %v560, 2147483648
        %v870 = vor.u32 1.1754944e-38, %v869
        %v871 = vsel %vm868, %v870, %v866
        %v872 = vmul.f32 1.0, %v871
        %v873 = vrcp.pop %v561
        %v874 = vmul.f32 %v561, %v873
        %v875 = vsub.f32 1.0, %v874
        %v876 = vmul.f32 %v873, %v875
        %v877 = vadd.f32 %v873, %v876
        %vm878 = vweird.f32 %v561
        %vm879 = vweird.f32 %v873
        %vm880 = vmor %vm878, %vm879
        %v881 = vsel %vm880, %v873, %v877
        %v882 = vand.u32 2147483647, %v561
        %vm883 = vcmp.eq.f32.partialorder %v882, 8.507059e+37
        %v884 = vand.u32 %v561, 2147483648
        %v885 = vor.u32 1.1754944e-38, %v884
        %v886 = vsel %vm883, %v885, %v881
        %v887 = vmul.f32 1.0, %v886
        %v888 = vrcp.pop %v562
        %v889 = vmul.f32 %v562, %v888
        %v890 = vsub.f32 1.0, %v889
        %v891 = vmul.f32 %v888, %v890
        %v892 = vadd.f32 %v888, %v891
        %vm893 = vweird.f32 %v562
        %vm894 = vweird.f32 %v888
        %vm895 = vmor %vm893, %vm894
        %v896 = vsel %vm895, %v888, %v892
        %v897 = vand.u32 2147483647, %v562
        %vm898 = vcmp.eq.f32.partialorder %v897, 8.507059e+37
        %v899 = vand.u32 %v562, 2147483648
        %v900 = vor.u32 1.1754944e-38, %v899
        %v901 = vsel %vm898, %v900, %v896
        %v902 = vmul.f32 1.0, %v901
        %v903 = vrcp.pop %v563
        %v904 = vmul.f32 %v563, %v903
        %v905 = vsub.f32 1.0, %v904
        %v906 = vmul.f32 %v903, %v905
        %v907 = vadd.f32 %v903, %v906
        %vm908 = vweird.f32 %v563
        %vm909 = vweird.f32 %v903
        %vm910 = vmor %vm908, %vm909
        %v911 = vsel %vm910, %v903, %v907
        %v912 = vand.u32 2147483647, %v563
        %vm913 = vcmp.eq.f32.partialorder %v912, 8.507059e+37
        %v914 = vand.u32 %v563, 2147483648
        %v915 = vor.u32 1.1754944e-38, %v914
        %v916 = vsel %vm913, %v915, %v911
        %v917 = vmul.f32 1.0, %v916
        %v918 = vrcp.pop %v564
        %v919 = vmul.f32 %v564, %v918
        %v920 = vsub.f32 1.0, %v919
        %v921 = vmul.f32 %v918, %v920
        %v922 = vadd.f32 %v918, %v921
        %vm923 = vweird.f32 %v564
        %vm924 = vweird.f32 %v918
        %vm925 = vmor %vm923, %vm924
        %v926 = vsel %vm925, %v918, %v922
        %v927 = vand.u32 2147483647, %v564
        %vm928 = vcmp.eq.f32.partialorder %v927, 8.507059e+37
        %v929 = vand.u32 %v564, 2147483648
        %v930 = vor.u32 1.1754944e-38, %v929
        %v931 = vsel %vm928, %v930, %v926
        %v932 = vmul.f32 1.0, %v931
        %v933 = vrcp.pop %v565
        %v934 = vmul.f32 %v565, %v933
        %v935 = vsub.f32 1.0, %v934
        %v936 = vmul.f32 %v933, %v935
        %v937 = vadd.f32 %v933, %v936
        %vm938 = vweird.f32 %v565
        %vm939 = vweird.f32 %v933
        %vm940 = vmor %vm938, %vm939
        %v941 = vsel %vm940, %v933, %v937
        %v942 = vand.u32 2147483647, %v565
        %vm943 = vcmp.eq.f32.partialorder %v942, 8.507059e+37
        %v944 = vand.u32 %v565, 2147483648
        %v945 = vor.u32 1.1754944e-38, %v944
        %v946 = vsel %vm943, %v945, %v941
        %v947 = vmul.f32 1.0, %v946
        %v948 = vrcp.pop %v566
        %v949 = vmul.f32 %v566, %v948
        %v950 = vsub.f32 1.0, %v949
        %v951 = vmul.f32 %v948, %v950
        %v952 = vadd.f32 %v948, %v951
        %vm953 = vweird.f32 %v566
        %vm954 = vweird.f32 %v948
        %vm955 = vmor %vm953, %vm954
        %v956 = vsel %vm955, %v948, %v952
        %v957 = vand.u32 2147483647, %v566
        %vm958 = vcmp.eq.f32.partialorder %v957, 8.507059e+37
        %v959 = vand.u32 %v566, 2147483648
        %v960 = vor.u32 1.1754944e-38, %v959
        %v961 = vsel %vm958, %v960, %v956
        %v962 = vmul.f32 1.0, %v961
        %v963 = vrcp.pop %v567
        %v964 = vmul.f32 %v567, %v963
        %v965 = vsub.f32 1.0, %v964
        %v966 = vmul.f32 %v963, %v965
        %v967 = vadd.f32 %v963, %v966
        %vm968 = vweird.f32 %v567
        %vm969 = vweird.f32 %v963
        %vm970 = vmor %vm968, %vm969
        %v971 = vsel %vm970, %v963, %v967
        %v972 = vand.u32 2147483647, %v567
        %vm973 = vcmp.eq.f32.partialorder %v972, 8.507059e+37
        %v974 = vand.u32 %v567, 2147483648
        %v975 = vor.u32 1.1754944e-38, %v974
        %v976 = vsel %vm973, %v975, %v971
        %v977 = vmul.f32 1.0, %v976
        %v978 = vrcp.pop %v568
        %v979 = vmul.f32 %v568, %v978
        %v980 = vsub.f32 1.0, %v979
        %v981 = vmul.f32 %v978, %v980
        %v982 = vadd.f32 %v978, %v981
        %vm983 = vweird.f32 %v568
        %vm984 = vweird.f32 %v978
        %vm985 = vmor %vm983, %vm984
        %v986 = vsel %vm985, %v978, %v982
        %v987 = vand.u32 2147483647, %v568
        %vm988 = vcmp.eq.f32.partialorder %v987, 8.507059e+37
        %v989 = vand.u32 %v568, 2147483648
        %v990 = vor.u32 1.1754944e-38, %v989
        %v991 = vsel %vm988, %v990, %v986
        %v992 = vmul.f32 1.0, %v991
        %v993 = vrcp.pop %v569
        %v994 = vmul.f32 %v569, %v993
        %v995 = vsub.f32 1.0, %v994
        %v996 = vmul.f32 %v993, %v995
        %v997 = vadd.f32 %v993, %v996
        %vm998 = vweird.f32 %v569
        %vm999 = vweird.f32 %v993
        %vm1000 = vmor %vm998, %vm999
        %v1001 = vsel %vm1000, %v993, %v997
        %v1002 = vand.u32 2147483647, %v569
        %vm1003 = vcmp.eq.f32.partialorder %v1002, 8.507059e+37
        %v1004 = vand.u32 %v569, 2147483648
        %v1005 = vor.u32 1.1754944e-38, %v1004
        %v1006 = vsel %vm1003, %v1005, %v1001
        %v1007 = vmul.f32 1.0, %v1006
        %v1008 = vrcp.pop %v570
        %v1009 = vmul.f32 %v570, %v1008
        %v1010 = vsub.f32 1.0, %v1009
        %v1011 = vmul.f32 %v1008, %v1010
        %v1012 = vadd.f32 %v1008, %v1011
        %vm1013 = vweird.f32 %v570
        %vm1014 = vweird.f32 %v1008
        %vm1015 = vmor %vm1013, %vm1014
        %v1016 = vsel %vm1015, %v1008, %v1012
        %v1017 = vand.u32 2147483647, %v570
        %vm1018 = vcmp.eq.f32.partialorder %v1017, 8.507059e+37
        %v1019 = vand.u32 %v570, 2147483648
        %v1020 = vor.u32 1.1754944e-38, %v1019
        %v1021 = vsel %vm1018, %v1020, %v1016
        %v1022 = vmul.f32 1.0, %v1021
        %v1023 = vrcp.pop %v571
        %v1024 = vmul.f32 %v571, %v1023
        %v1025 = vsub.f32 1.0, %v1024
        %v1026 = vmul.f32 %v1023, %v1025
        %v1027 = vadd.f32 %v1023, %v1026
        %vm1028 = vweird.f32 %v571
        %vm1029 = vweird.f32 %v1023
        %vm1030 = vmor %vm1028, %vm1029
        %v1031 = vsel %vm1030, %v1023, %v1027
        %v1032 = vand.u32 2147483647, %v571
        %vm1033 = vcmp.eq.f32.partialorder %v1032, 8.507059e+37
        %v1034 = vand.u32 %v571, 2147483648
        %v1035 = vor.u32 1.1754944e-38, %v1034
        %v1036 = vsel %vm1033, %v1035, %v1031
        %v1037 = vmul.f32 1.0, %v1036
        %v1038 = vrcp.pop %v572
        %v1039 = vmul.f32 %v572, %v1038
        %v1040 = vsub.f32 1.0, %v1039
        %v1041 = vmul.f32 %v1038, %v1040
        %v1042 = vadd.f32 %v1038, %v1041
        %vm1043 = vweird.f32 %v572
        %vm1044 = vweird.f32 %v1038
        %vm1045 = vmor %vm1043, %vm1044
        %v1046 = vsel %vm1045, %v1038, %v1042
        %v1047 = vand.u32 2147483647, %v572
        %vm1048 = vcmp.eq.f32.partialorder %v1047, 8.507059e+37
        %v1049 = vand.u32 %v572, 2147483648
        %v1050 = vor.u32 1.1754944e-38, %v1049
        %v1051 = vsel %vm1048, %v1050, %v1046
        %v1052 = vmul.f32 1.0, %v1051
        %v1053 = vld [vmem:[%s2] sm:$0xff]
        %v1054 = vld [vmem:[%s2 + $0x8] sm:$0xff]
        %v1055 = vld [vmem:[%s2 + $0x10] sm:$0xff]
        %v1056 = vld [vmem:[%s2 + $0x18] sm:$0xff]
        %v1057 = vld [vmem:[%s2 + $0x20] sm:$0xff]
        %v1058 = vld [vmem:[%s2 + $0x28] sm:$0xff]
        %v1059 = vld [vmem:[%s2 + $0x30] sm:$0xff]
        %v1060 = vld [vmem:[%s2 + $0x38] sm:$0xff]
        %v1061 = vld [vmem:[%s2 + $0x40] sm:$0xff]
        %v1062 = vld [vmem:[%s2 + $0x48] sm:$0xff]
        %v1063 = vld [vmem:[%s2 + $0x50] sm:$0xff]
        %v1064 = vld [vmem:[%s2 + $0x58] sm:$0xff]
        %v1065 = vld [vmem:[%s2 + $0x60] sm:$0xff]
        %v1066 = vld [vmem:[%s2 + $0x68] sm:$0xff]
        %v1067 = vld [vmem:[%s2 + $0x70] sm:$0xff]
        %v1068 = vld [vmem:[%s2 + $0x78] sm:$0xff]
        %v1069 = vld [vmem:[%s3 + $0x1] sm:$0x1]
        %v1070 = vperm.slane %v1069, 0
        %1071 = vmatpush.msra.mxu0 %v1068
        %1072 = vmatpush.msra.mxu0 %v1067
        %1073 = vmatpush.msra.mxu0 %v1066
        %1074 = vmatpush.msra.mxu0 %v1065
        %1075 = vmatpush.msra.mxu0 %v1064
        %1076 = vmatpush.msra.mxu0 %v1063
        %1077 = vmatpush.msra.mxu0 %v1062
        %1078 = vmatpush.msra.mxu0 %v1061
        %1079 = vmatpush.msra.mxu0 %v1060
        %1080 = vmatpush.msra.mxu0 %v1059
        %1081 = vmatpush.msra.mxu0 %v1058
        %1082 = vmatpush.msra.mxu0 %v1057
        %1083 = vmatpush.msra.mxu0 %v1056
        %1084 = vmatpush.msra.mxu0 %v1055
        %1085 = vmatpush.msra.mxu0 %v1054
        %1086 = vmatpush.msra.mxu0 %v1053
        %1087 = vmatmul.f32.gmra.mxu0 %v587
        %v1088 = vpop.f32.mrf.mxu0
        %v1089 = vadd.f32 %v1070, %v1088
        %1090 = vmatmul.f32.gmra.mxu0 %v602
        %v1091 = vpop.f32.mrf.mxu0
        %v1092 = vadd.f32 %v1070, %v1091
        %1093 = vmatmul.f32.gmra.mxu0 %v617
        %v1094 = vpop.f32.mrf.mxu0
        %v1095 = vadd.f32 %v1070, %v1094
        %1096 = vmatmul.f32.gmra.mxu0 %v632
        %v1097 = vpop.f32.mrf.mxu0
        %v1098 = vadd.f32 %v1070, %v1097
        %1099 = vmatmul.f32.gmra.mxu0 %v647
        %v1100 = vpop.f32.mrf.mxu0
        %v1101 = vadd.f32 %v1070, %v1100
        %1102 = vmatmul.f32.gmra.mxu0 %v662
        %v1103 = vpop.f32.mrf.mxu0
        %v1104 = vadd.f32 %v1070, %v1103
        %1105 = vmatmul.f32.gmra.mxu0 %v677
        %v1106 = vpop.f32.mrf.mxu0
        %v1107 = vadd.f32 %v1070, %v1106
        %1108 = vmatmul.f32.gmra.mxu0 %v692
        %v1109 = vpop.f32.mrf.mxu0
        %v1110 = vadd.f32 %v1070, %v1109
        %1111 = vmatmul.f32.gmra.mxu0 %v707
        %v1112 = vpop.f32.mrf.mxu0
        %v1113 = vadd.f32 %v1070, %v1112
        %1114 = vmatmul.f32.gmra.mxu0 %v722
        %v1115 = vpop.f32.mrf.mxu0
        %v1116 = vadd.f32 %v1070, %v1115
        %1117 = vmatmul.f32.gmra.mxu0 %v737
        %v1118 = vpop.f32.mrf.mxu0
        %v1119 = vadd.f32 %v1070, %v1118
        %1120 = vmatmul.f32.gmra.mxu0 %v752
        %v1121 = vpop.f32.mrf.mxu0
        %v1122 = vadd.f32 %v1070, %v1121
        %1123 = vmatmul.f32.gmra.mxu0 %v767
        %v1124 = vpop.f32.mrf.mxu0
        %v1125 = vadd.f32 %v1070, %v1124
        %1126 = vmatmul.f32.gmra.mxu0 %v782
        %v1127 = vpop.f32.mrf.mxu0
        %v1128 = vadd.f32 %v1070, %v1127
        %1129 = vmatmul.f32.gmra.mxu0 %v797
        %v1130 = vpop.f32.mrf.mxu0
        %v1131 = vadd.f32 %v1070, %v1130
        %1132 = vmatmul.f32.gmra.mxu0 %v812
        %v1133 = vpop.f32.mrf.mxu0
        %v1134 = vadd.f32 %v1070, %v1133
        %1135 = vmatmul.f32.gmra.mxu0 %v827
        %v1136 = vpop.f32.mrf.mxu0
        %v1137 = vadd.f32 %v1070, %v1136
        %1138 = vmatmul.f32.gmra.mxu0 %v842
        %v1139 = vpop.f32.mrf.mxu0
        %v1140 = vadd.f32 %v1070, %v1139
        %1141 = vmatmul.f32.gmra.mxu0 %v857
        %v1142 = vpop.f32.mrf.mxu0
        %v1143 = vadd.f32 %v1070, %v1142
        %1144 = vmatmul.f32.gmra.mxu0 %v872
        %v1145 = vpop.f32.mrf.mxu0
        %v1146 = vadd.f32 %v1070, %v1145
        %1147 = vmatmul.f32.gmra.mxu0 %v887
        %v1148 = vpop.f32.mrf.mxu0
        %v1149 = vadd.f32 %v1070, %v1148
        %1150 = vmatmul.f32.gmra.mxu0 %v902
        %v1151 = vpop.f32.mrf.mxu0
        %v1152 = vadd.f32 %v1070, %v1151
        %1153 = vmatmul.f32.gmra.mxu0 %v917
        %v1154 = vpop.f32.mrf.mxu0
        %v1155 = vadd.f32 %v1070, %v1154
        %1156 = vmatmul.f32.gmra.mxu0 %v932
        %v1157 = vpop.f32.mrf.mxu0
        %v1158 = vadd.f32 %v1070, %v1157
        %1159 = vmatmul.f32.gmra.mxu0 %v947
        %v1160 = vpop.f32.mrf.mxu0
        %v1161 = vadd.f32 %v1070, %v1160
        %1162 = vmatmul.f32.gmra.mxu0 %v962
        %v1163 = vpop.f32.mrf.mxu0
        %v1164 = vadd.f32 %v1070, %v1163
        %1165 = vmatmul.f32.gmra.mxu0 %v977
        %v1166 = vpop.f32.mrf.mxu0
        %v1167 = vadd.f32 %v1070, %v1166
        %1168 = vmatmul.f32.gmra.mxu0 %v992
        %v1169 = vpop.f32.mrf.mxu0
        %v1170 = vadd.f32 %v1070, %v1169
        %1171 = vmatmul.f32.gmra.mxu0 %v1007
        %v1172 = vpop.f32.mrf.mxu0
        %v1173 = vadd.f32 %v1070, %v1172
        %1174 = vmatmul.f32.gmra.mxu0 %v1022
        %v1175 = vpop.f32.mrf.mxu0
        %v1176 = vadd.f32 %v1070, %v1175
        %1177 = vmatmul.f32.gmra.mxu0 %v1037
        %v1178 = vpop.f32.mrf.mxu0
        %v1179 = vadd.f32 %v1070, %v1178
        %1180 = vmatmul.f32.gmra.mxu0 %v1052
        %v1181 = vpop.f32.mrf.mxu0
        %v1182 = vadd.f32 %v1070, %v1181
        %1183 = vdwg.mxu0
        %v1184 = vxor.u32 %v1089, 2147483648
        %v1185 = vxor.u32 %v1092, 2147483648
        %v1186 = vxor.u32 %v1095, 2147483648
        %v1187 = vxor.u32 %v1098, 2147483648
        %v1188 = vxor.u32 %v1101, 2147483648
        %v1189 = vxor.u32 %v1104, 2147483648
        %v1190 = vxor.u32 %v1107, 2147483648
        %v1191 = vxor.u32 %v1110, 2147483648
        %v1192 = vxor.u32 %v1113, 2147483648
        %v1193 = vxor.u32 %v1116, 2147483648
        %v1194 = vxor.u32 %v1119, 2147483648
        %v1195 = vxor.u32 %v1122, 2147483648
        %v1196 = vxor.u32 %v1125, 2147483648
        %v1197 = vxor.u32 %v1128, 2147483648
        %v1198 = vxor.u32 %v1131, 2147483648
        %v1199 = vxor.u32 %v1134, 2147483648
        %v1200 = vxor.u32 %v1137, 2147483648
        %v1201 = vxor.u32 %v1140, 2147483648
        %v1202 = vxor.u32 %v1143, 2147483648
        %v1203 = vxor.u32 %v1146, 2147483648
        %v1204 = vxor.u32 %v1149, 2147483648
        %v1205 = vxor.u32 %v1152, 2147483648
        %v1206 = vxor.u32 %v1155, 2147483648
        %v1207 = vxor.u32 %v1158, 2147483648
        %v1208 = vxor.u32 %v1161, 2147483648
        %v1209 = vxor.u32 %v1164, 2147483648
        %v1210 = vxor.u32 %v1167, 2147483648
        %v1211 = vxor.u32 %v1170, 2147483648
        %v1212 = vxor.u32 %v1173, 2147483648
        %v1213 = vxor.u32 %v1176, 2147483648
        %v1214 = vxor.u32 %v1179, 2147483648
        %v1215 = vxor.u32 %v1182, 2147483648
        %v1216 = vmul.f32 %v1184, 1.442695
        %v1217 = vpow.pop %v1216
        %v1218 = vmul.f32 %v1185, 1.442695
        %v1219 = vpow.pop %v1218
        %v1220 = vmul.f32 %v1186, 1.442695
        %v1221 = vpow.pop %v1220
        %v1222 = vmul.f32 %v1187, 1.442695
        %v1223 = vpow.pop %v1222
        %v1224 = vmul.f32 %v1188, 1.442695
        %v1225 = vpow.pop %v1224
        %v1226 = vmul.f32 %v1189, 1.442695
        %v1227 = vpow.pop %v1226
        %v1228 = vmul.f32 %v1190, 1.442695
        %v1229 = vpow.pop %v1228
        %v1230 = vmul.f32 %v1191, 1.442695
        %v1231 = vpow.pop %v1230
        %v1232 = vmul.f32 %v1192, 1.442695
        %v1233 = vpow.pop %v1232
        %v1234 = vmul.f32 %v1193, 1.442695
        %v1235 = vpow.pop %v1234
        %v1236 = vmul.f32 %v1194, 1.442695
        %v1237 = vpow.pop %v1236
        %v1238 = vmul.f32 %v1195, 1.442695
        %v1239 = vpow.pop %v1238
        %v1240 = vmul.f32 %v1196, 1.442695
        %v1241 = vpow.pop %v1240
        %v1242 = vmul.f32 %v1197, 1.442695
        %v1243 = vpow.pop %v1242
        %v1244 = vmul.f32 %v1198, 1.442695
        %v1245 = vpow.pop %v1244
        %v1246 = vmul.f32 %v1199, 1.442695
        %v1247 = vpow.pop %v1246
        %v1248 = vmul.f32 %v1200, 1.442695
        %v1249 = vpow.pop %v1248
        %v1250 = vmul.f32 %v1201, 1.442695
        %v1251 = vpow.pop %v1250
        %v1252 = vmul.f32 %v1202, 1.442695
        %v1253 = vpow.pop %v1252
        %v1254 = vmul.f32 %v1203, 1.442695
        %v1255 = vpow.pop %v1254
        %v1256 = vmul.f32 %v1204, 1.442695
        %v1257 = vpow.pop %v1256
        %v1258 = vmul.f32 %v1205, 1.442695
        %v1259 = vpow.pop %v1258
        %v1260 = vmul.f32 %v1206, 1.442695
        %v1261 = vpow.pop %v1260
        %v1262 = vmul.f32 %v1207, 1.442695
        %v1263 = vpow.pop %v1262
        %v1264 = vmul.f32 %v1208, 1.442695
        %v1265 = vpow.pop %v1264
        %v1266 = vmul.f32 %v1209, 1.442695
        %v1267 = vpow.pop %v1266
        %v1268 = vmul.f32 %v1210, 1.442695
        %v1269 = vpow.pop %v1268
        %v1270 = vmul.f32 %v1211, 1.442695
        %v1271 = vpow.pop %v1270
        %v1272 = vmul.f32 %v1212, 1.442695
        %v1273 = vpow.pop %v1272
        %v1274 = vmul.f32 %v1213, 1.442695
        %v1275 = vpow.pop %v1274
        %v1276 = vmul.f32 %v1214, 1.442695
        %v1277 = vpow.pop %v1276
        %v1278 = vmul.f32 %v1215, 1.442695
        %v1279 = vpow.pop %v1278
        %v1280 = vadd.f32 %v1217, 1.0
        %v1281 = vadd.f32 %v1219, 1.0
        %v1282 = vadd.f32 %v1221, 1.0
        %v1283 = vadd.f32 %v1223, 1.0
        %v1284 = vadd.f32 %v1225, 1.0
        %v1285 = vadd.f32 %v1227, 1.0
        %v1286 = vadd.f32 %v1229, 1.0
        %v1287 = vadd.f32 %v1231, 1.0
        %v1288 = vadd.f32 %v1233, 1.0
        %v1289 = vadd.f32 %v1235, 1.0
        %v1290 = vadd.f32 %v1237, 1.0
        %v1291 = vadd.f32 %v1239, 1.0
        %v1292 = vadd.f32 %v1241, 1.0
        %v1293 = vadd.f32 %v1243, 1.0
        %v1294 = vadd.f32 %v1245, 1.0
        %v1295 = vadd.f32 %v1247, 1.0
        %v1296 = vadd.f32 %v1249, 1.0
        %v1297 = vadd.f32 %v1251, 1.0
        %v1298 = vadd.f32 %v1253, 1.0
        %v1299 = vadd.f32 %v1255, 1.0
        %v1300 = vadd.f32 %v1257, 1.0
        %v1301 = vadd.f32 %v1259, 1.0
        %v1302 = vadd.f32 %v1261, 1.0
        %v1303 = vadd.f32 %v1263, 1.0
        %v1304 = vadd.f32 %v1265, 1.0
        %v1305 = vadd.f32 %v1267, 1.0
        %v1306 = vadd.f32 %v1269, 1.0
        %v1307 = vadd.f32 %v1271, 1.0
        %v1308 = vadd.f32 %v1273, 1.0
        %v1309 = vadd.f32 %v1275, 1.0
        %v1310 = vadd.f32 %v1277, 1.0
        %v1311 = vadd.f32 %v1279, 1.0
        %v1312 = vrcp.pop %v1280
        %v1313 = vmul.f32 %v1280, %v1312
        %v1314 = vsub.f32 1.0, %v1313
        %v1315 = vmul.f32 %v1312, %v1314
        %v1316 = vadd.f32 %v1312, %v1315
        %vm1317 = vweird.f32 %v1280
        %vm1318 = vweird.f32 %v1312
        %vm1319 = vmor %vm1317, %vm1318
        %v1320 = vsel %vm1319, %v1312, %v1316
        %v1321 = vand.u32 2147483647, %v1280
        %vm1322 = vcmp.eq.f32.partialorder %v1321, 8.507059e+37
        %v1323 = vand.u32 %v1280, 2147483648
        %v1324 = vor.u32 1.1754944e-38, %v1323
        %v1325 = vsel %vm1322, %v1324, %v1320
        %v1326 = vmul.f32 1.0, %v1325
        %v1327 = vrcp.pop %v1281
        %v1328 = vmul.f32 %v1281, %v1327
        %v1329 = vsub.f32 1.0, %v1328
        %v1330 = vmul.f32 %v1327, %v1329
        %v1331 = vadd.f32 %v1327, %v1330
        %vm1332 = vweird.f32 %v1281
        %vm1333 = vweird.f32 %v1327
        %vm1334 = vmor %vm1332, %vm1333
        %v1335 = vsel %vm1334, %v1327, %v1331
        %v1336 = vand.u32 2147483647, %v1281
        %vm1337 = vcmp.eq.f32.partialorder %v1336, 8.507059e+37
        %v1338 = vand.u32 %v1281, 2147483648
        %v1339 = vor.u32 1.1754944e-38, %v1338
        %v1340 = vsel %vm1337, %v1339, %v1335
        %v1341 = vmul.f32 1.0, %v1340
        %v1342 = vrcp.pop %v1282
        %v1343 = vmul.f32 %v1282, %v1342
        %v1344 = vsub.f32 1.0, %v1343
        %v1345 = vmul.f32 %v1342, %v1344
        %v1346 = vadd.f32 %v1342, %v1345
        %vm1347 = vweird.f32 %v1282
        %vm1348 = vweird.f32 %v1342
        %vm1349 = vmor %vm1347, %vm1348
        %v1350 = vsel %vm1349, %v1342, %v1346
        %v1351 = vand.u32 2147483647, %v1282
        %vm1352 = vcmp.eq.f32.partialorder %v1351, 8.507059e+37
        %v1353 = vand.u32 %v1282, 2147483648
        %v1354 = vor.u32 1.1754944e-38, %v1353
        %v1355 = vsel %vm1352, %v1354, %v1350
        %v1356 = vmul.f32 1.0, %v1355
        %v1357 = vrcp.pop %v1283
        %v1358 = vmul.f32 %v1283, %v1357
        %v1359 = vsub.f32 1.0, %v1358
        %v1360 = vmul.f32 %v1357, %v1359
        %v1361 = vadd.f32 %v1357, %v1360
        %vm1362 = vweird.f32 %v1283
        %vm1363 = vweird.f32 %v1357
        %vm1364 = vmor %vm1362, %vm1363
        %v1365 = vsel %vm1364, %v1357, %v1361
        %v1366 = vand.u32 2147483647, %v1283
        %vm1367 = vcmp.eq.f32.partialorder %v1366, 8.507059e+37
        %v1368 = vand.u32 %v1283, 2147483648
        %v1369 = vor.u32 1.1754944e-38, %v1368
        %v1370 = vsel %vm1367, %v1369, %v1365
        %v1371 = vmul.f32 1.0, %v1370
        %v1372 = vrcp.pop %v1284
        %v1373 = vmul.f32 %v1284, %v1372
        %v1374 = vsub.f32 1.0, %v1373
        %v1375 = vmul.f32 %v1372, %v1374
        %v1376 = vadd.f32 %v1372, %v1375
        %vm1377 = vweird.f32 %v1284
        %vm1378 = vweird.f32 %v1372
        %vm1379 = vmor %vm1377, %vm1378
        %v1380 = vsel %vm1379, %v1372, %v1376
        %v1381 = vand.u32 2147483647, %v1284
        %vm1382 = vcmp.eq.f32.partialorder %v1381, 8.507059e+37
        %v1383 = vand.u32 %v1284, 2147483648
        %v1384 = vor.u32 1.1754944e-38, %v1383
        %v1385 = vsel %vm1382, %v1384, %v1380
        %v1386 = vmul.f32 1.0, %v1385
        %v1387 = vrcp.pop %v1285
        %v1388 = vmul.f32 %v1285, %v1387
        %v1389 = vsub.f32 1.0, %v1388
        %v1390 = vmul.f32 %v1387, %v1389
        %v1391 = vadd.f32 %v1387, %v1390
        %vm1392 = vweird.f32 %v1285
        %vm1393 = vweird.f32 %v1387
        %vm1394 = vmor %vm1392, %vm1393
        %v1395 = vsel %vm1394, %v1387, %v1391
        %v1396 = vand.u32 2147483647, %v1285
        %vm1397 = vcmp.eq.f32.partialorder %v1396, 8.507059e+37
        %v1398 = vand.u32 %v1285, 2147483648
        %v1399 = vor.u32 1.1754944e-38, %v1398
        %v1400 = vsel %vm1397, %v1399, %v1395
        %v1401 = vmul.f32 1.0, %v1400
        %v1402 = vrcp.pop %v1286
        %v1403 = vmul.f32 %v1286, %v1402
        %v1404 = vsub.f32 1.0, %v1403
        %v1405 = vmul.f32 %v1402, %v1404
        %v1406 = vadd.f32 %v1402, %v1405
        %vm1407 = vweird.f32 %v1286
        %vm1408 = vweird.f32 %v1402
        %vm1409 = vmor %vm1407, %vm1408
        %v1410 = vsel %vm1409, %v1402, %v1406
        %v1411 = vand.u32 2147483647, %v1286
        %vm1412 = vcmp.eq.f32.partialorder %v1411, 8.507059e+37
        %v1413 = vand.u32 %v1286, 2147483648
        %v1414 = vor.u32 1.1754944e-38, %v1413
        %v1415 = vsel %vm1412, %v1414, %v1410
        %v1416 = vmul.f32 1.0, %v1415
        %v1417 = vrcp.pop %v1287
        %v1418 = vmul.f32 %v1287, %v1417
        %v1419 = vsub.f32 1.0, %v1418
        %v1420 = vmul.f32 %v1417, %v1419
        %v1421 = vadd.f32 %v1417, %v1420
        %vm1422 = vweird.f32 %v1287
        %vm1423 = vweird.f32 %v1417
        %vm1424 = vmor %vm1422, %vm1423
        %v1425 = vsel %vm1424, %v1417, %v1421
        %v1426 = vand.u32 2147483647, %v1287
        %vm1427 = vcmp.eq.f32.partialorder %v1426, 8.507059e+37
        %v1428 = vand.u32 %v1287, 2147483648
        %v1429 = vor.u32 1.1754944e-38, %v1428
        %v1430 = vsel %vm1427, %v1429, %v1425
        %v1431 = vmul.f32 1.0, %v1430
        %v1432 = vrcp.pop %v1288
        %v1433 = vmul.f32 %v1288, %v1432
        %v1434 = vsub.f32 1.0, %v1433
        %v1435 = vmul.f32 %v1432, %v1434
        %v1436 = vadd.f32 %v1432, %v1435
        %vm1437 = vweird.f32 %v1288
        %vm1438 = vweird.f32 %v1432
        %vm1439 = vmor %vm1437, %vm1438
        %v1440 = vsel %vm1439, %v1432, %v1436
        %v1441 = vand.u32 2147483647, %v1288
        %vm1442 = vcmp.eq.f32.partialorder %v1441, 8.507059e+37
        %v1443 = vand.u32 %v1288, 2147483648
        %v1444 = vor.u32 1.1754944e-38, %v1443
        %v1445 = vsel %vm1442, %v1444, %v1440
        %v1446 = vmul.f32 1.0, %v1445
        %v1447 = vrcp.pop %v1289
        %v1448 = vmul.f32 %v1289, %v1447
        %v1449 = vsub.f32 1.0, %v1448
        %v1450 = vmul.f32 %v1447, %v1449
        %v1451 = vadd.f32 %v1447, %v1450
        %vm1452 = vweird.f32 %v1289
        %vm1453 = vweird.f32 %v1447
        %vm1454 = vmor %vm1452, %vm1453
        %v1455 = vsel %vm1454, %v1447, %v1451
        %v1456 = vand.u32 2147483647, %v1289
        %vm1457 = vcmp.eq.f32.partialorder %v1456, 8.507059e+37
        %v1458 = vand.u32 %v1289, 2147483648
        %v1459 = vor.u32 1.1754944e-38, %v1458
        %v1460 = vsel %vm1457, %v1459, %v1455
        %v1461 = vmul.f32 1.0, %v1460
        %v1462 = vrcp.pop %v1290
        %v1463 = vmul.f32 %v1290, %v1462
        %v1464 = vsub.f32 1.0, %v1463
        %v1465 = vmul.f32 %v1462, %v1464
        %v1466 = vadd.f32 %v1462, %v1465
        %vm1467 = vweird.f32 %v1290
        %vm1468 = vweird.f32 %v1462
        %vm1469 = vmor %vm1467, %vm1468
        %v1470 = vsel %vm1469, %v1462, %v1466
        %v1471 = vand.u32 2147483647, %v1290
        %vm1472 = vcmp.eq.f32.partialorder %v1471, 8.507059e+37
        %v1473 = vand.u32 %v1290, 2147483648
        %v1474 = vor.u32 1.1754944e-38, %v1473
        %v1475 = vsel %vm1472, %v1474, %v1470
        %v1476 = vmul.f32 1.0, %v1475
        %v1477 = vrcp.pop %v1291
        %v1478 = vmul.f32 %v1291, %v1477
        %v1479 = vsub.f32 1.0, %v1478
        %v1480 = vmul.f32 %v1477, %v1479
        %v1481 = vadd.f32 %v1477, %v1480
        %vm1482 = vweird.f32 %v1291
        %vm1483 = vweird.f32 %v1477
        %vm1484 = vmor %vm1482, %vm1483
        %v1485 = vsel %vm1484, %v1477, %v1481
        %v1486 = vand.u32 2147483647, %v1291
        %vm1487 = vcmp.eq.f32.partialorder %v1486, 8.507059e+37
        %v1488 = vand.u32 %v1291, 2147483648
        %v1489 = vor.u32 1.1754944e-38, %v1488
        %v1490 = vsel %vm1487, %v1489, %v1485
        %v1491 = vmul.f32 1.0, %v1490
        %v1492 = vrcp.pop %v1292
        %v1493 = vmul.f32 %v1292, %v1492
        %v1494 = vsub.f32 1.0, %v1493
        %v1495 = vmul.f32 %v1492, %v1494
        %v1496 = vadd.f32 %v1492, %v1495
        %vm1497 = vweird.f32 %v1292
        %vm1498 = vweird.f32 %v1492
        %vm1499 = vmor %vm1497, %vm1498
        %v1500 = vsel %vm1499, %v1492, %v1496
        %v1501 = vand.u32 2147483647, %v1292
        %vm1502 = vcmp.eq.f32.partialorder %v1501, 8.507059e+37
        %v1503 = vand.u32 %v1292, 2147483648
        %v1504 = vor.u32 1.1754944e-38, %v1503
        %v1505 = vsel %vm1502, %v1504, %v1500
        %v1506 = vmul.f32 1.0, %v1505
        %v1507 = vrcp.pop %v1293
        %v1508 = vmul.f32 %v1293, %v1507
        %v1509 = vsub.f32 1.0, %v1508
        %v1510 = vmul.f32 %v1507, %v1509
        %v1511 = vadd.f32 %v1507, %v1510
        %vm1512 = vweird.f32 %v1293
        %vm1513 = vweird.f32 %v1507
        %vm1514 = vmor %vm1512, %vm1513
        %v1515 = vsel %vm1514, %v1507, %v1511
        %v1516 = vand.u32 2147483647, %v1293
        %vm1517 = vcmp.eq.f32.partialorder %v1516, 8.507059e+37
        %v1518 = vand.u32 %v1293, 2147483648
        %v1519 = vor.u32 1.1754944e-38, %v1518
        %v1520 = vsel %vm1517, %v1519, %v1515
        %v1521 = vmul.f32 1.0, %v1520
        %v1522 = vrcp.pop %v1294
        %v1523 = vmul.f32 %v1294, %v1522
        %v1524 = vsub.f32 1.0, %v1523
        %v1525 = vmul.f32 %v1522, %v1524
        %v1526 = vadd.f32 %v1522, %v1525
        %vm1527 = vweird.f32 %v1294
        %vm1528 = vweird.f32 %v1522
        %vm1529 = vmor %vm1527, %vm1528
        %v1530 = vsel %vm1529, %v1522, %v1526
        %v1531 = vand.u32 2147483647, %v1294
        %vm1532 = vcmp.eq.f32.partialorder %v1531, 8.507059e+37
        %v1533 = vand.u32 %v1294, 2147483648
        %v1534 = vor.u32 1.1754944e-38, %v1533
        %v1535 = vsel %vm1532, %v1534, %v1530
        %v1536 = vmul.f32 1.0, %v1535
        %v1537 = vrcp.pop %v1295
        %v1538 = vmul.f32 %v1295, %v1537
        %v1539 = vsub.f32 1.0, %v1538
        %v1540 = vmul.f32 %v1537, %v1539
        %v1541 = vadd.f32 %v1537, %v1540
        %vm1542 = vweird.f32 %v1295
        %vm1543 = vweird.f32 %v1537
        %vm1544 = vmor %vm1542, %vm1543
        %v1545 = vsel %vm1544, %v1537, %v1541
        %v1546 = vand.u32 2147483647, %v1295
        %vm1547 = vcmp.eq.f32.partialorder %v1546, 8.507059e+37
        %v1548 = vand.u32 %v1295, 2147483648
        %v1549 = vor.u32 1.1754944e-38, %v1548
        %v1550 = vsel %vm1547, %v1549, %v1545
        %v1551 = vmul.f32 1.0, %v1550
        %v1552 = vrcp.pop %v1296
        %v1553 = vmul.f32 %v1296, %v1552
        %v1554 = vsub.f32 1.0, %v1553
        %v1555 = vmul.f32 %v1552, %v1554
        %v1556 = vadd.f32 %v1552, %v1555
        %vm1557 = vweird.f32 %v1296
        %vm1558 = vweird.f32 %v1552
        %vm1559 = vmor %vm1557, %vm1558
        %v1560 = vsel %vm1559, %v1552, %v1556
        %v1561 = vand.u32 2147483647, %v1296
        %vm1562 = vcmp.eq.f32.partialorder %v1561, 8.507059e+37
        %v1563 = vand.u32 %v1296, 2147483648
        %v1564 = vor.u32 1.1754944e-38, %v1563
        %v1565 = vsel %vm1562, %v1564, %v1560
        %v1566 = vmul.f32 1.0, %v1565
        %v1567 = vrcp.pop %v1297
        %v1568 = vmul.f32 %v1297, %v1567
        %v1569 = vsub.f32 1.0, %v1568
        %v1570 = vmul.f32 %v1567, %v1569
        %v1571 = vadd.f32 %v1567, %v1570
        %vm1572 = vweird.f32 %v1297
        %vm1573 = vweird.f32 %v1567
        %vm1574 = vmor %vm1572, %vm1573
        %v1575 = vsel %vm1574, %v1567, %v1571
        %v1576 = vand.u32 2147483647, %v1297
        %vm1577 = vcmp.eq.f32.partialorder %v1576, 8.507059e+37
        %v1578 = vand.u32 %v1297, 2147483648
        %v1579 = vor.u32 1.1754944e-38, %v1578
        %v1580 = vsel %vm1577, %v1579, %v1575
        %v1581 = vmul.f32 1.0, %v1580
        %v1582 = vrcp.pop %v1298
        %v1583 = vmul.f32 %v1298, %v1582
        %v1584 = vsub.f32 1.0, %v1583
        %v1585 = vmul.f32 %v1582, %v1584
        %v1586 = vadd.f32 %v1582, %v1585
        %vm1587 = vweird.f32 %v1298
        %vm1588 = vweird.f32 %v1582
        %vm1589 = vmor %vm1587, %vm1588
        %v1590 = vsel %vm1589, %v1582, %v1586
        %v1591 = vand.u32 2147483647, %v1298
        %vm1592 = vcmp.eq.f32.partialorder %v1591, 8.507059e+37
        %v1593 = vand.u32 %v1298, 2147483648
        %v1594 = vor.u32 1.1754944e-38, %v1593
        %v1595 = vsel %vm1592, %v1594, %v1590
        %v1596 = vmul.f32 1.0, %v1595
        %v1597 = vrcp.pop %v1299
        %v1598 = vmul.f32 %v1299, %v1597
        %v1599 = vsub.f32 1.0, %v1598
        %v1600 = vmul.f32 %v1597, %v1599
        %v1601 = vadd.f32 %v1597, %v1600
        %vm1602 = vweird.f32 %v1299
        %vm1603 = vweird.f32 %v1597
        %vm1604 = vmor %vm1602, %vm1603
        %v1605 = vsel %vm1604, %v1597, %v1601
        %v1606 = vand.u32 2147483647, %v1299
        %vm1607 = vcmp.eq.f32.partialorder %v1606, 8.507059e+37
        %v1608 = vand.u32 %v1299, 2147483648
        %v1609 = vor.u32 1.1754944e-38, %v1608
        %v1610 = vsel %vm1607, %v1609, %v1605
        %v1611 = vmul.f32 1.0, %v1610
        %v1612 = vrcp.pop %v1300
        %v1613 = vmul.f32 %v1300, %v1612
        %v1614 = vsub.f32 1.0, %v1613
        %v1615 = vmul.f32 %v1612, %v1614
        %v1616 = vadd.f32 %v1612, %v1615
        %vm1617 = vweird.f32 %v1300
        %vm1618 = vweird.f32 %v1612
        %vm1619 = vmor %vm1617, %vm1618
        %v1620 = vsel %vm1619, %v1612, %v1616
        %v1621 = vand.u32 2147483647, %v1300
        %vm1622 = vcmp.eq.f32.partialorder %v1621, 8.507059e+37
        %v1623 = vand.u32 %v1300, 2147483648
        %v1624 = vor.u32 1.1754944e-38, %v1623
        %v1625 = vsel %vm1622, %v1624, %v1620
        %v1626 = vmul.f32 1.0, %v1625
        %v1627 = vrcp.pop %v1301
        %v1628 = vmul.f32 %v1301, %v1627
        %v1629 = vsub.f32 1.0, %v1628
        %v1630 = vmul.f32 %v1627, %v1629
        %v1631 = vadd.f32 %v1627, %v1630
        %vm1632 = vweird.f32 %v1301
        %vm1633 = vweird.f32 %v1627
        %vm1634 = vmor %vm1632, %vm1633
        %v1635 = vsel %vm1634, %v1627, %v1631
        %v1636 = vand.u32 2147483647, %v1301
        %vm1637 = vcmp.eq.f32.partialorder %v1636, 8.507059e+37
        %v1638 = vand.u32 %v1301, 2147483648
        %v1639 = vor.u32 1.1754944e-38, %v1638
        %v1640 = vsel %vm1637, %v1639, %v1635
        %v1641 = vmul.f32 1.0, %v1640
        %v1642 = vrcp.pop %v1302
        %v1643 = vmul.f32 %v1302, %v1642
        %v1644 = vsub.f32 1.0, %v1643
        %v1645 = vmul.f32 %v1642, %v1644
        %v1646 = vadd.f32 %v1642, %v1645
        %vm1647 = vweird.f32 %v1302
        %vm1648 = vweird.f32 %v1642
        %vm1649 = vmor %vm1647, %vm1648
        %v1650 = vsel %vm1649, %v1642, %v1646
        %v1651 = vand.u32 2147483647, %v1302
        %vm1652 = vcmp.eq.f32.partialorder %v1651, 8.507059e+37
        %v1653 = vand.u32 %v1302, 2147483648
        %v1654 = vor.u32 1.1754944e-38, %v1653
        %v1655 = vsel %vm1652, %v1654, %v1650
        %v1656 = vmul.f32 1.0, %v1655
        %v1657 = vrcp.pop %v1303
        %v1658 = vmul.f32 %v1303, %v1657
        %v1659 = vsub.f32 1.0, %v1658
        %v1660 = vmul.f32 %v1657, %v1659
        %v1661 = vadd.f32 %v1657, %v1660
        %vm1662 = vweird.f32 %v1303
        %vm1663 = vweird.f32 %v1657
        %vm1664 = vmor %vm1662, %vm1663
        %v1665 = vsel %vm1664, %v1657, %v1661
        %v1666 = vand.u32 2147483647, %v1303
        %vm1667 = vcmp.eq.f32.partialorder %v1666, 8.507059e+37
        %v1668 = vand.u32 %v1303, 2147483648
        %v1669 = vor.u32 1.1754944e-38, %v1668
        %v1670 = vsel %vm1667, %v1669, %v1665
        %v1671 = vmul.f32 1.0, %v1670
        %v1672 = vrcp.pop %v1304
        %v1673 = vmul.f32 %v1304, %v1672
        %v1674 = vsub.f32 1.0, %v1673
        %v1675 = vmul.f32 %v1672, %v1674
        %v1676 = vadd.f32 %v1672, %v1675
        %vm1677 = vweird.f32 %v1304
        %vm1678 = vweird.f32 %v1672
        %vm1679 = vmor %vm1677, %vm1678
        %v1680 = vsel %vm1679, %v1672, %v1676
        %v1681 = vand.u32 2147483647, %v1304
        %vm1682 = vcmp.eq.f32.partialorder %v1681, 8.507059e+37
        %v1683 = vand.u32 %v1304, 2147483648
        %v1684 = vor.u32 1.1754944e-38, %v1683
        %v1685 = vsel %vm1682, %v1684, %v1680
        %v1686 = vmul.f32 1.0, %v1685
        %v1687 = vrcp.pop %v1305
        %v1688 = vmul.f32 %v1305, %v1687
        %v1689 = vsub.f32 1.0, %v1688
        %v1690 = vmul.f32 %v1687, %v1689
        %v1691 = vadd.f32 %v1687, %v1690
        %vm1692 = vweird.f32 %v1305
        %vm1693 = vweird.f32 %v1687
        %vm1694 = vmor %vm1692, %vm1693
        %v1695 = vsel %vm1694, %v1687, %v1691
        %v1696 = vand.u32 2147483647, %v1305
        %vm1697 = vcmp.eq.f32.partialorder %v1696, 8.507059e+37
        %v1698 = vand.u32 %v1305, 2147483648
        %v1699 = vor.u32 1.1754944e-38, %v1698
        %v1700 = vsel %vm1697, %v1699, %v1695
        %v1701 = vmul.f32 1.0, %v1700
        %v1702 = vrcp.pop %v1306
        %v1703 = vmul.f32 %v1306, %v1702
        %v1704 = vsub.f32 1.0, %v1703
        %v1705 = vmul.f32 %v1702, %v1704
        %v1706 = vadd.f32 %v1702, %v1705
        %vm1707 = vweird.f32 %v1306
        %vm1708 = vweird.f32 %v1702
        %vm1709 = vmor %vm1707, %vm1708
        %v1710 = vsel %vm1709, %v1702, %v1706
        %v1711 = vand.u32 2147483647, %v1306
        %vm1712 = vcmp.eq.f32.partialorder %v1711, 8.507059e+37
        %v1713 = vand.u32 %v1306, 2147483648
        %v1714 = vor.u32 1.1754944e-38, %v1713
        %v1715 = vsel %vm1712, %v1714, %v1710
        %v1716 = vmul.f32 1.0, %v1715
        %v1717 = vrcp.pop %v1307
        %v1718 = vmul.f32 %v1307, %v1717
        %v1719 = vsub.f32 1.0, %v1718
        %v1720 = vmul.f32 %v1717, %v1719
        %v1721 = vadd.f32 %v1717, %v1720
        %vm1722 = vweird.f32 %v1307
        %vm1723 = vweird.f32 %v1717
        %vm1724 = vmor %vm1722, %vm1723
        %v1725 = vsel %vm1724, %v1717, %v1721
        %v1726 = vand.u32 2147483647, %v1307
        %vm1727 = vcmp.eq.f32.partialorder %v1726, 8.507059e+37
        %v1728 = vand.u32 %v1307, 2147483648
        %v1729 = vor.u32 1.1754944e-38, %v1728
        %v1730 = vsel %vm1727, %v1729, %v1725
        %v1731 = vmul.f32 1.0, %v1730
        %v1732 = vrcp.pop %v1308
        %v1733 = vmul.f32 %v1308, %v1732
        %v1734 = vsub.f32 1.0, %v1733
        %v1735 = vmul.f32 %v1732, %v1734
        %v1736 = vadd.f32 %v1732, %v1735
        %vm1737 = vweird.f32 %v1308
        %vm1738 = vweird.f32 %v1732
        %vm1739 = vmor %vm1737, %vm1738
        %v1740 = vsel %vm1739, %v1732, %v1736
        %v1741 = vand.u32 2147483647, %v1308
        %vm1742 = vcmp.eq.f32.partialorder %v1741, 8.507059e+37
        %v1743 = vand.u32 %v1308, 2147483648
        %v1744 = vor.u32 1.1754944e-38, %v1743
        %v1745 = vsel %vm1742, %v1744, %v1740
        %v1746 = vmul.f32 1.0, %v1745
        %v1747 = vrcp.pop %v1309
        %v1748 = vmul.f32 %v1309, %v1747
        %v1749 = vsub.f32 1.0, %v1748
        %v1750 = vmul.f32 %v1747, %v1749
        %v1751 = vadd.f32 %v1747, %v1750
        %vm1752 = vweird.f32 %v1309
        %vm1753 = vweird.f32 %v1747
        %vm1754 = vmor %vm1752, %vm1753
        %v1755 = vsel %vm1754, %v1747, %v1751
        %v1756 = vand.u32 2147483647, %v1309
        %vm1757 = vcmp.eq.f32.partialorder %v1756, 8.507059e+37
        %v1758 = vand.u32 %v1309, 2147483648
        %v1759 = vor.u32 1.1754944e-38, %v1758
        %v1760 = vsel %vm1757, %v1759, %v1755
        %v1761 = vmul.f32 1.0, %v1760
        %v1762 = vrcp.pop %v1310
        %v1763 = vmul.f32 %v1310, %v1762
        %v1764 = vsub.f32 1.0, %v1763
        %v1765 = vmul.f32 %v1762, %v1764
        %v1766 = vadd.f32 %v1762, %v1765
        %vm1767 = vweird.f32 %v1310
        %vm1768 = vweird.f32 %v1762
        %vm1769 = vmor %vm1767, %vm1768
        %v1770 = vsel %vm1769, %v1762, %v1766
        %v1771 = vand.u32 2147483647, %v1310
        %vm1772 = vcmp.eq.f32.partialorder %v1771, 8.507059e+37
        %v1773 = vand.u32 %v1310, 2147483648
        %v1774 = vor.u32 1.1754944e-38, %v1773
        %v1775 = vsel %vm1772, %v1774, %v1770
        %v1776 = vmul.f32 1.0, %v1775
        %v1777 = vrcp.pop %v1311
        %v1778 = vmul.f32 %v1311, %v1777
        %v1779 = vsub.f32 1.0, %v1778
        %v1780 = vmul.f32 %v1777, %v1779
        %v1781 = vadd.f32 %v1777, %v1780
        %vm1782 = vweird.f32 %v1311
        %vm1783 = vweird.f32 %v1777
        %vm1784 = vmor %vm1782, %vm1783
        %v1785 = vsel %vm1784, %v1777, %v1781
        %v1786 = vand.u32 2147483647, %v1311
        %vm1787 = vcmp.eq.f32.partialorder %v1786, 8.507059e+37
        %v1788 = vand.u32 %v1311, 2147483648
        %v1789 = vor.u32 1.1754944e-38, %v1788
        %v1790 = vsel %vm1787, %v1789, %v1785
        %v1791 = vmul.f32 1.0, %v1790
        %s1792 = scalar_lea.vmem %s2, 128
        %v1793 = vld [vmem:[%s1792] sm:$0xff]
        %v1794 = vld [vmem:[%s1792 + $0x8] sm:$0xff]
        %v1795 = vld [vmem:[%s1792 + $0x10] sm:$0xff]
        %v1796 = vld [vmem:[%s1792 + $0x18] sm:$0xff]
        %v1797 = vld [vmem:[%s1792 + $0x20] sm:$0xff]
        %v1798 = vld [vmem:[%s1792 + $0x28] sm:$0xff]
        %v1799 = vld [vmem:[%s1792 + $0x30] sm:$0xff]
        %v1800 = vld [vmem:[%s1792 + $0x38] sm:$0xff]
        %v1801 = vld [vmem:[%s1792 + $0x40] sm:$0xff]
        %v1802 = vld [vmem:[%s1792 + $0x48] sm:$0xff]
        %v1803 = vld [vmem:[%s1792 + $0x50] sm:$0xff]
        %v1804 = vld [vmem:[%s1792 + $0x58] sm:$0xff]
        %v1805 = vld [vmem:[%s1792 + $0x60] sm:$0xff]
        %v1806 = vld [vmem:[%s1792 + $0x68] sm:$0xff]
        %v1807 = vld [vmem:[%s1792 + $0x70] sm:$0xff]
        %v1808 = vld [vmem:[%s1792 + $0x78] sm:$0xff]
        %v1809 = vld [vmem:[%s3 + $0x2] sm:$0x1]
        %v1810 = vperm.slane %v1809, 0
        %1811 = vmatpush.msra.mxu0 %v1808
        %1812 = vmatpush.msra.mxu0 %v1807
        %1813 = vmatpush.msra.mxu0 %v1806
        %1814 = vmatpush.msra.mxu0 %v1805
        %1815 = vmatpush.msra.mxu0 %v1804
        %1816 = vmatpush.msra.mxu0 %v1803
        %1817 = vmatpush.msra.mxu0 %v1802
        %1818 = vmatpush.msra.mxu0 %v1801
        %1819 = vmatpush.msra.mxu0 %v1800
        %1820 = vmatpush.msra.mxu0 %v1799
        %1821 = vmatpush.msra.mxu0 %v1798
        %1822 = vmatpush.msra.mxu0 %v1797
        %1823 = vmatpush.msra.mxu0 %v1796
        %1824 = vmatpush.msra.mxu0 %v1795
        %1825 = vmatpush.msra.mxu0 %v1794
        %1826 = vmatpush.msra.mxu0 %v1793
        %1827 = vmatmul.f32.gmra.mxu0 %v1326
        %v1828 = vpop.f32.mrf.mxu0
        %v1829 = vadd.f32 %v1810, %v1828
        %1830 = vmatmul.f32.gmra.mxu0 %v1341
        %v1831 = vpop.f32.mrf.mxu0
        %v1832 = vadd.f32 %v1810, %v1831
        %1833 = vmatmul.f32.gmra.mxu0 %v1356
        %v1834 = vpop.f32.mrf.mxu0
        %v1835 = vadd.f32 %v1810, %v1834
        %1836 = vmatmul.f32.gmra.mxu0 %v1371
        %v1837 = vpop.f32.mrf.mxu0
        %v1838 = vadd.f32 %v1810, %v1837
        %1839 = vmatmul.f32.gmra.mxu0 %v1386
        %v1840 = vpop.f32.mrf.mxu0
        %v1841 = vadd.f32 %v1810, %v1840
        %1842 = vmatmul.f32.gmra.mxu0 %v1401
        %v1843 = vpop.f32.mrf.mxu0
        %v1844 = vadd.f32 %v1810, %v1843
        %1845 = vmatmul.f32.gmra.mxu0 %v1416
        %v1846 = vpop.f32.mrf.mxu0
        %v1847 = vadd.f32 %v1810, %v1846
        %1848 = vmatmul.f32.gmra.mxu0 %v1431
        %v1849 = vpop.f32.mrf.mxu0
        %v1850 = vadd.f32 %v1810, %v1849
        %1851 = vmatmul.f32.gmra.mxu0 %v1446
        %v1852 = vpop.f32.mrf.mxu0
        %v1853 = vadd.f32 %v1810, %v1852
        %1854 = vmatmul.f32.gmra.mxu0 %v1461
        %v1855 = vpop.f32.mrf.mxu0
        %v1856 = vadd.f32 %v1810, %v1855
        %1857 = vmatmul.f32.gmra.mxu0 %v1476
        %v1858 = vpop.f32.mrf.mxu0
        %v1859 = vadd.f32 %v1810, %v1858
        %1860 = vmatmul.f32.gmra.mxu0 %v1491
        %v1861 = vpop.f32.mrf.mxu0
        %v1862 = vadd.f32 %v1810, %v1861
        %1863 = vmatmul.f32.gmra.mxu0 %v1506
        %v1864 = vpop.f32.mrf.mxu0
        %v1865 = vadd.f32 %v1810, %v1864
        %1866 = vmatmul.f32.gmra.mxu0 %v1521
        %v1867 = vpop.f32.mrf.mxu0
        %v1868 = vadd.f32 %v1810, %v1867
        %1869 = vmatmul.f32.gmra.mxu0 %v1536
        %v1870 = vpop.f32.mrf.mxu0
        %v1871 = vadd.f32 %v1810, %v1870
        %1872 = vmatmul.f32.gmra.mxu0 %v1551
        %v1873 = vpop.f32.mrf.mxu0
        %v1874 = vadd.f32 %v1810, %v1873
        %1875 = vmatmul.f32.gmra.mxu0 %v1566
        %v1876 = vpop.f32.mrf.mxu0
        %v1877 = vadd.f32 %v1810, %v1876
        %1878 = vmatmul.f32.gmra.mxu0 %v1581
        %v1879 = vpop.f32.mrf.mxu0
        %v1880 = vadd.f32 %v1810, %v1879
        %1881 = vmatmul.f32.gmra.mxu0 %v1596
        %v1882 = vpop.f32.mrf.mxu0
        %v1883 = vadd.f32 %v1810, %v1882
        %1884 = vmatmul.f32.gmra.mxu0 %v1611
        %v1885 = vpop.f32.mrf.mxu0
        %v1886 = vadd.f32 %v1810, %v1885
        %1887 = vmatmul.f32.gmra.mxu0 %v1626
        %v1888 = vpop.f32.mrf.mxu0
        %v1889 = vadd.f32 %v1810, %v1888
        %1890 = vmatmul.f32.gmra.mxu0 %v1641
        %v1891 = vpop.f32.mrf.mxu0
        %v1892 = vadd.f32 %v1810, %v1891
        %1893 = vmatmul.f32.gmra.mxu0 %v1656
        %v1894 = vpop.f32.mrf.mxu0
        %v1895 = vadd.f32 %v1810, %v1894
        %1896 = vmatmul.f32.gmra.mxu0 %v1671
        %v1897 = vpop.f32.mrf.mxu0
        %v1898 = vadd.f32 %v1810, %v1897
        %1899 = vmatmul.f32.gmra.mxu0 %v1686
        %v1900 = vpop.f32.mrf.mxu0
        %v1901 = vadd.f32 %v1810, %v1900
        %1902 = vmatmul.f32.gmra.mxu0 %v1701
        %v1903 = vpop.f32.mrf.mxu0
        %v1904 = vadd.f32 %v1810, %v1903
        %1905 = vmatmul.f32.gmra.mxu0 %v1716
        %v1906 = vpop.f32.mrf.mxu0
        %v1907 = vadd.f32 %v1810, %v1906
        %1908 = vmatmul.f32.gmra.mxu0 %v1731
        %v1909 = vpop.f32.mrf.mxu0
        %v1910 = vadd.f32 %v1810, %v1909
        %1911 = vmatmul.f32.gmra.mxu0 %v1746
        %v1912 = vpop.f32.mrf.mxu0
        %v1913 = vadd.f32 %v1810, %v1912
        %1914 = vmatmul.f32.gmra.mxu0 %v1761
        %v1915 = vpop.f32.mrf.mxu0
        %v1916 = vadd.f32 %v1810, %v1915
        %1917 = vmatmul.f32.gmra.mxu0 %v1776
        %v1918 = vpop.f32.mrf.mxu0
        %v1919 = vadd.f32 %v1810, %v1918
        %1920 = vmatmul.f32.gmra.mxu0 %v1791
        %v1921 = vpop.f32.mrf.mxu0
        %v1922 = vadd.f32 %v1810, %v1921
        %1923 = vdwg.mxu0
        %v1924 = vxor.u32 %v1829, 2147483648
        %v1925 = vxor.u32 %v1832, 2147483648
        %v1926 = vxor.u32 %v1835, 2147483648
        %v1927 = vxor.u32 %v1838, 2147483648
        %v1928 = vxor.u32 %v1841, 2147483648
        %v1929 = vxor.u32 %v1844, 2147483648
        %v1930 = vxor.u32 %v1847, 2147483648
        %v1931 = vxor.u32 %v1850, 2147483648
        %v1932 = vxor.u32 %v1853, 2147483648
        %v1933 = vxor.u32 %v1856, 2147483648
        %v1934 = vxor.u32 %v1859, 2147483648
        %v1935 = vxor.u32 %v1862, 2147483648
        %v1936 = vxor.u32 %v1865, 2147483648
        %v1937 = vxor.u32 %v1868, 2147483648
        %v1938 = vxor.u32 %v1871, 2147483648
        %v1939 = vxor.u32 %v1874, 2147483648
        %v1940 = vxor.u32 %v1877, 2147483648
        %v1941 = vxor.u32 %v1880, 2147483648
        %v1942 = vxor.u32 %v1883, 2147483648
        %v1943 = vxor.u32 %v1886, 2147483648
        %v1944 = vxor.u32 %v1889, 2147483648
        %v1945 = vxor.u32 %v1892, 2147483648
        %v1946 = vxor.u32 %v1895, 2147483648
        %v1947 = vxor.u32 %v1898, 2147483648
        %v1948 = vxor.u32 %v1901, 2147483648
        %v1949 = vxor.u32 %v1904, 2147483648
        %v1950 = vxor.u32 %v1907, 2147483648
        %v1951 = vxor.u32 %v1910, 2147483648
        %v1952 = vxor.u32 %v1913, 2147483648
        %v1953 = vxor.u32 %v1916, 2147483648
        %v1954 = vxor.u32 %v1919, 2147483648
        %v1955 = vxor.u32 %v1922, 2147483648
        %v1956 = vmul.f32 %v1924, 1.442695
        %v1957 = vpow.pop %v1956
        %v1958 = vmul.f32 %v1925, 1.442695
        %v1959 = vpow.pop %v1958
        %v1960 = vmul.f32 %v1926, 1.442695
        %v1961 = vpow.pop %v1960
        %v1962 = vmul.f32 %v1927, 1.442695
        %v1963 = vpow.pop %v1962
        %v1964 = vmul.f32 %v1928, 1.442695
        %v1965 = vpow.pop %v1964
        %v1966 = vmul.f32 %v1929, 1.442695
        %v1967 = vpow.pop %v1966
        %v1968 = vmul.f32 %v1930, 1.442695
        %v1969 = vpow.pop %v1968
        %v1970 = vmul.f32 %v1931, 1.442695
        %v1971 = vpow.pop %v1970
        %v1972 = vmul.f32 %v1932, 1.442695
        %v1973 = vpow.pop %v1972
        %v1974 = vmul.f32 %v1933, 1.442695
        %v1975 = vpow.pop %v1974
        %v1976 = vmul.f32 %v1934, 1.442695
        %v1977 = vpow.pop %v1976
        %v1978 = vmul.f32 %v1935, 1.442695
        %v1979 = vpow.pop %v1978
        %v1980 = vmul.f32 %v1936, 1.442695
        %v1981 = vpow.pop %v1980
        %v1982 = vmul.f32 %v1937, 1.442695
        %v1983 = vpow.pop %v1982
        %v1984 = vmul.f32 %v1938, 1.442695
        %v1985 = vpow.pop %v1984
        %v1986 = vmul.f32 %v1939, 1.442695
        %v1987 = vpow.pop %v1986
        %v1988 = vmul.f32 %v1940, 1.442695
        %v1989 = vpow.pop %v1988
        %v1990 = vmul.f32 %v1941, 1.442695
        %v1991 = vpow.pop %v1990
        %v1992 = vmul.f32 %v1942, 1.442695
        %v1993 = vpow.pop %v1992
        %v1994 = vmul.f32 %v1943, 1.442695
        %v1995 = vpow.pop %v1994
        %v1996 = vmul.f32 %v1944, 1.442695
        %v1997 = vpow.pop %v1996
        %v1998 = vmul.f32 %v1945, 1.442695
        %v1999 = vpow.pop %v1998
        %v2000 = vmul.f32 %v1946, 1.442695
        %v2001 = vpow.pop %v2000
        %v2002 = vmul.f32 %v1947, 1.442695
        %v2003 = vpow.pop %v2002
        %v2004 = vmul.f32 %v1948, 1.442695
        %v2005 = vpow.pop %v2004
        %v2006 = vmul.f32 %v1949, 1.442695
        %v2007 = vpow.pop %v2006
        %v2008 = vmul.f32 %v1950, 1.442695
        %v2009 = vpow.pop %v2008
        %v2010 = vmul.f32 %v1951, 1.442695
        %v2011 = vpow.pop %v2010
        %v2012 = vmul.f32 %v1952, 1.442695
        %v2013 = vpow.pop %v2012
        %v2014 = vmul.f32 %v1953, 1.442695
        %v2015 = vpow.pop %v2014
        %v2016 = vmul.f32 %v1954, 1.442695
        %v2017 = vpow.pop %v2016
        %v2018 = vmul.f32 %v1955, 1.442695
        %v2019 = vpow.pop %v2018
        %v2020 = vadd.f32 %v1957, 1.0
        %v2021 = vadd.f32 %v1959, 1.0
        %v2022 = vadd.f32 %v1961, 1.0
        %v2023 = vadd.f32 %v1963, 1.0
        %v2024 = vadd.f32 %v1965, 1.0
        %v2025 = vadd.f32 %v1967, 1.0
        %v2026 = vadd.f32 %v1969, 1.0
        %v2027 = vadd.f32 %v1971, 1.0
        %v2028 = vadd.f32 %v1973, 1.0
        %v2029 = vadd.f32 %v1975, 1.0
        %v2030 = vadd.f32 %v1977, 1.0
        %v2031 = vadd.f32 %v1979, 1.0
        %v2032 = vadd.f32 %v1981, 1.0
        %v2033 = vadd.f32 %v1983, 1.0
        %v2034 = vadd.f32 %v1985, 1.0
        %v2035 = vadd.f32 %v1987, 1.0
        %v2036 = vadd.f32 %v1989, 1.0
        %v2037 = vadd.f32 %v1991, 1.0
        %v2038 = vadd.f32 %v1993, 1.0
        %v2039 = vadd.f32 %v1995, 1.0
        %v2040 = vadd.f32 %v1997, 1.0
        %v2041 = vadd.f32 %v1999, 1.0
        %v2042 = vadd.f32 %v2001, 1.0
        %v2043 = vadd.f32 %v2003, 1.0
        %v2044 = vadd.f32 %v2005, 1.0
        %v2045 = vadd.f32 %v2007, 1.0
        %v2046 = vadd.f32 %v2009, 1.0
        %v2047 = vadd.f32 %v2011, 1.0
        %v2048 = vadd.f32 %v2013, 1.0
        %v2049 = vadd.f32 %v2015, 1.0
        %v2050 = vadd.f32 %v2017, 1.0
        %v2051 = vadd.f32 %v2019, 1.0
        %v2052 = vrcp.pop %v2020
        %v2053 = vmul.f32 %v2020, %v2052
        %v2054 = vsub.f32 1.0, %v2053
        %v2055 = vmul.f32 %v2052, %v2054
        %v2056 = vadd.f32 %v2052, %v2055
        %vm2057 = vweird.f32 %v2020
        %vm2058 = vweird.f32 %v2052
        %vm2059 = vmor %vm2057, %vm2058
        %v2060 = vsel %vm2059, %v2052, %v2056
        %v2061 = vand.u32 2147483647, %v2020
        %vm2062 = vcmp.eq.f32.partialorder %v2061, 8.507059e+37
        %v2063 = vand.u32 %v2020, 2147483648
        %v2064 = vor.u32 1.1754944e-38, %v2063
        %v2065 = vsel %vm2062, %v2064, %v2060
        %v2066 = vmul.f32 1.0, %v2065
        %v2067 = vrcp.pop %v2021
        %v2068 = vmul.f32 %v2021, %v2067
        %v2069 = vsub.f32 1.0, %v2068
        %v2070 = vmul.f32 %v2067, %v2069
        %v2071 = vadd.f32 %v2067, %v2070
        %vm2072 = vweird.f32 %v2021
        %vm2073 = vweird.f32 %v2067
        %vm2074 = vmor %vm2072, %vm2073
        %v2075 = vsel %vm2074, %v2067, %v2071
        %v2076 = vand.u32 2147483647, %v2021
        %vm2077 = vcmp.eq.f32.partialorder %v2076, 8.507059e+37
        %v2078 = vand.u32 %v2021, 2147483648
        %v2079 = vor.u32 1.1754944e-38, %v2078
        %v2080 = vsel %vm2077, %v2079, %v2075
        %v2081 = vmul.f32 1.0, %v2080
        %v2082 = vrcp.pop %v2022
        %v2083 = vmul.f32 %v2022, %v2082
        %v2084 = vsub.f32 1.0, %v2083
        %v2085 = vmul.f32 %v2082, %v2084
        %v2086 = vadd.f32 %v2082, %v2085
        %vm2087 = vweird.f32 %v2022
        %vm2088 = vweird.f32 %v2082
        %vm2089 = vmor %vm2087, %vm2088
        %v2090 = vsel %vm2089, %v2082, %v2086
        %v2091 = vand.u32 2147483647, %v2022
        %vm2092 = vcmp.eq.f32.partialorder %v2091, 8.507059e+37
        %v2093 = vand.u32 %v2022, 2147483648
        %v2094 = vor.u32 1.1754944e-38, %v2093
        %v2095 = vsel %vm2092, %v2094, %v2090
        %v2096 = vmul.f32 1.0, %v2095
        %v2097 = vrcp.pop %v2023
        %v2098 = vmul.f32 %v2023, %v2097
        %v2099 = vsub.f32 1.0, %v2098
        %v2100 = vmul.f32 %v2097, %v2099
        %v2101 = vadd.f32 %v2097, %v2100
        %vm2102 = vweird.f32 %v2023
        %vm2103 = vweird.f32 %v2097
        %vm2104 = vmor %vm2102, %vm2103
        %v2105 = vsel %vm2104, %v2097, %v2101
        %v2106 = vand.u32 2147483647, %v2023
        %vm2107 = vcmp.eq.f32.partialorder %v2106, 8.507059e+37
        %v2108 = vand.u32 %v2023, 2147483648
        %v2109 = vor.u32 1.1754944e-38, %v2108
        %v2110 = vsel %vm2107, %v2109, %v2105
        %v2111 = vmul.f32 1.0, %v2110
        %v2112 = vrcp.pop %v2024
        %v2113 = vmul.f32 %v2024, %v2112
        %v2114 = vsub.f32 1.0, %v2113
        %v2115 = vmul.f32 %v2112, %v2114
        %v2116 = vadd.f32 %v2112, %v2115
        %vm2117 = vweird.f32 %v2024
        %vm2118 = vweird.f32 %v2112
        %vm2119 = vmor %vm2117, %vm2118
        %v2120 = vsel %vm2119, %v2112, %v2116
        %v2121 = vand.u32 2147483647, %v2024
        %vm2122 = vcmp.eq.f32.partialorder %v2121, 8.507059e+37
        %v2123 = vand.u32 %v2024, 2147483648
        %v2124 = vor.u32 1.1754944e-38, %v2123
        %v2125 = vsel %vm2122, %v2124, %v2120
        %v2126 = vmul.f32 1.0, %v2125
        %v2127 = vrcp.pop %v2025
        %v2128 = vmul.f32 %v2025, %v2127
        %v2129 = vsub.f32 1.0, %v2128
        %v2130 = vmul.f32 %v2127, %v2129
        %v2131 = vadd.f32 %v2127, %v2130
        %vm2132 = vweird.f32 %v2025
        %vm2133 = vweird.f32 %v2127
        %vm2134 = vmor %vm2132, %vm2133
        %v2135 = vsel %vm2134, %v2127, %v2131
        %v2136 = vand.u32 2147483647, %v2025
        %vm2137 = vcmp.eq.f32.partialorder %v2136, 8.507059e+37
        %v2138 = vand.u32 %v2025, 2147483648
        %v2139 = vor.u32 1.1754944e-38, %v2138
        %v2140 = vsel %vm2137, %v2139, %v2135
        %v2141 = vmul.f32 1.0, %v2140
        %v2142 = vrcp.pop %v2026
        %v2143 = vmul.f32 %v2026, %v2142
        %v2144 = vsub.f32 1.0, %v2143
        %v2145 = vmul.f32 %v2142, %v2144
        %v2146 = vadd.f32 %v2142, %v2145
        %vm2147 = vweird.f32 %v2026
        %vm2148 = vweird.f32 %v2142
        %vm2149 = vmor %vm2147, %vm2148
        %v2150 = vsel %vm2149, %v2142, %v2146
        %v2151 = vand.u32 2147483647, %v2026
        %vm2152 = vcmp.eq.f32.partialorder %v2151, 8.507059e+37
        %v2153 = vand.u32 %v2026, 2147483648
        %v2154 = vor.u32 1.1754944e-38, %v2153
        %v2155 = vsel %vm2152, %v2154, %v2150
        %v2156 = vmul.f32 1.0, %v2155
        %v2157 = vrcp.pop %v2027
        %v2158 = vmul.f32 %v2027, %v2157
        %v2159 = vsub.f32 1.0, %v2158
        %v2160 = vmul.f32 %v2157, %v2159
        %v2161 = vadd.f32 %v2157, %v2160
        %vm2162 = vweird.f32 %v2027
        %vm2163 = vweird.f32 %v2157
        %vm2164 = vmor %vm2162, %vm2163
        %v2165 = vsel %vm2164, %v2157, %v2161
        %v2166 = vand.u32 2147483647, %v2027
        %vm2167 = vcmp.eq.f32.partialorder %v2166, 8.507059e+37
        %v2168 = vand.u32 %v2027, 2147483648
        %v2169 = vor.u32 1.1754944e-38, %v2168
        %v2170 = vsel %vm2167, %v2169, %v2165
        %v2171 = vmul.f32 1.0, %v2170
        %v2172 = vrcp.pop %v2028
        %v2173 = vmul.f32 %v2028, %v2172
        %v2174 = vsub.f32 1.0, %v2173
        %v2175 = vmul.f32 %v2172, %v2174
        %v2176 = vadd.f32 %v2172, %v2175
        %vm2177 = vweird.f32 %v2028
        %vm2178 = vweird.f32 %v2172
        %vm2179 = vmor %vm2177, %vm2178
        %v2180 = vsel %vm2179, %v2172, %v2176
        %v2181 = vand.u32 2147483647, %v2028
        %vm2182 = vcmp.eq.f32.partialorder %v2181, 8.507059e+37
        %v2183 = vand.u32 %v2028, 2147483648
        %v2184 = vor.u32 1.1754944e-38, %v2183
        %v2185 = vsel %vm2182, %v2184, %v2180
        %v2186 = vmul.f32 1.0, %v2185
        %v2187 = vrcp.pop %v2029
        %v2188 = vmul.f32 %v2029, %v2187
        %v2189 = vsub.f32 1.0, %v2188
        %v2190 = vmul.f32 %v2187, %v2189
        %v2191 = vadd.f32 %v2187, %v2190
        %vm2192 = vweird.f32 %v2029
        %vm2193 = vweird.f32 %v2187
        %vm2194 = vmor %vm2192, %vm2193
        %v2195 = vsel %vm2194, %v2187, %v2191
        %v2196 = vand.u32 2147483647, %v2029
        %vm2197 = vcmp.eq.f32.partialorder %v2196, 8.507059e+37
        %v2198 = vand.u32 %v2029, 2147483648
        %v2199 = vor.u32 1.1754944e-38, %v2198
        %v2200 = vsel %vm2197, %v2199, %v2195
        %v2201 = vmul.f32 1.0, %v2200
        %v2202 = vrcp.pop %v2030
        %v2203 = vmul.f32 %v2030, %v2202
        %v2204 = vsub.f32 1.0, %v2203
        %v2205 = vmul.f32 %v2202, %v2204
        %v2206 = vadd.f32 %v2202, %v2205
        %vm2207 = vweird.f32 %v2030
        %vm2208 = vweird.f32 %v2202
        %vm2209 = vmor %vm2207, %vm2208
        %v2210 = vsel %vm2209, %v2202, %v2206
        %v2211 = vand.u32 2147483647, %v2030
        %vm2212 = vcmp.eq.f32.partialorder %v2211, 8.507059e+37
        %v2213 = vand.u32 %v2030, 2147483648
        %v2214 = vor.u32 1.1754944e-38, %v2213
        %v2215 = vsel %vm2212, %v2214, %v2210
        %v2216 = vmul.f32 1.0, %v2215
        %v2217 = vrcp.pop %v2031
        %v2218 = vmul.f32 %v2031, %v2217
        %v2219 = vsub.f32 1.0, %v2218
        %v2220 = vmul.f32 %v2217, %v2219
        %v2221 = vadd.f32 %v2217, %v2220
        %vm2222 = vweird.f32 %v2031
        %vm2223 = vweird.f32 %v2217
        %vm2224 = vmor %vm2222, %vm2223
        %v2225 = vsel %vm2224, %v2217, %v2221
        %v2226 = vand.u32 2147483647, %v2031
        %vm2227 = vcmp.eq.f32.partialorder %v2226, 8.507059e+37
        %v2228 = vand.u32 %v2031, 2147483648
        %v2229 = vor.u32 1.1754944e-38, %v2228
        %v2230 = vsel %vm2227, %v2229, %v2225
        %v2231 = vmul.f32 1.0, %v2230
        %v2232 = vrcp.pop %v2032
        %v2233 = vmul.f32 %v2032, %v2232
        %v2234 = vsub.f32 1.0, %v2233
        %v2235 = vmul.f32 %v2232, %v2234
        %v2236 = vadd.f32 %v2232, %v2235
        %vm2237 = vweird.f32 %v2032
        %vm2238 = vweird.f32 %v2232
        %vm2239 = vmor %vm2237, %vm2238
        %v2240 = vsel %vm2239, %v2232, %v2236
        %v2241 = vand.u32 2147483647, %v2032
        %vm2242 = vcmp.eq.f32.partialorder %v2241, 8.507059e+37
        %v2243 = vand.u32 %v2032, 2147483648
        %v2244 = vor.u32 1.1754944e-38, %v2243
        %v2245 = vsel %vm2242, %v2244, %v2240
        %v2246 = vmul.f32 1.0, %v2245
        %v2247 = vrcp.pop %v2033
        %v2248 = vmul.f32 %v2033, %v2247
        %v2249 = vsub.f32 1.0, %v2248
        %v2250 = vmul.f32 %v2247, %v2249
        %v2251 = vadd.f32 %v2247, %v2250
        %vm2252 = vweird.f32 %v2033
        %vm2253 = vweird.f32 %v2247
        %vm2254 = vmor %vm2252, %vm2253
        %v2255 = vsel %vm2254, %v2247, %v2251
        %v2256 = vand.u32 2147483647, %v2033
        %vm2257 = vcmp.eq.f32.partialorder %v2256, 8.507059e+37
        %v2258 = vand.u32 %v2033, 2147483648
        %v2259 = vor.u32 1.1754944e-38, %v2258
        %v2260 = vsel %vm2257, %v2259, %v2255
        %v2261 = vmul.f32 1.0, %v2260
        %v2262 = vrcp.pop %v2034
        %v2263 = vmul.f32 %v2034, %v2262
        %v2264 = vsub.f32 1.0, %v2263
        %v2265 = vmul.f32 %v2262, %v2264
        %v2266 = vadd.f32 %v2262, %v2265
        %vm2267 = vweird.f32 %v2034
        %vm2268 = vweird.f32 %v2262
        %vm2269 = vmor %vm2267, %vm2268
        %v2270 = vsel %vm2269, %v2262, %v2266
        %v2271 = vand.u32 2147483647, %v2034
        %vm2272 = vcmp.eq.f32.partialorder %v2271, 8.507059e+37
        %v2273 = vand.u32 %v2034, 2147483648
        %v2274 = vor.u32 1.1754944e-38, %v2273
        %v2275 = vsel %vm2272, %v2274, %v2270
        %v2276 = vmul.f32 1.0, %v2275
        %v2277 = vrcp.pop %v2035
        %v2278 = vmul.f32 %v2035, %v2277
        %v2279 = vsub.f32 1.0, %v2278
        %v2280 = vmul.f32 %v2277, %v2279
        %v2281 = vadd.f32 %v2277, %v2280
        %vm2282 = vweird.f32 %v2035
        %vm2283 = vweird.f32 %v2277
        %vm2284 = vmor %vm2282, %vm2283
        %v2285 = vsel %vm2284, %v2277, %v2281
        %v2286 = vand.u32 2147483647, %v2035
        %vm2287 = vcmp.eq.f32.partialorder %v2286, 8.507059e+37
        %v2288 = vand.u32 %v2035, 2147483648
        %v2289 = vor.u32 1.1754944e-38, %v2288
        %v2290 = vsel %vm2287, %v2289, %v2285
        %v2291 = vmul.f32 1.0, %v2290
        %v2292 = vrcp.pop %v2036
        %v2293 = vmul.f32 %v2036, %v2292
        %v2294 = vsub.f32 1.0, %v2293
        %v2295 = vmul.f32 %v2292, %v2294
        %v2296 = vadd.f32 %v2292, %v2295
        %vm2297 = vweird.f32 %v2036
        %vm2298 = vweird.f32 %v2292
        %vm2299 = vmor %vm2297, %vm2298
        %v2300 = vsel %vm2299, %v2292, %v2296
        %v2301 = vand.u32 2147483647, %v2036
        %vm2302 = vcmp.eq.f32.partialorder %v2301, 8.507059e+37
        %v2303 = vand.u32 %v2036, 2147483648
        %v2304 = vor.u32 1.1754944e-38, %v2303
        %v2305 = vsel %vm2302, %v2304, %v2300
        %v2306 = vmul.f32 1.0, %v2305
        %v2307 = vrcp.pop %v2037
        %v2308 = vmul.f32 %v2037, %v2307
        %v2309 = vsub.f32 1.0, %v2308
        %v2310 = vmul.f32 %v2307, %v2309
        %v2311 = vadd.f32 %v2307, %v2310
        %vm2312 = vweird.f32 %v2037
        %vm2313 = vweird.f32 %v2307
        %vm2314 = vmor %vm2312, %vm2313
        %v2315 = vsel %vm2314, %v2307, %v2311
        %v2316 = vand.u32 2147483647, %v2037
        %vm2317 = vcmp.eq.f32.partialorder %v2316, 8.507059e+37
        %v2318 = vand.u32 %v2037, 2147483648
        %v2319 = vor.u32 1.1754944e-38, %v2318
        %v2320 = vsel %vm2317, %v2319, %v2315
        %v2321 = vmul.f32 1.0, %v2320
        %v2322 = vrcp.pop %v2038
        %v2323 = vmul.f32 %v2038, %v2322
        %v2324 = vsub.f32 1.0, %v2323
        %v2325 = vmul.f32 %v2322, %v2324
        %v2326 = vadd.f32 %v2322, %v2325
        %vm2327 = vweird.f32 %v2038
        %vm2328 = vweird.f32 %v2322
        %vm2329 = vmor %vm2327, %vm2328
        %v2330 = vsel %vm2329, %v2322, %v2326
        %v2331 = vand.u32 2147483647, %v2038
        %vm2332 = vcmp.eq.f32.partialorder %v2331, 8.507059e+37
        %v2333 = vand.u32 %v2038, 2147483648
        %v2334 = vor.u32 1.1754944e-38, %v2333
        %v2335 = vsel %vm2332, %v2334, %v2330
        %v2336 = vmul.f32 1.0, %v2335
        %v2337 = vrcp.pop %v2039
        %v2338 = vmul.f32 %v2039, %v2337
        %v2339 = vsub.f32 1.0, %v2338
        %v2340 = vmul.f32 %v2337, %v2339
        %v2341 = vadd.f32 %v2337, %v2340
        %vm2342 = vweird.f32 %v2039
        %vm2343 = vweird.f32 %v2337
        %vm2344 = vmor %vm2342, %vm2343
        %v2345 = vsel %vm2344, %v2337, %v2341
        %v2346 = vand.u32 2147483647, %v2039
        %vm2347 = vcmp.eq.f32.partialorder %v2346, 8.507059e+37
        %v2348 = vand.u32 %v2039, 2147483648
        %v2349 = vor.u32 1.1754944e-38, %v2348
        %v2350 = vsel %vm2347, %v2349, %v2345
        %v2351 = vmul.f32 1.0, %v2350
        %v2352 = vrcp.pop %v2040
        %v2353 = vmul.f32 %v2040, %v2352
        %v2354 = vsub.f32 1.0, %v2353
        %v2355 = vmul.f32 %v2352, %v2354
        %v2356 = vadd.f32 %v2352, %v2355
        %vm2357 = vweird.f32 %v2040
        %vm2358 = vweird.f32 %v2352
        %vm2359 = vmor %vm2357, %vm2358
        %v2360 = vsel %vm2359, %v2352, %v2356
        %v2361 = vand.u32 2147483647, %v2040
        %vm2362 = vcmp.eq.f32.partialorder %v2361, 8.507059e+37
        %v2363 = vand.u32 %v2040, 2147483648
        %v2364 = vor.u32 1.1754944e-38, %v2363
        %v2365 = vsel %vm2362, %v2364, %v2360
        %v2366 = vmul.f32 1.0, %v2365
        %v2367 = vrcp.pop %v2041
        %v2368 = vmul.f32 %v2041, %v2367
        %v2369 = vsub.f32 1.0, %v2368
        %v2370 = vmul.f32 %v2367, %v2369
        %v2371 = vadd.f32 %v2367, %v2370
        %vm2372 = vweird.f32 %v2041
        %vm2373 = vweird.f32 %v2367
        %vm2374 = vmor %vm2372, %vm2373
        %v2375 = vsel %vm2374, %v2367, %v2371
        %v2376 = vand.u32 2147483647, %v2041
        %vm2377 = vcmp.eq.f32.partialorder %v2376, 8.507059e+37
        %v2378 = vand.u32 %v2041, 2147483648
        %v2379 = vor.u32 1.1754944e-38, %v2378
        %v2380 = vsel %vm2377, %v2379, %v2375
        %v2381 = vmul.f32 1.0, %v2380
        %v2382 = vrcp.pop %v2042
        %v2383 = vmul.f32 %v2042, %v2382
        %v2384 = vsub.f32 1.0, %v2383
        %v2385 = vmul.f32 %v2382, %v2384
        %v2386 = vadd.f32 %v2382, %v2385
        %vm2387 = vweird.f32 %v2042
        %vm2388 = vweird.f32 %v2382
        %vm2389 = vmor %vm2387, %vm2388
        %v2390 = vsel %vm2389, %v2382, %v2386
        %v2391 = vand.u32 2147483647, %v2042
        %vm2392 = vcmp.eq.f32.partialorder %v2391, 8.507059e+37
        %v2393 = vand.u32 %v2042, 2147483648
        %v2394 = vor.u32 1.1754944e-38, %v2393
        %v2395 = vsel %vm2392, %v2394, %v2390
        %v2396 = vmul.f32 1.0, %v2395
        %v2397 = vrcp.pop %v2043
        %v2398 = vmul.f32 %v2043, %v2397
        %v2399 = vsub.f32 1.0, %v2398
        %v2400 = vmul.f32 %v2397, %v2399
        %v2401 = vadd.f32 %v2397, %v2400
        %vm2402 = vweird.f32 %v2043
        %vm2403 = vweird.f32 %v2397
        %vm2404 = vmor %vm2402, %vm2403
        %v2405 = vsel %vm2404, %v2397, %v2401
        %v2406 = vand.u32 2147483647, %v2043
        %vm2407 = vcmp.eq.f32.partialorder %v2406, 8.507059e+37
        %v2408 = vand.u32 %v2043, 2147483648
        %v2409 = vor.u32 1.1754944e-38, %v2408
        %v2410 = vsel %vm2407, %v2409, %v2405
        %v2411 = vmul.f32 1.0, %v2410
        %v2412 = vrcp.pop %v2044
        %v2413 = vmul.f32 %v2044, %v2412
        %v2414 = vsub.f32 1.0, %v2413
        %v2415 = vmul.f32 %v2412, %v2414
        %v2416 = vadd.f32 %v2412, %v2415
        %vm2417 = vweird.f32 %v2044
        %vm2418 = vweird.f32 %v2412
        %vm2419 = vmor %vm2417, %vm2418
        %v2420 = vsel %vm2419, %v2412, %v2416
        %v2421 = vand.u32 2147483647, %v2044
        %vm2422 = vcmp.eq.f32.partialorder %v2421, 8.507059e+37
        %v2423 = vand.u32 %v2044, 2147483648
        %v2424 = vor.u32 1.1754944e-38, %v2423
        %v2425 = vsel %vm2422, %v2424, %v2420
        %v2426 = vmul.f32 1.0, %v2425
        %v2427 = vrcp.pop %v2045
        %v2428 = vmul.f32 %v2045, %v2427
        %v2429 = vsub.f32 1.0, %v2428
        %v2430 = vmul.f32 %v2427, %v2429
        %v2431 = vadd.f32 %v2427, %v2430
        %vm2432 = vweird.f32 %v2045
        %vm2433 = vweird.f32 %v2427
        %vm2434 = vmor %vm2432, %vm2433
        %v2435 = vsel %vm2434, %v2427, %v2431
        %v2436 = vand.u32 2147483647, %v2045
        %vm2437 = vcmp.eq.f32.partialorder %v2436, 8.507059e+37
        %v2438 = vand.u32 %v2045, 2147483648
        %v2439 = vor.u32 1.1754944e-38, %v2438
        %v2440 = vsel %vm2437, %v2439, %v2435
        %v2441 = vmul.f32 1.0, %v2440
        %v2442 = vrcp.pop %v2046
        %v2443 = vmul.f32 %v2046, %v2442
        %v2444 = vsub.f32 1.0, %v2443
        %v2445 = vmul.f32 %v2442, %v2444
        %v2446 = vadd.f32 %v2442, %v2445
        %vm2447 = vweird.f32 %v2046
        %vm2448 = vweird.f32 %v2442
        %vm2449 = vmor %vm2447, %vm2448
        %v2450 = vsel %vm2449, %v2442, %v2446
        %v2451 = vand.u32 2147483647, %v2046
        %vm2452 = vcmp.eq.f32.partialorder %v2451, 8.507059e+37
        %v2453 = vand.u32 %v2046, 2147483648
        %v2454 = vor.u32 1.1754944e-38, %v2453
        %v2455 = vsel %vm2452, %v2454, %v2450
        %v2456 = vmul.f32 1.0, %v2455
        %v2457 = vrcp.pop %v2047
        %v2458 = vmul.f32 %v2047, %v2457
        %v2459 = vsub.f32 1.0, %v2458
        %v2460 = vmul.f32 %v2457, %v2459
        %v2461 = vadd.f32 %v2457, %v2460
        %vm2462 = vweird.f32 %v2047
        %vm2463 = vweird.f32 %v2457
        %vm2464 = vmor %vm2462, %vm2463
        %v2465 = vsel %vm2464, %v2457, %v2461
        %v2466 = vand.u32 2147483647, %v2047
        %vm2467 = vcmp.eq.f32.partialorder %v2466, 8.507059e+37
        %v2468 = vand.u32 %v2047, 2147483648
        %v2469 = vor.u32 1.1754944e-38, %v2468
        %v2470 = vsel %vm2467, %v2469, %v2465
        %v2471 = vmul.f32 1.0, %v2470
        %v2472 = vrcp.pop %v2048
        %v2473 = vmul.f32 %v2048, %v2472
        %v2474 = vsub.f32 1.0, %v2473
        %v2475 = vmul.f32 %v2472, %v2474
        %v2476 = vadd.f32 %v2472, %v2475
        %vm2477 = vweird.f32 %v2048
        %vm2478 = vweird.f32 %v2472
        %vm2479 = vmor %vm2477, %vm2478
        %v2480 = vsel %vm2479, %v2472, %v2476
        %v2481 = vand.u32 2147483647, %v2048
        %vm2482 = vcmp.eq.f32.partialorder %v2481, 8.507059e+37
        %v2483 = vand.u32 %v2048, 2147483648
        %v2484 = vor.u32 1.1754944e-38, %v2483
        %v2485 = vsel %vm2482, %v2484, %v2480
        %v2486 = vmul.f32 1.0, %v2485
        %v2487 = vrcp.pop %v2049
        %v2488 = vmul.f32 %v2049, %v2487
        %v2489 = vsub.f32 1.0, %v2488
        %v2490 = vmul.f32 %v2487, %v2489
        %v2491 = vadd.f32 %v2487, %v2490
        %vm2492 = vweird.f32 %v2049
        %vm2493 = vweird.f32 %v2487
        %vm2494 = vmor %vm2492, %vm2493
        %v2495 = vsel %vm2494, %v2487, %v2491
        %v2496 = vand.u32 2147483647, %v2049
        %vm2497 = vcmp.eq.f32.partialorder %v2496, 8.507059e+37
        %v2498 = vand.u32 %v2049, 2147483648
        %v2499 = vor.u32 1.1754944e-38, %v2498
        %v2500 = vsel %vm2497, %v2499, %v2495
        %v2501 = vmul.f32 1.0, %v2500
        %v2502 = vrcp.pop %v2050
        %v2503 = vmul.f32 %v2050, %v2502
        %v2504 = vsub.f32 1.0, %v2503
        %v2505 = vmul.f32 %v2502, %v2504
        %v2506 = vadd.f32 %v2502, %v2505
        %vm2507 = vweird.f32 %v2050
        %vm2508 = vweird.f32 %v2502
        %vm2509 = vmor %vm2507, %vm2508
        %v2510 = vsel %vm2509, %v2502, %v2506
        %v2511 = vand.u32 2147483647, %v2050
        %vm2512 = vcmp.eq.f32.partialorder %v2511, 8.507059e+37
        %v2513 = vand.u32 %v2050, 2147483648
        %v2514 = vor.u32 1.1754944e-38, %v2513
        %v2515 = vsel %vm2512, %v2514, %v2510
        %v2516 = vmul.f32 1.0, %v2515
        %v2517 = vrcp.pop %v2051
        %v2518 = vmul.f32 %v2051, %v2517
        %v2519 = vsub.f32 1.0, %v2518
        %v2520 = vmul.f32 %v2517, %v2519
        %v2521 = vadd.f32 %v2517, %v2520
        %vm2522 = vweird.f32 %v2051
        %vm2523 = vweird.f32 %v2517
        %vm2524 = vmor %vm2522, %vm2523
        %v2525 = vsel %vm2524, %v2517, %v2521
        %v2526 = vand.u32 2147483647, %v2051
        %vm2527 = vcmp.eq.f32.partialorder %v2526, 8.507059e+37
        %v2528 = vand.u32 %v2051, 2147483648
        %v2529 = vor.u32 1.1754944e-38, %v2528
        %v2530 = vsel %vm2527, %v2529, %v2525
        %v2531 = vmul.f32 1.0, %v2530
        %s2532 = scalar_lea.vmem %s2, 256
        %v2533 = vld [vmem:[%s2532] sm:$0xff]
        %v2534 = vld [vmem:[%s2532 + $0x8] sm:$0xff]
        %v2535 = vld [vmem:[%s2532 + $0x10] sm:$0xff]
        %v2536 = vld [vmem:[%s2532 + $0x18] sm:$0xff]
        %v2537 = vld [vmem:[%s2532 + $0x20] sm:$0xff]
        %v2538 = vld [vmem:[%s2532 + $0x28] sm:$0xff]
        %v2539 = vld [vmem:[%s2532 + $0x30] sm:$0xff]
        %v2540 = vld [vmem:[%s2532 + $0x38] sm:$0xff]
        %v2541 = vld [vmem:[%s2532 + $0x40] sm:$0xff]
        %v2542 = vld [vmem:[%s2532 + $0x48] sm:$0xff]
        %v2543 = vld [vmem:[%s2532 + $0x50] sm:$0xff]
        %v2544 = vld [vmem:[%s2532 + $0x58] sm:$0xff]
        %v2545 = vld [vmem:[%s2532 + $0x60] sm:$0xff]
        %v2546 = vld [vmem:[%s2532 + $0x68] sm:$0xff]
        %v2547 = vld [vmem:[%s2532 + $0x70] sm:$0xff]
        %v2548 = vld [vmem:[%s2532 + $0x78] sm:$0xff]
        %v2549 = vld [vmem:[%s3 + $0x3] sm:$0x1]
        %v2550 = vperm.slane %v2549, 0
        %2551 = vmatpush.msra.mxu0 %v2548
        %2552 = vmatpush.msra.mxu0 %v2547
        %2553 = vmatpush.msra.mxu0 %v2546
        %2554 = vmatpush.msra.mxu0 %v2545
        %2555 = vmatpush.msra.mxu0 %v2544
        %2556 = vmatpush.msra.mxu0 %v2543
        %2557 = vmatpush.msra.mxu0 %v2542
        %2558 = vmatpush.msra.mxu0 %v2541
        %2559 = vmatpush.msra.mxu0 %v2540
        %2560 = vmatpush.msra.mxu0 %v2539
        %2561 = vmatpush.msra.mxu0 %v2538
        %2562 = vmatpush.msra.mxu0 %v2537
        %2563 = vmatpush.msra.mxu0 %v2536
        %2564 = vmatpush.msra.mxu0 %v2535
        %2565 = vmatpush.msra.mxu0 %v2534
        %2566 = vmatpush.msra.mxu0 %v2533
        %2567 = vmatmul.f32.gmra.mxu0 %v2066
        %v2568 = vpop.f32.mrf.mxu0
        %v2569 = vadd.f32 %v2550, %v2568
        %2570 = vmatmul.f32.gmra.mxu0 %v2081
        %v2571 = vpop.f32.mrf.mxu0
        %v2572 = vadd.f32 %v2550, %v2571
        %2573 = vmatmul.f32.gmra.mxu0 %v2096
        %v2574 = vpop.f32.mrf.mxu0
        %v2575 = vadd.f32 %v2550, %v2574
        %2576 = vmatmul.f32.gmra.mxu0 %v2111
        %v2577 = vpop.f32.mrf.mxu0
        %v2578 = vadd.f32 %v2550, %v2577
        %2579 = vmatmul.f32.gmra.mxu0 %v2126
        %v2580 = vpop.f32.mrf.mxu0
        %v2581 = vadd.f32 %v2550, %v2580
        %2582 = vmatmul.f32.gmra.mxu0 %v2141
        %v2583 = vpop.f32.mrf.mxu0
        %v2584 = vadd.f32 %v2550, %v2583
        %2585 = vmatmul.f32.gmra.mxu0 %v2156
        %v2586 = vpop.f32.mrf.mxu0
        %v2587 = vadd.f32 %v2550, %v2586
        %2588 = vmatmul.f32.gmra.mxu0 %v2171
        %v2589 = vpop.f32.mrf.mxu0
        %v2590 = vadd.f32 %v2550, %v2589
        %2591 = vmatmul.f32.gmra.mxu0 %v2186
        %v2592 = vpop.f32.mrf.mxu0
        %v2593 = vadd.f32 %v2550, %v2592
        %2594 = vmatmul.f32.gmra.mxu0 %v2201
        %v2595 = vpop.f32.mrf.mxu0
        %v2596 = vadd.f32 %v2550, %v2595
        %2597 = vmatmul.f32.gmra.mxu0 %v2216
        %v2598 = vpop.f32.mrf.mxu0
        %v2599 = vadd.f32 %v2550, %v2598
        %2600 = vmatmul.f32.gmra.mxu0 %v2231
        %v2601 = vpop.f32.mrf.mxu0
        %v2602 = vadd.f32 %v2550, %v2601
        %2603 = vmatmul.f32.gmra.mxu0 %v2246
        %v2604 = vpop.f32.mrf.mxu0
        %v2605 = vadd.f32 %v2550, %v2604
        %2606 = vmatmul.f32.gmra.mxu0 %v2261
        %v2607 = vpop.f32.mrf.mxu0
        %v2608 = vadd.f32 %v2550, %v2607
        %2609 = vmatmul.f32.gmra.mxu0 %v2276
        %v2610 = vpop.f32.mrf.mxu0
        %v2611 = vadd.f32 %v2550, %v2610
        %2612 = vmatmul.f32.gmra.mxu0 %v2291
        %v2613 = vpop.f32.mrf.mxu0
        %v2614 = vadd.f32 %v2550, %v2613
        %2615 = vmatmul.f32.gmra.mxu0 %v2306
        %v2616 = vpop.f32.mrf.mxu0
        %v2617 = vadd.f32 %v2550, %v2616
        %2618 = vmatmul.f32.gmra.mxu0 %v2321
        %v2619 = vpop.f32.mrf.mxu0
        %v2620 = vadd.f32 %v2550, %v2619
        %2621 = vmatmul.f32.gmra.mxu0 %v2336
        %v2622 = vpop.f32.mrf.mxu0
        %v2623 = vadd.f32 %v2550, %v2622
        %2624 = vmatmul.f32.gmra.mxu0 %v2351
        %v2625 = vpop.f32.mrf.mxu0
        %v2626 = vadd.f32 %v2550, %v2625
        %2627 = vmatmul.f32.gmra.mxu0 %v2366
        %v2628 = vpop.f32.mrf.mxu0
        %v2629 = vadd.f32 %v2550, %v2628
        %2630 = vmatmul.f32.gmra.mxu0 %v2381
        %v2631 = vpop.f32.mrf.mxu0
        %v2632 = vadd.f32 %v2550, %v2631
        %2633 = vmatmul.f32.gmra.mxu0 %v2396
        %v2634 = vpop.f32.mrf.mxu0
        %v2635 = vadd.f32 %v2550, %v2634
        %2636 = vmatmul.f32.gmra.mxu0 %v2411
        %v2637 = vpop.f32.mrf.mxu0
        %v2638 = vadd.f32 %v2550, %v2637
        %2639 = vmatmul.f32.gmra.mxu0 %v2426
        %v2640 = vpop.f32.mrf.mxu0
        %v2641 = vadd.f32 %v2550, %v2640
        %2642 = vmatmul.f32.gmra.mxu0 %v2441
        %v2643 = vpop.f32.mrf.mxu0
        %v2644 = vadd.f32 %v2550, %v2643
        %2645 = vmatmul.f32.gmra.mxu0 %v2456
        %v2646 = vpop.f32.mrf.mxu0
        %v2647 = vadd.f32 %v2550, %v2646
        %2648 = vmatmul.f32.gmra.mxu0 %v2471
        %v2649 = vpop.f32.mrf.mxu0
        %v2650 = vadd.f32 %v2550, %v2649
        %2651 = vmatmul.f32.gmra.mxu0 %v2486
        %v2652 = vpop.f32.mrf.mxu0
        %v2653 = vadd.f32 %v2550, %v2652
        %2654 = vmatmul.f32.gmra.mxu0 %v2501
        %v2655 = vpop.f32.mrf.mxu0
        %v2656 = vadd.f32 %v2550, %v2655
        %2657 = vmatmul.f32.gmra.mxu0 %v2516
        %v2658 = vpop.f32.mrf.mxu0
        %v2659 = vadd.f32 %v2550, %v2658
        %2660 = vmatmul.f32.gmra.mxu0 %v2531
        %v2661 = vpop.f32.mrf.mxu0
        %v2662 = vadd.f32 %v2550, %v2661
        %2663 = vdwg.mxu0
        %v2664 = vxor.u32 %v2569, 2147483648
        %v2665 = vxor.u32 %v2572, 2147483648
        %v2666 = vxor.u32 %v2575, 2147483648
        %v2667 = vxor.u32 %v2578, 2147483648
        %v2668 = vxor.u32 %v2581, 2147483648
        %v2669 = vxor.u32 %v2584, 2147483648
        %v2670 = vxor.u32 %v2587, 2147483648
        %v2671 = vxor.u32 %v2590, 2147483648
        %v2672 = vxor.u32 %v2593, 2147483648
        %v2673 = vxor.u32 %v2596, 2147483648
        %v2674 = vxor.u32 %v2599, 2147483648
        %v2675 = vxor.u32 %v2602, 2147483648
        %v2676 = vxor.u32 %v2605, 2147483648
        %v2677 = vxor.u32 %v2608, 2147483648
        %v2678 = vxor.u32 %v2611, 2147483648
        %v2679 = vxor.u32 %v2614, 2147483648
        %v2680 = vxor.u32 %v2617, 2147483648
        %v2681 = vxor.u32 %v2620, 2147483648
        %v2682 = vxor.u32 %v2623, 2147483648
        %v2683 = vxor.u32 %v2626, 2147483648
        %v2684 = vxor.u32 %v2629, 2147483648
        %v2685 = vxor.u32 %v2632, 2147483648
        %v2686 = vxor.u32 %v2635, 2147483648
        %v2687 = vxor.u32 %v2638, 2147483648
        %v2688 = vxor.u32 %v2641, 2147483648
        %v2689 = vxor.u32 %v2644, 2147483648
        %v2690 = vxor.u32 %v2647, 2147483648
        %v2691 = vxor.u32 %v2650, 2147483648
        %v2692 = vxor.u32 %v2653, 2147483648
        %v2693 = vxor.u32 %v2656, 2147483648
        %v2694 = vxor.u32 %v2659, 2147483648
        %v2695 = vxor.u32 %v2662, 2147483648
        %v2696 = vmul.f32 %v2664, 1.442695
        %v2697 = vpow.pop %v2696
        %v2698 = vmul.f32 %v2665, 1.442695
        %v2699 = vpow.pop %v2698
        %v2700 = vmul.f32 %v2666, 1.442695
        %v2701 = vpow.pop %v2700
        %v2702 = vmul.f32 %v2667, 1.442695
        %v2703 = vpow.pop %v2702
        %v2704 = vmul.f32 %v2668, 1.442695
        %v2705 = vpow.pop %v2704
        %v2706 = vmul.f32 %v2669, 1.442695
        %v2707 = vpow.pop %v2706
        %v2708 = vmul.f32 %v2670, 1.442695
        %v2709 = vpow.pop %v2708
        %v2710 = vmul.f32 %v2671, 1.442695
        %v2711 = vpow.pop %v2710
        %v2712 = vmul.f32 %v2672, 1.442695
        %v2713 = vpow.pop %v2712
        %v2714 = vmul.f32 %v2673, 1.442695
        %v2715 = vpow.pop %v2714
        %v2716 = vmul.f32 %v2674, 1.442695
        %v2717 = vpow.pop %v2716
        %v2718 = vmul.f32 %v2675, 1.442695
        %v2719 = vpow.pop %v2718
        %v2720 = vmul.f32 %v2676, 1.442695
        %v2721 = vpow.pop %v2720
        %v2722 = vmul.f32 %v2677, 1.442695
        %v2723 = vpow.pop %v2722
        %v2724 = vmul.f32 %v2678, 1.442695
        %v2725 = vpow.pop %v2724
        %v2726 = vmul.f32 %v2679, 1.442695
        %v2727 = vpow.pop %v2726
        %v2728 = vmul.f32 %v2680, 1.442695
        %v2729 = vpow.pop %v2728
        %v2730 = vmul.f32 %v2681, 1.442695
        %v2731 = vpow.pop %v2730
        %v2732 = vmul.f32 %v2682, 1.442695
        %v2733 = vpow.pop %v2732
        %v2734 = vmul.f32 %v2683, 1.442695
        %v2735 = vpow.pop %v2734
        %v2736 = vmul.f32 %v2684, 1.442695
        %v2737 = vpow.pop %v2736
        %v2738 = vmul.f32 %v2685, 1.442695
        %v2739 = vpow.pop %v2738
        %v2740 = vmul.f32 %v2686, 1.442695
        %v2741 = vpow.pop %v2740
        %v2742 = vmul.f32 %v2687, 1.442695
        %v2743 = vpow.pop %v2742
        %v2744 = vmul.f32 %v2688, 1.442695
        %v2745 = vpow.pop %v2744
        %v2746 = vmul.f32 %v2689, 1.442695
        %v2747 = vpow.pop %v2746
        %v2748 = vmul.f32 %v2690, 1.442695
        %v2749 = vpow.pop %v2748
        %v2750 = vmul.f32 %v2691, 1.442695
        %v2751 = vpow.pop %v2750
        %v2752 = vmul.f32 %v2692, 1.442695
        %v2753 = vpow.pop %v2752
        %v2754 = vmul.f32 %v2693, 1.442695
        %v2755 = vpow.pop %v2754
        %v2756 = vmul.f32 %v2694, 1.442695
        %v2757 = vpow.pop %v2756
        %v2758 = vmul.f32 %v2695, 1.442695
        %v2759 = vpow.pop %v2758
        %v2760 = vadd.f32 %v2697, 1.0
        %v2761 = vadd.f32 %v2699, 1.0
        %v2762 = vadd.f32 %v2701, 1.0
        %v2763 = vadd.f32 %v2703, 1.0
        %v2764 = vadd.f32 %v2705, 1.0
        %v2765 = vadd.f32 %v2707, 1.0
        %v2766 = vadd.f32 %v2709, 1.0
        %v2767 = vadd.f32 %v2711, 1.0
        %v2768 = vadd.f32 %v2713, 1.0
        %v2769 = vadd.f32 %v2715, 1.0
        %v2770 = vadd.f32 %v2717, 1.0
        %v2771 = vadd.f32 %v2719, 1.0
        %v2772 = vadd.f32 %v2721, 1.0
        %v2773 = vadd.f32 %v2723, 1.0
        %v2774 = vadd.f32 %v2725, 1.0
        %v2775 = vadd.f32 %v2727, 1.0
        %v2776 = vadd.f32 %v2729, 1.0
        %v2777 = vadd.f32 %v2731, 1.0
        %v2778 = vadd.f32 %v2733, 1.0
        %v2779 = vadd.f32 %v2735, 1.0
        %v2780 = vadd.f32 %v2737, 1.0
        %v2781 = vadd.f32 %v2739, 1.0
        %v2782 = vadd.f32 %v2741, 1.0
        %v2783 = vadd.f32 %v2743, 1.0
        %v2784 = vadd.f32 %v2745, 1.0
        %v2785 = vadd.f32 %v2747, 1.0
        %v2786 = vadd.f32 %v2749, 1.0
        %v2787 = vadd.f32 %v2751, 1.0
        %v2788 = vadd.f32 %v2753, 1.0
        %v2789 = vadd.f32 %v2755, 1.0
        %v2790 = vadd.f32 %v2757, 1.0
        %v2791 = vadd.f32 %v2759, 1.0
        %v2792 = vrcp.pop %v2760
        %v2793 = vmul.f32 %v2760, %v2792
        %v2794 = vsub.f32 1.0, %v2793
        %v2795 = vmul.f32 %v2792, %v2794
        %v2796 = vadd.f32 %v2792, %v2795
        %vm2797 = vweird.f32 %v2760
        %vm2798 = vweird.f32 %v2792
        %vm2799 = vmor %vm2797, %vm2798
        %v2800 = vsel %vm2799, %v2792, %v2796
        %v2801 = vand.u32 2147483647, %v2760
        %vm2802 = vcmp.eq.f32.partialorder %v2801, 8.507059e+37
        %v2803 = vand.u32 %v2760, 2147483648
        %v2804 = vor.u32 1.1754944e-38, %v2803
        %v2805 = vsel %vm2802, %v2804, %v2800
        %v2806 = vmul.f32 1.0, %v2805
        %v2807 = vrcp.pop %v2761
        %v2808 = vmul.f32 %v2761, %v2807
        %v2809 = vsub.f32 1.0, %v2808
        %v2810 = vmul.f32 %v2807, %v2809
        %v2811 = vadd.f32 %v2807, %v2810
        %vm2812 = vweird.f32 %v2761
        %vm2813 = vweird.f32 %v2807
        %vm2814 = vmor %vm2812, %vm2813
        %v2815 = vsel %vm2814, %v2807, %v2811
        %v2816 = vand.u32 2147483647, %v2761
        %vm2817 = vcmp.eq.f32.partialorder %v2816, 8.507059e+37
        %v2818 = vand.u32 %v2761, 2147483648
        %v2819 = vor.u32 1.1754944e-38, %v2818
        %v2820 = vsel %vm2817, %v2819, %v2815
        %v2821 = vmul.f32 1.0, %v2820
        %v2822 = vrcp.pop %v2762
        %v2823 = vmul.f32 %v2762, %v2822
        %v2824 = vsub.f32 1.0, %v2823
        %v2825 = vmul.f32 %v2822, %v2824
        %v2826 = vadd.f32 %v2822, %v2825
        %vm2827 = vweird.f32 %v2762
        %vm2828 = vweird.f32 %v2822
        %vm2829 = vmor %vm2827, %vm2828
        %v2830 = vsel %vm2829, %v2822, %v2826
        %v2831 = vand.u32 2147483647, %v2762
        %vm2832 = vcmp.eq.f32.partialorder %v2831, 8.507059e+37
        %v2833 = vand.u32 %v2762, 2147483648
        %v2834 = vor.u32 1.1754944e-38, %v2833
        %v2835 = vsel %vm2832, %v2834, %v2830
        %v2836 = vmul.f32 1.0, %v2835
        %v2837 = vrcp.pop %v2763
        %v2838 = vmul.f32 %v2763, %v2837
        %v2839 = vsub.f32 1.0, %v2838
        %v2840 = vmul.f32 %v2837, %v2839
        %v2841 = vadd.f32 %v2837, %v2840
        %vm2842 = vweird.f32 %v2763
        %vm2843 = vweird.f32 %v2837
        %vm2844 = vmor %vm2842, %vm2843
        %v2845 = vsel %vm2844, %v2837, %v2841
        %v2846 = vand.u32 2147483647, %v2763
        %vm2847 = vcmp.eq.f32.partialorder %v2846, 8.507059e+37
        %v2848 = vand.u32 %v2763, 2147483648
        %v2849 = vor.u32 1.1754944e-38, %v2848
        %v2850 = vsel %vm2847, %v2849, %v2845
        %v2851 = vmul.f32 1.0, %v2850
        %v2852 = vrcp.pop %v2764
        %v2853 = vmul.f32 %v2764, %v2852
        %v2854 = vsub.f32 1.0, %v2853
        %v2855 = vmul.f32 %v2852, %v2854
        %v2856 = vadd.f32 %v2852, %v2855
        %vm2857 = vweird.f32 %v2764
        %vm2858 = vweird.f32 %v2852
        %vm2859 = vmor %vm2857, %vm2858
        %v2860 = vsel %vm2859, %v2852, %v2856
        %v2861 = vand.u32 2147483647, %v2764
        %vm2862 = vcmp.eq.f32.partialorder %v2861, 8.507059e+37
        %v2863 = vand.u32 %v2764, 2147483648
        %v2864 = vor.u32 1.1754944e-38, %v2863
        %v2865 = vsel %vm2862, %v2864, %v2860
        %v2866 = vmul.f32 1.0, %v2865
        %v2867 = vrcp.pop %v2765
        %v2868 = vmul.f32 %v2765, %v2867
        %v2869 = vsub.f32 1.0, %v2868
        %v2870 = vmul.f32 %v2867, %v2869
        %v2871 = vadd.f32 %v2867, %v2870
        %vm2872 = vweird.f32 %v2765
        %vm2873 = vweird.f32 %v2867
        %vm2874 = vmor %vm2872, %vm2873
        %v2875 = vsel %vm2874, %v2867, %v2871
        %v2876 = vand.u32 2147483647, %v2765
        %vm2877 = vcmp.eq.f32.partialorder %v2876, 8.507059e+37
        %v2878 = vand.u32 %v2765, 2147483648
        %v2879 = vor.u32 1.1754944e-38, %v2878
        %v2880 = vsel %vm2877, %v2879, %v2875
        %v2881 = vmul.f32 1.0, %v2880
        %v2882 = vrcp.pop %v2766
        %v2883 = vmul.f32 %v2766, %v2882
        %v2884 = vsub.f32 1.0, %v2883
        %v2885 = vmul.f32 %v2882, %v2884
        %v2886 = vadd.f32 %v2882, %v2885
        %vm2887 = vweird.f32 %v2766
        %vm2888 = vweird.f32 %v2882
        %vm2889 = vmor %vm2887, %vm2888
        %v2890 = vsel %vm2889, %v2882, %v2886
        %v2891 = vand.u32 2147483647, %v2766
        %vm2892 = vcmp.eq.f32.partialorder %v2891, 8.507059e+37
        %v2893 = vand.u32 %v2766, 2147483648
        %v2894 = vor.u32 1.1754944e-38, %v2893
        %v2895 = vsel %vm2892, %v2894, %v2890
        %v2896 = vmul.f32 1.0, %v2895
        %v2897 = vrcp.pop %v2767
        %v2898 = vmul.f32 %v2767, %v2897
        %v2899 = vsub.f32 1.0, %v2898
        %v2900 = vmul.f32 %v2897, %v2899
        %v2901 = vadd.f32 %v2897, %v2900
        %vm2902 = vweird.f32 %v2767
        %vm2903 = vweird.f32 %v2897
        %vm2904 = vmor %vm2902, %vm2903
        %v2905 = vsel %vm2904, %v2897, %v2901
        %v2906 = vand.u32 2147483647, %v2767
        %vm2907 = vcmp.eq.f32.partialorder %v2906, 8.507059e+37
        %v2908 = vand.u32 %v2767, 2147483648
        %v2909 = vor.u32 1.1754944e-38, %v2908
        %v2910 = vsel %vm2907, %v2909, %v2905
        %v2911 = vmul.f32 1.0, %v2910
        %v2912 = vrcp.pop %v2768
        %v2913 = vmul.f32 %v2768, %v2912
        %v2914 = vsub.f32 1.0, %v2913
        %v2915 = vmul.f32 %v2912, %v2914
        %v2916 = vadd.f32 %v2912, %v2915
        %vm2917 = vweird.f32 %v2768
        %vm2918 = vweird.f32 %v2912
        %vm2919 = vmor %vm2917, %vm2918
        %v2920 = vsel %vm2919, %v2912, %v2916
        %v2921 = vand.u32 2147483647, %v2768
        %vm2922 = vcmp.eq.f32.partialorder %v2921, 8.507059e+37
        %v2923 = vand.u32 %v2768, 2147483648
        %v2924 = vor.u32 1.1754944e-38, %v2923
        %v2925 = vsel %vm2922, %v2924, %v2920
        %v2926 = vmul.f32 1.0, %v2925
        %v2927 = vrcp.pop %v2769
        %v2928 = vmul.f32 %v2769, %v2927
        %v2929 = vsub.f32 1.0, %v2928
        %v2930 = vmul.f32 %v2927, %v2929
        %v2931 = vadd.f32 %v2927, %v2930
        %vm2932 = vweird.f32 %v2769
        %vm2933 = vweird.f32 %v2927
        %vm2934 = vmor %vm2932, %vm2933
        %v2935 = vsel %vm2934, %v2927, %v2931
        %v2936 = vand.u32 2147483647, %v2769
        %vm2937 = vcmp.eq.f32.partialorder %v2936, 8.507059e+37
        %v2938 = vand.u32 %v2769, 2147483648
        %v2939 = vor.u32 1.1754944e-38, %v2938
        %v2940 = vsel %vm2937, %v2939, %v2935
        %v2941 = vmul.f32 1.0, %v2940
        %v2942 = vrcp.pop %v2770
        %v2943 = vmul.f32 %v2770, %v2942
        %v2944 = vsub.f32 1.0, %v2943
        %v2945 = vmul.f32 %v2942, %v2944
        %v2946 = vadd.f32 %v2942, %v2945
        %vm2947 = vweird.f32 %v2770
        %vm2948 = vweird.f32 %v2942
        %vm2949 = vmor %vm2947, %vm2948
        %v2950 = vsel %vm2949, %v2942, %v2946
        %v2951 = vand.u32 2147483647, %v2770
        %vm2952 = vcmp.eq.f32.partialorder %v2951, 8.507059e+37
        %v2953 = vand.u32 %v2770, 2147483648
        %v2954 = vor.u32 1.1754944e-38, %v2953
        %v2955 = vsel %vm2952, %v2954, %v2950
        %v2956 = vmul.f32 1.0, %v2955
        %v2957 = vrcp.pop %v2771
        %v2958 = vmul.f32 %v2771, %v2957
        %v2959 = vsub.f32 1.0, %v2958
        %v2960 = vmul.f32 %v2957, %v2959
        %v2961 = vadd.f32 %v2957, %v2960
        %vm2962 = vweird.f32 %v2771
        %vm2963 = vweird.f32 %v2957
        %vm2964 = vmor %vm2962, %vm2963
        %v2965 = vsel %vm2964, %v2957, %v2961
        %v2966 = vand.u32 2147483647, %v2771
        %vm2967 = vcmp.eq.f32.partialorder %v2966, 8.507059e+37
        %v2968 = vand.u32 %v2771, 2147483648
        %v2969 = vor.u32 1.1754944e-38, %v2968
        %v2970 = vsel %vm2967, %v2969, %v2965
        %v2971 = vmul.f32 1.0, %v2970
        %v2972 = vrcp.pop %v2772
        %v2973 = vmul.f32 %v2772, %v2972
        %v2974 = vsub.f32 1.0, %v2973
        %v2975 = vmul.f32 %v2972, %v2974
        %v2976 = vadd.f32 %v2972, %v2975
        %vm2977 = vweird.f32 %v2772
        %vm2978 = vweird.f32 %v2972
        %vm2979 = vmor %vm2977, %vm2978
        %v2980 = vsel %vm2979, %v2972, %v2976
        %v2981 = vand.u32 2147483647, %v2772
        %vm2982 = vcmp.eq.f32.partialorder %v2981, 8.507059e+37
        %v2983 = vand.u32 %v2772, 2147483648
        %v2984 = vor.u32 1.1754944e-38, %v2983
        %v2985 = vsel %vm2982, %v2984, %v2980
        %v2986 = vmul.f32 1.0, %v2985
        %v2987 = vrcp.pop %v2773
        %v2988 = vmul.f32 %v2773, %v2987
        %v2989 = vsub.f32 1.0, %v2988
        %v2990 = vmul.f32 %v2987, %v2989
        %v2991 = vadd.f32 %v2987, %v2990
        %vm2992 = vweird.f32 %v2773
        %vm2993 = vweird.f32 %v2987
        %vm2994 = vmor %vm2992, %vm2993
        %v2995 = vsel %vm2994, %v2987, %v2991
        %v2996 = vand.u32 2147483647, %v2773
        %vm2997 = vcmp.eq.f32.partialorder %v2996, 8.507059e+37
        %v2998 = vand.u32 %v2773, 2147483648
        %v2999 = vor.u32 1.1754944e-38, %v2998
        %v3000 = vsel %vm2997, %v2999, %v2995
        %v3001 = vmul.f32 1.0, %v3000
        %v3002 = vrcp.pop %v2774
        %v3003 = vmul.f32 %v2774, %v3002
        %v3004 = vsub.f32 1.0, %v3003
        %v3005 = vmul.f32 %v3002, %v3004
        %v3006 = vadd.f32 %v3002, %v3005
        %vm3007 = vweird.f32 %v2774
        %vm3008 = vweird.f32 %v3002
        %vm3009 = vmor %vm3007, %vm3008
        %v3010 = vsel %vm3009, %v3002, %v3006
        %v3011 = vand.u32 2147483647, %v2774
        %vm3012 = vcmp.eq.f32.partialorder %v3011, 8.507059e+37
        %v3013 = vand.u32 %v2774, 2147483648
        %v3014 = vor.u32 1.1754944e-38, %v3013
        %v3015 = vsel %vm3012, %v3014, %v3010
        %v3016 = vmul.f32 1.0, %v3015
        %v3017 = vrcp.pop %v2775
        %v3018 = vmul.f32 %v2775, %v3017
        %v3019 = vsub.f32 1.0, %v3018
        %v3020 = vmul.f32 %v3017, %v3019
        %v3021 = vadd.f32 %v3017, %v3020
        %vm3022 = vweird.f32 %v2775
        %vm3023 = vweird.f32 %v3017
        %vm3024 = vmor %vm3022, %vm3023
        %v3025 = vsel %vm3024, %v3017, %v3021
        %v3026 = vand.u32 2147483647, %v2775
        %vm3027 = vcmp.eq.f32.partialorder %v3026, 8.507059e+37
        %v3028 = vand.u32 %v2775, 2147483648
        %v3029 = vor.u32 1.1754944e-38, %v3028
        %v3030 = vsel %vm3027, %v3029, %v3025
        %v3031 = vmul.f32 1.0, %v3030
        %v3032 = vrcp.pop %v2776
        %v3033 = vmul.f32 %v2776, %v3032
        %v3034 = vsub.f32 1.0, %v3033
        %v3035 = vmul.f32 %v3032, %v3034
        %v3036 = vadd.f32 %v3032, %v3035
        %vm3037 = vweird.f32 %v2776
        %vm3038 = vweird.f32 %v3032
        %vm3039 = vmor %vm3037, %vm3038
        %v3040 = vsel %vm3039, %v3032, %v3036
        %v3041 = vand.u32 2147483647, %v2776
        %vm3042 = vcmp.eq.f32.partialorder %v3041, 8.507059e+37
        %v3043 = vand.u32 %v2776, 2147483648
        %v3044 = vor.u32 1.1754944e-38, %v3043
        %v3045 = vsel %vm3042, %v3044, %v3040
        %v3046 = vmul.f32 1.0, %v3045
        %v3047 = vrcp.pop %v2777
        %v3048 = vmul.f32 %v2777, %v3047
        %v3049 = vsub.f32 1.0, %v3048
        %v3050 = vmul.f32 %v3047, %v3049
        %v3051 = vadd.f32 %v3047, %v3050
        %vm3052 = vweird.f32 %v2777
        %vm3053 = vweird.f32 %v3047
        %vm3054 = vmor %vm3052, %vm3053
        %v3055 = vsel %vm3054, %v3047, %v3051
        %v3056 = vand.u32 2147483647, %v2777
        %vm3057 = vcmp.eq.f32.partialorder %v3056, 8.507059e+37
        %v3058 = vand.u32 %v2777, 2147483648
        %v3059 = vor.u32 1.1754944e-38, %v3058
        %v3060 = vsel %vm3057, %v3059, %v3055
        %v3061 = vmul.f32 1.0, %v3060
        %v3062 = vrcp.pop %v2778
        %v3063 = vmul.f32 %v2778, %v3062
        %v3064 = vsub.f32 1.0, %v3063
        %v3065 = vmul.f32 %v3062, %v3064
        %v3066 = vadd.f32 %v3062, %v3065
        %vm3067 = vweird.f32 %v2778
        %vm3068 = vweird.f32 %v3062
        %vm3069 = vmor %vm3067, %vm3068
        %v3070 = vsel %vm3069, %v3062, %v3066
        %v3071 = vand.u32 2147483647, %v2778
        %vm3072 = vcmp.eq.f32.partialorder %v3071, 8.507059e+37
        %v3073 = vand.u32 %v2778, 2147483648
        %v3074 = vor.u32 1.1754944e-38, %v3073
        %v3075 = vsel %vm3072, %v3074, %v3070
        %v3076 = vmul.f32 1.0, %v3075
        %v3077 = vrcp.pop %v2779
        %v3078 = vmul.f32 %v2779, %v3077
        %v3079 = vsub.f32 1.0, %v3078
        %v3080 = vmul.f32 %v3077, %v3079
        %v3081 = vadd.f32 %v3077, %v3080
        %vm3082 = vweird.f32 %v2779
        %vm3083 = vweird.f32 %v3077
        %vm3084 = vmor %vm3082, %vm3083
        %v3085 = vsel %vm3084, %v3077, %v3081
        %v3086 = vand.u32 2147483647, %v2779
        %vm3087 = vcmp.eq.f32.partialorder %v3086, 8.507059e+37
        %v3088 = vand.u32 %v2779, 2147483648
        %v3089 = vor.u32 1.1754944e-38, %v3088
        %v3090 = vsel %vm3087, %v3089, %v3085
        %v3091 = vmul.f32 1.0, %v3090
        %v3092 = vrcp.pop %v2780
        %v3093 = vmul.f32 %v2780, %v3092
        %v3094 = vsub.f32 1.0, %v3093
        %v3095 = vmul.f32 %v3092, %v3094
        %v3096 = vadd.f32 %v3092, %v3095
        %vm3097 = vweird.f32 %v2780
        %vm3098 = vweird.f32 %v3092
        %vm3099 = vmor %vm3097, %vm3098
        %v3100 = vsel %vm3099, %v3092, %v3096
        %v3101 = vand.u32 2147483647, %v2780
        %vm3102 = vcmp.eq.f32.partialorder %v3101, 8.507059e+37
        %v3103 = vand.u32 %v2780, 2147483648
        %v3104 = vor.u32 1.1754944e-38, %v3103
        %v3105 = vsel %vm3102, %v3104, %v3100
        %v3106 = vmul.f32 1.0, %v3105
        %v3107 = vrcp.pop %v2781
        %v3108 = vmul.f32 %v2781, %v3107
        %v3109 = vsub.f32 1.0, %v3108
        %v3110 = vmul.f32 %v3107, %v3109
        %v3111 = vadd.f32 %v3107, %v3110
        %vm3112 = vweird.f32 %v2781
        %vm3113 = vweird.f32 %v3107
        %vm3114 = vmor %vm3112, %vm3113
        %v3115 = vsel %vm3114, %v3107, %v3111
        %v3116 = vand.u32 2147483647, %v2781
        %vm3117 = vcmp.eq.f32.partialorder %v3116, 8.507059e+37
        %v3118 = vand.u32 %v2781, 2147483648
        %v3119 = vor.u32 1.1754944e-38, %v3118
        %v3120 = vsel %vm3117, %v3119, %v3115
        %v3121 = vmul.f32 1.0, %v3120
        %v3122 = vrcp.pop %v2782
        %v3123 = vmul.f32 %v2782, %v3122
        %v3124 = vsub.f32 1.0, %v3123
        %v3125 = vmul.f32 %v3122, %v3124
        %v3126 = vadd.f32 %v3122, %v3125
        %vm3127 = vweird.f32 %v2782
        %vm3128 = vweird.f32 %v3122
        %vm3129 = vmor %vm3127, %vm3128
        %v3130 = vsel %vm3129, %v3122, %v3126
        %v3131 = vand.u32 2147483647, %v2782
        %vm3132 = vcmp.eq.f32.partialorder %v3131, 8.507059e+37
        %v3133 = vand.u32 %v2782, 2147483648
        %v3134 = vor.u32 1.1754944e-38, %v3133
        %v3135 = vsel %vm3132, %v3134, %v3130
        %v3136 = vmul.f32 1.0, %v3135
        %v3137 = vrcp.pop %v2783
        %v3138 = vmul.f32 %v2783, %v3137
        %v3139 = vsub.f32 1.0, %v3138
        %v3140 = vmul.f32 %v3137, %v3139
        %v3141 = vadd.f32 %v3137, %v3140
        %vm3142 = vweird.f32 %v2783
        %vm3143 = vweird.f32 %v3137
        %vm3144 = vmor %vm3142, %vm3143
        %v3145 = vsel %vm3144, %v3137, %v3141
        %v3146 = vand.u32 2147483647, %v2783
        %vm3147 = vcmp.eq.f32.partialorder %v3146, 8.507059e+37
        %v3148 = vand.u32 %v2783, 2147483648
        %v3149 = vor.u32 1.1754944e-38, %v3148
        %v3150 = vsel %vm3147, %v3149, %v3145
        %v3151 = vmul.f32 1.0, %v3150
        %v3152 = vrcp.pop %v2784
        %v3153 = vmul.f32 %v2784, %v3152
        %v3154 = vsub.f32 1.0, %v3153
        %v3155 = vmul.f32 %v3152, %v3154
        %v3156 = vadd.f32 %v3152, %v3155
        %vm3157 = vweird.f32 %v2784
        %vm3158 = vweird.f32 %v3152
        %vm3159 = vmor %vm3157, %vm3158
        %v3160 = vsel %vm3159, %v3152, %v3156
        %v3161 = vand.u32 2147483647, %v2784
        %vm3162 = vcmp.eq.f32.partialorder %v3161, 8.507059e+37
        %v3163 = vand.u32 %v2784, 2147483648
        %v3164 = vor.u32 1.1754944e-38, %v3163
        %v3165 = vsel %vm3162, %v3164, %v3160
        %v3166 = vmul.f32 1.0, %v3165
        %v3167 = vrcp.pop %v2785
        %v3168 = vmul.f32 %v2785, %v3167
        %v3169 = vsub.f32 1.0, %v3168
        %v3170 = vmul.f32 %v3167, %v3169
        %v3171 = vadd.f32 %v3167, %v3170
        %vm3172 = vweird.f32 %v2785
        %vm3173 = vweird.f32 %v3167
        %vm3174 = vmor %vm3172, %vm3173
        %v3175 = vsel %vm3174, %v3167, %v3171
        %v3176 = vand.u32 2147483647, %v2785
        %vm3177 = vcmp.eq.f32.partialorder %v3176, 8.507059e+37
        %v3178 = vand.u32 %v2785, 2147483648
        %v3179 = vor.u32 1.1754944e-38, %v3178
        %v3180 = vsel %vm3177, %v3179, %v3175
        %v3181 = vmul.f32 1.0, %v3180
        %v3182 = vrcp.pop %v2786
        %v3183 = vmul.f32 %v2786, %v3182
        %v3184 = vsub.f32 1.0, %v3183
        %v3185 = vmul.f32 %v3182, %v3184
        %v3186 = vadd.f32 %v3182, %v3185
        %vm3187 = vweird.f32 %v2786
        %vm3188 = vweird.f32 %v3182
        %vm3189 = vmor %vm3187, %vm3188
        %v3190 = vsel %vm3189, %v3182, %v3186
        %v3191 = vand.u32 2147483647, %v2786
        %vm3192 = vcmp.eq.f32.partialorder %v3191, 8.507059e+37
        %v3193 = vand.u32 %v2786, 2147483648
        %v3194 = vor.u32 1.1754944e-38, %v3193
        %v3195 = vsel %vm3192, %v3194, %v3190
        %v3196 = vmul.f32 1.0, %v3195
        %v3197 = vrcp.pop %v2787
        %v3198 = vmul.f32 %v2787, %v3197
        %v3199 = vsub.f32 1.0, %v3198
        %v3200 = vmul.f32 %v3197, %v3199
        %v3201 = vadd.f32 %v3197, %v3200
        %vm3202 = vweird.f32 %v2787
        %vm3203 = vweird.f32 %v3197
        %vm3204 = vmor %vm3202, %vm3203
        %v3205 = vsel %vm3204, %v3197, %v3201
        %v3206 = vand.u32 2147483647, %v2787
        %vm3207 = vcmp.eq.f32.partialorder %v3206, 8.507059e+37
        %v3208 = vand.u32 %v2787, 2147483648
        %v3209 = vor.u32 1.1754944e-38, %v3208
        %v3210 = vsel %vm3207, %v3209, %v3205
        %v3211 = vmul.f32 1.0, %v3210
        %v3212 = vrcp.pop %v2788
        %v3213 = vmul.f32 %v2788, %v3212
        %v3214 = vsub.f32 1.0, %v3213
        %v3215 = vmul.f32 %v3212, %v3214
        %v3216 = vadd.f32 %v3212, %v3215
        %vm3217 = vweird.f32 %v2788
        %vm3218 = vweird.f32 %v3212
        %vm3219 = vmor %vm3217, %vm3218
        %v3220 = vsel %vm3219, %v3212, %v3216
        %v3221 = vand.u32 2147483647, %v2788
        %vm3222 = vcmp.eq.f32.partialorder %v3221, 8.507059e+37
        %v3223 = vand.u32 %v2788, 2147483648
        %v3224 = vor.u32 1.1754944e-38, %v3223
        %v3225 = vsel %vm3222, %v3224, %v3220
        %v3226 = vmul.f32 1.0, %v3225
        %v3227 = vrcp.pop %v2789
        %v3228 = vmul.f32 %v2789, %v3227
        %v3229 = vsub.f32 1.0, %v3228
        %v3230 = vmul.f32 %v3227, %v3229
        %v3231 = vadd.f32 %v3227, %v3230
        %vm3232 = vweird.f32 %v2789
        %vm3233 = vweird.f32 %v3227
        %vm3234 = vmor %vm3232, %vm3233
        %v3235 = vsel %vm3234, %v3227, %v3231
        %v3236 = vand.u32 2147483647, %v2789
        %vm3237 = vcmp.eq.f32.partialorder %v3236, 8.507059e+37
        %v3238 = vand.u32 %v2789, 2147483648
        %v3239 = vor.u32 1.1754944e-38, %v3238
        %v3240 = vsel %vm3237, %v3239, %v3235
        %v3241 = vmul.f32 1.0, %v3240
        %v3242 = vrcp.pop %v2790
        %v3243 = vmul.f32 %v2790, %v3242
        %v3244 = vsub.f32 1.0, %v3243
        %v3245 = vmul.f32 %v3242, %v3244
        %v3246 = vadd.f32 %v3242, %v3245
        %vm3247 = vweird.f32 %v2790
        %vm3248 = vweird.f32 %v3242
        %vm3249 = vmor %vm3247, %vm3248
        %v3250 = vsel %vm3249, %v3242, %v3246
        %v3251 = vand.u32 2147483647, %v2790
        %vm3252 = vcmp.eq.f32.partialorder %v3251, 8.507059e+37
        %v3253 = vand.u32 %v2790, 2147483648
        %v3254 = vor.u32 1.1754944e-38, %v3253
        %v3255 = vsel %vm3252, %v3254, %v3250
        %v3256 = vmul.f32 1.0, %v3255
        %v3257 = vrcp.pop %v2791
        %v3258 = vmul.f32 %v2791, %v3257
        %v3259 = vsub.f32 1.0, %v3258
        %v3260 = vmul.f32 %v3257, %v3259
        %v3261 = vadd.f32 %v3257, %v3260
        %vm3262 = vweird.f32 %v2791
        %vm3263 = vweird.f32 %v3257
        %vm3264 = vmor %vm3262, %vm3263
        %v3265 = vsel %vm3264, %v3257, %v3261
        %v3266 = vand.u32 2147483647, %v2791
        %vm3267 = vcmp.eq.f32.partialorder %v3266, 8.507059e+37
        %v3268 = vand.u32 %v2791, 2147483648
        %v3269 = vor.u32 1.1754944e-38, %v3268
        %v3270 = vsel %vm3267, %v3269, %v3265
        %v3271 = vmul.f32 1.0, %v3270
        %3272 = vst [vmem:[%s191] sm:$0xff] %v2806
        %3273 = vst [vmem:[%s191 + $0x8] sm:$0xff] %v2821
        %3274 = vst [vmem:[%s191 + $0x10] sm:$0xff] %v2836
        %3275 = vst [vmem:[%s191 + $0x18] sm:$0xff] %v2851
        %3276 = vst [vmem:[%s191 + $0x20] sm:$0xff] %v2866
        %3277 = vst [vmem:[%s191 + $0x28] sm:$0xff] %v2881
        %3278 = vst [vmem:[%s191 + $0x30] sm:$0xff] %v2896
        %3279 = vst [vmem:[%s191 + $0x38] sm:$0xff] %v2911
        %3280 = vst [vmem:[%s191 + $0x40] sm:$0xff] %v2926
        %3281 = vst [vmem:[%s191 + $0x48] sm:$0xff] %v2941
        %3282 = vst [vmem:[%s191 + $0x50] sm:$0xff] %v2956
        %3283 = vst [vmem:[%s191 + $0x58] sm:$0xff] %v2971
        %3284 = vst [vmem:[%s191 + $0x60] sm:$0xff] %v2986
        %3285 = vst [vmem:[%s191 + $0x68] sm:$0xff] %v3001
        %3286 = vst [vmem:[%s191 + $0x70] sm:$0xff] %v3016
        %3287 = vst [vmem:[%s191 + $0x78] sm:$0xff] %v3031
        %3288 = vst [vmem:[%s191 + $0x80] sm:$0xff] %v3046
        %3289 = vst [vmem:[%s191 + $0x88] sm:$0xff] %v3061
        %3290 = vst [vmem:[%s191 + $0x90] sm:$0xff] %v3076
        %3291 = vst [vmem:[%s191 + $0x98] sm:$0xff] %v3091
        %3292 = vst [vmem:[%s191 + $0xa0] sm:$0xff] %v3106
        %3293 = vst [vmem:[%s191 + $0xa8] sm:$0xff] %v3121
        %3294 = vst [vmem:[%s191 + $0xb0] sm:$0xff] %v3136
        %3295 = vst [vmem:[%s191 + $0xb8] sm:$0xff] %v3151
        %3296 = vst [vmem:[%s191 + $0xc0] sm:$0xff] %v3166
        %3297 = vst [vmem:[%s191 + $0xc8] sm:$0xff] %v3181
        %3298 = vst [vmem:[%s191 + $0xd0] sm:$0xff] %v3196
        %3299 = vst [vmem:[%s191 + $0xd8] sm:$0xff] %v3211
        %3300 = vst [vmem:[%s191 + $0xe0] sm:$0xff] %v3226
        %3301 = vst [vmem:[%s191 + $0xe8] sm:$0xff] %v3241
        %3302 = vst [vmem:[%s191 + $0xf0] sm:$0xff] %v3256
        %3303 = vst [vmem:[%s191 + $0xf8] sm:$0xff] %v3271
        %s3304 = sand.u32 %s115, 1
        %s3305 = scalar_lea.sflag [#allocation3], %s3304
        %s3306 = sand.u32 %s115, 1
        %s3307 = smul.addr %s3306, 256
        %s3308 = scalar_lea.vmem [#allocation2], %s3307
        // Predicated region
        $region37: #{tpu_custom_call.1} parent=35 // pred_check
          %p3309 = pneg %p125
        $region38: #{tpu_custom_call.1} parent=35 // pred_check_branch
          %3311 = sbr.rel (%p3309) target = $region40
        $region39: #{tpu_custom_call.1} parent=35 // pred_region
          %s3312 = smul.u32 32, %s18
          %3314 = vsyncadd %s3305, 0
          %s3315 = smul.addr %s3312, 8
          %s3316 = scalar_lea.hbm %s4, %s3315
          %s3317 = sshll.u32 %s3308, 4
          %s3318 = int_to_ptr.vmem [resolvable:$true] %s3317
          %s3319 = sshll.u32 %s3316, 4
          %s3320 = int_to_ptr.hbm [resolvable:$true] %s3319
          %3325 = dma.vmem_to_hbm [thread:$0]  %s3318, 4096, %s3320, %s3305, 128, 128, 8
        $region40: #{tpu_custom_call.1} parent=35 // pred_fallthru
          _
      $region36: #{tpu_custom_call.1} parent=5 // pred_fallthru
        _
      %p3326 = scmp.le.s32.totalorder 2, %s13
      // Predicated region
      $region41: #{tpu_custom_call.1} parent=5 // pred_check
        %p3327 = pneg %p3326
      $region42: #{tpu_custom_call.1} parent=5 // pred_check_branch
        %3329 = sbr.rel (%p3327) target = $region44
      $region43: #{tpu_custom_call.1} parent=5 // pred_region
        %s3330 = ssub.s32 %s13, 2
        // Predicated region
        $region45: #{tpu_custom_call.1} parent=43 // pred_check
          %p3331 = pneg %p131
        $region46: #{tpu_custom_call.1} parent=43 // pred_check_branch
          %3333 = sbr.rel (%p3331) target = $region48
        $region47: #{tpu_custom_call.1} parent=43 // pred_region
          %s3334 = sand.u32 %s116, 1
          %s3335 = scalar_lea.sflag [#allocation3], %s3334
          %s3336 = sand.u32 %s116, 1
          %s3337 = smul.addr %s3336, 256
          %s3338 = scalar_lea.vmem [#allocation2], %s3337
          %3340 = dma.done %s3335, 4096
        $region48: #{tpu_custom_call.1} parent=43 // pred_fallthru
          _
      $region44: #{tpu_custom_call.1} parent=5 // pred_fallthru
        _
    $region6: #{tpu_custom_call.1} parent=1 // loop_footer
      %s17 = sadd.s32 1, %s13
    $region7: #{tpu_custom_call.1} parent=1 // loop_footer_branch
      %12 = sbr.rel target = $region3
    $region8: #{tpu_custom_call.1} parent=1 // loop_exit
      _
    %3341 = vsyncpa [#allocation3], 1
    %s3342 = scalar_lea.sflag [#allocation3], 1
    %3343 = vsyncpa %s3342, 1

</llo_original>
